<compile_context>
chip_gen: v7x
topology: tpu7x:2x2x1
jax: 0.10.0
libtpu: 0.0.40
codegen_flags: <defaults>
</compile_context>

<pallas_src>
import jax
import jax.numpy as jnp
from jax.experimental import pallas as pl
from jax.experimental.pallas import tpu as pltpu


# ----------------------------------------------------------------------------
# Single fused kernel: lstm1 + relu + lstm2 + relu + dense1 + relu + dense2 + tanh
# ----------------------------------------------------------------------------
def _fused_lstm_model_kernel(x_ref, wih1_ref, whh1_ref, b1_ref,
                             wih2_ref, whh2_ref, b2_ref,
                             wd1_ref, bd1_ref, wd2_ref, bd2_ref,
                             out_ref):
    Bp = out_ref.shape[0]                 # padded batch (sublane multiple of 8)
    H = whh1_ref.shape[0]
    T = x_ref.shape[0] // Bp              # x is (T*Bp, I), time-major rows
    D1 = wd1_ref.shape[1]                 # dense1 width (128)

    # Loop-invariant loads (hoisted once; LLO keeps them in vregs).
    whh1 = whh1_ref[...]
    whh2 = whh2_ref[...]
    wih2 = wih2_ref[...]
    b2 = b2_ref[...]
    wd1 = wd1_ref[...]

    # ---- Layer-1 input projection hoisted over all T steps (one MXU matmul),
    #      bias folded in.  (T*Bp, 4H)
    xp1 = jnp.dot(x_ref[...], wih1_ref[...],
                  preferred_element_type=jnp.float32) + b1_ref[...]

    def lstm_cell(gates, c):
        # Full-vreg transcendentals (2 EUP pushes), then cheap static slices.
        sig = jax.nn.sigmoid(gates)
        tnh = jnp.tanh(gates)
        i_g = sig[:, 0:H]
        f_g = sig[:, H:2 * H]
        g_g = tnh[:, 2 * H:3 * H]
        o_g = sig[:, 3 * H:4 * H]
        c_new = f_g * c + i_g * g_g
        h_new = o_g * jnp.tanh(c_new)
        return h_new, c_new

    h1 = jnp.zeros((Bp, H), jnp.float32)
    c1 = jnp.zeros((Bp, H), jnp.float32)
    h2 = jnp.zeros((Bp, H), jnp.float32)
    c2 = jnp.zeros((Bp, H), jnp.float32)
    d1_acc = jnp.zeros((Bp, D1), jnp.float32)

    # ---- Interleaved wavefront over time: L1 step t, L2 step t, dense1 chunk t.
    # L1 step t+1 depends only on (h1,c1); it can overlap with L2 step t.
    for t in range(T):                     # static unrolled, T=8
        # Layer 1, step t (aligned (8, 4H) slice of the hoisted projection).
        gates1 = xp1[t * Bp:(t + 1) * Bp, :] + jnp.dot(
            h1, whh1, preferred_element_type=jnp.float32)
        h1, c1 = lstm_cell(gates1, c1)
        # ReLU only on the emitted value (PyTorch semantics); carried state
        # stays un-rectified.  Kept in vregs, feeds L2 immediately.
        r1 = jnp.maximum(h1, 0.0)

        # Layer 2, step t (per-step input projection, off the L2 critical chain).
        gates2 = (jnp.dot(r1, wih2, preferred_element_type=jnp.float32) + b2
                  + jnp.dot(h2, whh2, preferred_element_type=jnp.float32))
        h2, c2 = lstm_cell(gates2, c2)
        r2 = jnp.maximum(h2, 0.0)

        # dense1 fused as a running accumulation over the flattened (B, T*H)
        # feature: feat[:, t*H:(t+1)*H] @ wd1T[t*H:(t+1)*H, :].
        d1_acc = d1_acc + jnp.dot(r2, wd1[t * H:(t + 1) * H, :],
                                  preferred_element_type=jnp.float32)

    # ---- Dense head: tanh( relu(d1_acc + b1) @ W2 + b2 )   (lane-dense store)
    d1 = jnp.maximum(d1_acc + bd1_ref[...], 0.0)
    out_ref[...] = jnp.tanh(
        jnp.dot(d1, wd2_ref[...], preferred_element_type=jnp.float32)
        + bd2_ref[...])


# ----------------------------------------------------------------------------
# Full model forward (mirrors LSTMmodel.forward with zero initial hidden state)
# ----------------------------------------------------------------------------
def lstm_model_forward(x, params, batch_size, seq_len):
    B, T = batch_size, seq_len
    x = x.reshape(B, T, -1).astype(jnp.float32)                # (B, T, I)
    I = x.shape[-1]

    w_ih1, w_hh1, b_ih1, b_hh1 = params["lstm1"]
    w_ih2, w_hh2, b_ih2, b_hh2 = params["lstm2"]
    wd1, bd1 = params["dense1"]
    wd2, bd2 = params["dense2"]
    H = w_hh1.shape[1]
    P = wd2.shape[0]
    D1 = wd1.shape[0]                                          # 128

    # Pad batch to a full sublane group (8): every per-step slice becomes one
    # aligned (8,128) vreg.  Padded rows are zero (finite through the
    # nonlinearities) and never mix with real rows in any matmul.
    Bp = max(8, ((B + 7) // 8) * 8)
    x_pad = jnp.zeros((Bp, T, I), jnp.float32).at[:B].set(x)
    # Time-major flatten so per-step gate rows are contiguous, aligned slices.
    x_tb = jnp.transpose(x_pad, (1, 0, 2)).reshape(T * Bp, I)

    # Lane-dense output: zero-pad pred_len to 128 columns, slice back on host.
    Pp = 128
    wd2_t = jnp.zeros((D1, Pp), jnp.float32).at[:, :P].set(
        wd2.T.astype(jnp.float32))
    bd2_p = jnp.zeros((1, Pp), jnp.float32).at[:, :P].set(
        bd2.reshape(1, -1).astype(jnp.float32))

    args = (
        x_tb,                                                  # (T*Bp, I)
        w_ih1.T.astype(jnp.float32),                           # (I, 4H)
        w_hh1.T.astype(jnp.float32),                           # (H, 4H)
        (b_ih1 + b_hh1).reshape(1, 4 * H).astype(jnp.float32), # (1, 4H)
        w_ih2.T.astype(jnp.float32),                           # (H, 4H)
        w_hh2.T.astype(jnp.float32),                           # (H, 4H)
        (b_ih2 + b_hh2).reshape(1, 4 * H).astype(jnp.float32), # (1, 4H)
        wd1.T.astype(jnp.float32),                             # (T*H, 128)
        bd1.reshape(1, -1).astype(jnp.float32),                # (1, 128)
        wd2_t,                                                 # (128, 128)
        bd2_p,                                                 # (1, 128)
    )

    def _full2d(a):
        return pl.BlockSpec(a.shape, lambda i: (0, 0))

    out_p = pl.pallas_call(
        _fused_lstm_model_kernel,
        out_shape=jax.ShapeDtypeStruct((Bp, Pp), jnp.float32),
        grid_spec=pltpu.PrefetchScalarGridSpec(
            num_scalar_prefetch=0,
            grid=(1,),                                   # single invocation
            in_specs=[_full2d(a) for a in args],
            out_specs=pl.BlockSpec((Bp, Pp), lambda i: (0, 0)),
        ),
        compiler_params=pltpu.CompilerParams(
            dimension_semantics=("arbitrary",)),
    )(*args)
    return out_p[:B, :P]


# ----------------------------------------------------------------------------
# Deterministic parameter init (PyTorch-like uniform(-1/sqrt(fan), 1/sqrt(fan)))
# ----------------------------------------------------------------------------
def init_params(key, input_size, hidden_units, seq_len, pred_len):
    def unif(k, shape, bound):
        return jax.random.uniform(k, shape, jnp.float32, -bound, bound)

    ks = jax.random.split(key, 12)
    kH = 1.0 / jnp.sqrt(hidden_units)
    kD1 = 1.0 / jnp.sqrt(hidden_units * seq_len)
    kD2 = 1.0 / jnp.sqrt(128.0)
    return {
        "lstm1": (
            unif(ks[0], (4 * hidden_units, input_size), kH),
            unif(ks[1], (4 * hidden_units, hidden_units), kH),
            unif(ks[2], (4 * hidden_units,), kH),
            unif(ks[3], (4 * hidden_units,), kH),
        ),
        "lstm2": (
            unif(ks[4], (4 * hidden_units, hidden_units), kH),
            unif(ks[5], (4 * hidden_units, hidden_units), kH),
            unif(ks[6], (4 * hidden_units,), kH),
            unif(ks[7], (4 * hidden_units,), kH),
        ),
        "dense1": (
            unif(ks[8], (128, hidden_units * seq_len), kD1),
            unif(ks[9], (128,), kD1),
        ),
        "dense2": (
            unif(ks[10], (pred_len, 128), kD2),
            unif(ks[11], (pred_len,), kD2),
        ),
    }


# ----------------------------------------------------------------------------
# Pure-JAX reference (for silent correctness check)
# ----------------------------------------------------------------------------
def _ref_lstm(x_bti, w_ih, w_hh, b_ih, b_hh):
    B, T, _ = x_bti.shape
    H = w_hh.shape[1]

    def step(carry, x_t):
        h, c = carry
        gates = x_t @ w_ih.T + h @ w_hh.T + b_ih + b_hh
        i = jax.nn.sigmoid(gates[:, 0:H])
        f = jax.nn.sigmoid(gates[:, H:2 * H])
        g = jnp.tanh(gates[:, 2 * H:3 * H])
        o = jax.nn.sigmoid(gates[:, 3 * H:4 * H])
        c = f * c + i * g
        h = o * jnp.tanh(c)
        return (h, c), h

    h0 = jnp.zeros((B, H), jnp.float32)
    c0 = jnp.zeros((B, H), jnp.float32)
    _, hs = jax.lax.scan(step, (h0, c0), jnp.transpose(x_bti, (1, 0, 2)))
    return jnp.transpose(hs, (1, 0, 2))  # (B, T, H)


def _ref_forward(x, params, B, T):
    x = x.reshape(B, T, -1)
    o1 = jax.nn.relu(_ref_lstm(x, *params["lstm1"]))
    o2 = jax.nn.relu(_ref_lstm(o1, *params["lstm2"]))
    feat = o2.reshape(B, -1)
    w1, b1 = params["dense1"]
    w2, b2 = params["dense2"]
    h = jax.nn.relu(feat @ w1.T + b1)
    return jnp.tanh(h @ w2.T + b2)


if __name__ == "__main__":
    BATCH = 2
    INPUT = 4
    HIDDEN = 32
    SEQ_LEN = 8
    PRED_LEN = 4

    key = jax.random.PRNGKey(0)
    k_x, k_p = jax.random.split(key)
    x = jax.random.normal(k_x, (BATCH, SEQ_LEN, INPUT), dtype=jnp.float32)
    params = init_params(k_p, INPUT, HIDDEN, SEQ_LEN, PRED_LEN)

    fwd = jax.jit(lstm_model_forward, static_argnums=(2, 3))
    out = fwd(x, params, BATCH, SEQ_LEN)
    out = jax.block_until_ready(out)

    ref = _ref_forward(x, params, BATCH, SEQ_LEN)
    assert out.shape == (BATCH, PRED_LEN)
    assert jnp.allclose(out, ref, atol=1e-4, rtol=1e-4)

    print("KERNEL_OK")
</pallas_src>

<mosaic_0001>
module attributes {stable_mosaic.version = 11 : i64} {
  func.func @_fused_lstm_model_kernel(%arg0: i32, %arg1: memref<64x4xf32, #tpu.memory_space<vmem>>, %arg2: memref<4x128xf32, #tpu.memory_space<vmem>>, %arg3: memref<32x128xf32, #tpu.memory_space<vmem>>, %arg4: memref<1x128xf32, #tpu.memory_space<vmem>>, %arg5: memref<32x128xf32, #tpu.memory_space<vmem>>, %arg6: memref<32x128xf32, #tpu.memory_space<vmem>>, %arg7: memref<1x128xf32, #tpu.memory_space<vmem>>, %arg8: memref<256x128xf32, #tpu.memory_space<vmem>>, %arg9: memref<1x128xf32, #tpu.memory_space<vmem>>, %arg10: memref<128x128xf32, #tpu.memory_space<vmem>>, %arg11: memref<1x128xf32, #tpu.memory_space<vmem>>, %arg12: memref<8x128xf32, #tpu.memory_space<vmem>>) attributes {dimension_semantics = [#tpu.dimension_semantics<arbitrary>], iteration_bounds = array<i64: 1>, scalar_prefetch = 0 : i64, scratch_operands = 0 : i64, tpu.core_type = #tpu.core_type<tc>, window_params = [{pipeline_mode = #tpu.pipeline_mode<synchronous>, transform_indices = @transform_0, window_bounds = array<i64: 64, 4>}, {pipeline_mode = #tpu.pipeline_mode<synchronous>, transform_indices = @transform_1, window_bounds = array<i64: 4, 128>}, {pipeline_mode = #tpu.pipeline_mode<synchronous>, transform_indices = @transform_2, window_bounds = array<i64: 32, 128>}, {pipeline_mode = #tpu.pipeline_mode<synchronous>, transform_indices = @transform_3, window_bounds = array<i64: 1, 128>}, {pipeline_mode = #tpu.pipeline_mode<synchronous>, transform_indices = @transform_4, window_bounds = array<i64: 32, 128>}, {pipeline_mode = #tpu.pipeline_mode<synchronous>, transform_indices = @transform_5, window_bounds = array<i64: 32, 128>}, {pipeline_mode = #tpu.pipeline_mode<synchronous>, transform_indices = @transform_6, window_bounds = array<i64: 1, 128>}, {pipeline_mode = #tpu.pipeline_mode<synchronous>, transform_indices = @transform_7, window_bounds = array<i64: 256, 128>}, {pipeline_mode = #tpu.pipeline_mode<synchronous>, transform_indices = @transform_8, window_bounds = array<i64: 1, 128>}, {pipeline_mode = #tpu.pipeline_mode<synchronous>, transform_indices = @transform_9, window_bounds = array<i64: 128, 128>}, {pipeline_mode = #tpu.pipeline_mode<synchronous>, transform_indices = @transform_10, window_bounds = array<i64: 1, 128>}, {pipeline_mode = #tpu.pipeline_mode<synchronous>, transform_indices = @transform_11, window_bounds = array<i64: 8, 128>}]} {
    %c0 = arith.constant 0 : index
    %c0_0 = arith.constant 0 : index
    %0 = vector.load %arg3[%c0, %c0_0] : memref<32x128xf32, #tpu.memory_space<vmem>>, vector<32x128xf32>
    %c0_1 = arith.constant 0 : index
    %c0_2 = arith.constant 0 : index
    %1 = vector.load %arg6[%c0_1, %c0_2] : memref<32x128xf32, #tpu.memory_space<vmem>>, vector<32x128xf32>
    %c0_3 = arith.constant 0 : index
    %c0_4 = arith.constant 0 : index
    %2 = vector.load %arg5[%c0_3, %c0_4] : memref<32x128xf32, #tpu.memory_space<vmem>>, vector<32x128xf32>
    %c0_5 = arith.constant 0 : index
    %c0_6 = arith.constant 0 : index
    %3 = vector.load %arg7[%c0_5, %c0_6] : memref<1x128xf32, #tpu.memory_space<vmem>>, vector<1x128xf32>
    %c0_7 = arith.constant 0 : index
    %c0_8 = arith.constant 0 : index
    %4 = vector.load %arg8[%c0_7, %c0_8] : memref<256x128xf32, #tpu.memory_space<vmem>>, vector<256x128xf32>
    %c0_9 = arith.constant 0 : index
    %c0_10 = arith.constant 0 : index
    %5 = vector.load %arg1[%c0_9, %c0_10] : memref<64x4xf32, #tpu.memory_space<vmem>>, vector<64x4xf32>
    %c0_11 = arith.constant 0 : index
    %c0_12 = arith.constant 0 : index
    %6 = vector.load %arg2[%c0_11, %c0_12] : memref<4x128xf32, #tpu.memory_space<vmem>>, vector<4x128xf32>
    %cst = arith.constant dense<0.000000e+00> : vector<64x128xf32>
    %7 = tpu.matmul %5, %6, %cst {dimension_numbers = #tpu.dot_dimension_numbers<[1], [0], [0], [1], [0, 0, 1, 1], [], []>} : vector<64x4xf32>, vector<4x128xf32>, vector<64x128xf32> -> vector<64x128xf32>
    %c0_13 = arith.constant 0 : index
    %c0_14 = arith.constant 0 : index
    %8 = vector.load %arg4[%c0_13, %c0_14] : memref<1x128xf32, #tpu.memory_space<vmem>>, vector<1x128xf32>
    %9 = vector.broadcast %8 : vector<1x128xf32> to vector<64x128xf32>
    %10 = arith.addf %7, %9 : vector<64x128xf32>
    %cst_15 = arith.constant 0.000000e+00 : f32
    %11 = vector.broadcast %cst_15 : f32 to vector<8x32xf32>
    %cst_16 = arith.constant 0.000000e+00 : f32
    %12 = vector.broadcast %cst_16 : f32 to vector<8x32xf32>
    %cst_17 = arith.constant 0.000000e+00 : f32
    %13 = vector.broadcast %cst_17 : f32 to vector<8x32xf32>
    %cst_18 = arith.constant 0.000000e+00 : f32
    %14 = vector.broadcast %cst_18 : f32 to vector<8x32xf32>
    %cst_19 = arith.constant 0.000000e+00 : f32
    %15 = vector.broadcast %cst_19 : f32 to vector<8x128xf32>
    %16 = vector.extract_strided_slice %10 {offsets = [0, 0], sizes = [8, 128], strides = [1, 1]} : vector<64x128xf32> to vector<8x128xf32>
    %cst_20 = arith.constant dense<0.000000e+00> : vector<8x128xf32>
    %17 = tpu.matmul %11, %0, %cst_20 {dimension_numbers = #tpu.dot_dimension_numbers<[1], [0], [0], [1], [0, 0, 1, 1], [], []>} : vector<8x32xf32>, vector<32x128xf32>, vector<8x128xf32> -> vector<8x128xf32>
    %18 = arith.addf %16, %17 : vector<8x128xf32>
    %19 = arith.negf %18 : vector<8x128xf32>
    %20 = math.exp %19 : vector<8x128xf32>
    %cst_21 = arith.constant 1.000000e+00 : f32
    %21 = vector.broadcast %cst_21 : f32 to vector<8x128xf32>
    %22 = arith.addf %21, %20 : vector<8x128xf32>
    %23 = arith.divf %21, %22 : vector<8x128xf32>
    %24 = math.tanh %18 : vector<8x128xf32>
    %25 = vector.extract_strided_slice %23 {offsets = [0, 0], sizes = [8, 32], strides = [1, 1]} : vector<8x128xf32> to vector<8x32xf32>
    %26 = vector.extract_strided_slice %23 {offsets = [0, 32], sizes = [8, 32], strides = [1, 1]} : vector<8x128xf32> to vector<8x32xf32>
    %27 = vector.extract_strided_slice %24 {offsets = [0, 64], sizes = [8, 32], strides = [1, 1]} : vector<8x128xf32> to vector<8x32xf32>
    %28 = vector.extract_strided_slice %23 {offsets = [0, 96], sizes = [8, 32], strides = [1, 1]} : vector<8x128xf32> to vector<8x32xf32>
    %29 = arith.mulf %26, %12 : vector<8x32xf32>
    %30 = arith.mulf %25, %27 : vector<8x32xf32>
    %31 = arith.addf %29, %30 : vector<8x32xf32>
    %32 = math.tanh %31 : vector<8x32xf32>
    %33 = arith.mulf %28, %32 : vector<8x32xf32>
    %cst_22 = arith.constant 0.000000e+00 : f32
    %34 = vector.broadcast %cst_22 : f32 to vector<8x32xf32>
    %35 = arith.maximumf %33, %34 : vector<8x32xf32>
    %cst_23 = arith.constant dense<0.000000e+00> : vector<8x128xf32>
    %36 = tpu.matmul %35, %2, %cst_23 {dimension_numbers = #tpu.dot_dimension_numbers<[1], [0], [0], [1], [0, 0, 1, 1], [], []>} : vector<8x32xf32>, vector<32x128xf32>, vector<8x128xf32> -> vector<8x128xf32>
    %37 = vector.broadcast %3 : vector<1x128xf32> to vector<8x128xf32>
    %38 = arith.addf %36, %37 : vector<8x128xf32>
    %cst_24 = arith.constant dense<0.000000e+00> : vector<8x128xf32>
    %39 = tpu.matmul %13, %1, %cst_24 {dimension_numbers = #tpu.dot_dimension_numbers<[1], [0], [0], [1], [0, 0, 1, 1], [], []>} : vector<8x32xf32>, vector<32x128xf32>, vector<8x128xf32> -> vector<8x128xf32>
    %40 = arith.addf %38, %39 : vector<8x128xf32>
    %41 = arith.negf %40 : vector<8x128xf32>
    %42 = math.exp %41 : vector<8x128xf32>
    %cst_25 = arith.constant 1.000000e+00 : f32
    %43 = vector.broadcast %cst_25 : f32 to vector<8x128xf32>
    %44 = arith.addf %43, %42 : vector<8x128xf32>
    %45 = arith.divf %43, %44 : vector<8x128xf32>
    %46 = math.tanh %40 : vector<8x128xf32>
    %47 = vector.extract_strided_slice %45 {offsets = [0, 0], sizes = [8, 32], strides = [1, 1]} : vector<8x128xf32> to vector<8x32xf32>
    %48 = vector.extract_strided_slice %45 {offsets = [0, 32], sizes = [8, 32], strides = [1, 1]} : vector<8x128xf32> to vector<8x32xf32>
    %49 = vector.extract_strided_slice %46 {offsets = [0, 64], sizes = [8, 32], strides = [1, 1]} : vector<8x128xf32> to vector<8x32xf32>
    %50 = vector.extract_strided_slice %45 {offsets = [0, 96], sizes = [8, 32], strides = [1, 1]} : vector<8x128xf32> to vector<8x32xf32>
    %51 = arith.mulf %48, %14 : vector<8x32xf32>
    %52 = arith.mulf %47, %49 : vector<8x32xf32>
    %53 = arith.addf %51, %52 : vector<8x32xf32>
    %54 = math.tanh %53 : vector<8x32xf32>
    %55 = arith.mulf %50, %54 : vector<8x32xf32>
    %cst_26 = arith.constant 0.000000e+00 : f32
    %56 = vector.broadcast %cst_26 : f32 to vector<8x32xf32>
    %57 = arith.maximumf %55, %56 : vector<8x32xf32>
    %58 = vector.extract_strided_slice %4 {offsets = [0, 0], sizes = [32, 128], strides = [1, 1]} : vector<256x128xf32> to vector<32x128xf32>
    %cst_27 = arith.constant dense<0.000000e+00> : vector<8x128xf32>
    %59 = tpu.matmul %57, %58, %cst_27 {dimension_numbers = #tpu.dot_dimension_numbers<[1], [0], [0], [1], [0, 0, 1, 1], [], []>} : vector<8x32xf32>, vector<32x128xf32>, vector<8x128xf32> -> vector<8x128xf32>
    %60 = arith.addf %15, %59 : vector<8x128xf32>
    %61 = vector.extract_strided_slice %10 {offsets = [8, 0], sizes = [8, 128], strides = [1, 1]} : vector<64x128xf32> to vector<8x128xf32>
    %cst_28 = arith.constant dense<0.000000e+00> : vector<8x128xf32>
    %62 = tpu.matmul %33, %0, %cst_28 {dimension_numbers = #tpu.dot_dimension_numbers<[1], [0], [0], [1], [0, 0, 1, 1], [], []>} : vector<8x32xf32>, vector<32x128xf32>, vector<8x128xf32> -> vector<8x128xf32>
    %63 = arith.addf %61, %62 : vector<8x128xf32>
    %64 = arith.negf %63 : vector<8x128xf32>
    %65 = math.exp %64 : vector<8x128xf32>
    %cst_29 = arith.constant 1.000000e+00 : f32
    %66 = vector.broadcast %cst_29 : f32 to vector<8x128xf32>
    %67 = arith.addf %66, %65 : vector<8x128xf32>
    %68 = arith.divf %66, %67 : vector<8x128xf32>
    %69 = math.tanh %63 : vector<8x128xf32>
    %70 = vector.extract_strided_slice %68 {offsets = [0, 0], sizes = [8, 32], strides = [1, 1]} : vector<8x128xf32> to vector<8x32xf32>
    %71 = vector.extract_strided_slice %68 {offsets = [0, 32], sizes = [8, 32], strides = [1, 1]} : vector<8x128xf32> to vector<8x32xf32>
    %72 = vector.extract_strided_slice %69 {offsets = [0, 64], sizes = [8, 32], strides = [1, 1]} : vector<8x128xf32> to vector<8x32xf32>
    %73 = vector.extract_strided_slice %68 {offsets = [0, 96], sizes = [8, 32], strides = [1, 1]} : vector<8x128xf32> to vector<8x32xf32>
    %74 = arith.mulf %71, %31 : vector<8x32xf32>
    %75 = arith.mulf %70, %72 : vector<8x32xf32>
    %76 = arith.addf %74, %75 : vector<8x32xf32>
    %77 = math.tanh %76 : vector<8x32xf32>
    %78 = arith.mulf %73, %77 : vector<8x32xf32>
    %cst_30 = arith.constant 0.000000e+00 : f32
    %79 = vector.broadcast %cst_30 : f32 to vector<8x32xf32>
    %80 = arith.maximumf %78, %79 : vector<8x32xf32>
    %cst_31 = arith.constant dense<0.000000e+00> : vector<8x128xf32>
    %81 = tpu.matmul %80, %2, %cst_31 {dimension_numbers = #tpu.dot_dimension_numbers<[1], [0], [0], [1], [0, 0, 1, 1], [], []>} : vector<8x32xf32>, vector<32x128xf32>, vector<8x128xf32> -> vector<8x128xf32>
    %82 = vector.broadcast %3 : vector<1x128xf32> to vector<8x128xf32>
    %83 = arith.addf %81, %82 : vector<8x128xf32>
    %cst_32 = arith.constant dense<0.000000e+00> : vector<8x128xf32>
    %84 = tpu.matmul %55, %1, %cst_32 {dimension_numbers = #tpu.dot_dimension_numbers<[1], [0], [0], [1], [0, 0, 1, 1], [], []>} : vector<8x32xf32>, vector<32x128xf32>, vector<8x128xf32> -> vector<8x128xf32>
    %85 = arith.addf %83, %84 : vector<8x128xf32>
    %86 = arith.negf %85 : vector<8x128xf32>
    %87 = math.exp %86 : vector<8x128xf32>
    %cst_33 = arith.constant 1.000000e+00 : f32
    %88 = vector.broadcast %cst_33 : f32 to vector<8x128xf32>
    %89 = arith.addf %88, %87 : vector<8x128xf32>
    %90 = arith.divf %88, %89 : vector<8x128xf32>
    %91 = math.tanh %85 : vector<8x128xf32>
    %92 = vector.extract_strided_slice %90 {offsets = [0, 0], sizes = [8, 32], strides = [1, 1]} : vector<8x128xf32> to vector<8x32xf32>
    %93 = vector.extract_strided_slice %90 {offsets = [0, 32], sizes = [8, 32], strides = [1, 1]} : vector<8x128xf32> to vector<8x32xf32>
    %94 = vector.extract_strided_slice %91 {offsets = [0, 64], sizes = [8, 32], strides = [1, 1]} : vector<8x128xf32> to vector<8x32xf32>
    %95 = vector.extract_strided_slice %90 {offsets = [0, 96], sizes = [8, 32], strides = [1, 1]} : vector<8x128xf32> to vector<8x32xf32>
    %96 = arith.mulf %93, %53 : vector<8x32xf32>
    %97 = arith.mulf %92, %94 : vector<8x32xf32>
    %98 = arith.addf %96, %97 : vector<8x32xf32>
    %99 = math.tanh %98 : vector<8x32xf32>
    %100 = arith.mulf %95, %99 : vector<8x32xf32>
    %cst_34 = arith.constant 0.000000e+00 : f32
    %101 = vector.broadcast %cst_34 : f32 to vector<8x32xf32>
    %102 = arith.maximumf %100, %101 : vector<8x32xf32>
    %103 = vector.extract_strided_slice %4 {offsets = [32, 0], sizes = [32, 128], strides = [1, 1]} : vector<256x128xf32> to vector<32x128xf32>
    %cst_35 = arith.constant dense<0.000000e+00> : vector<8x128xf32>
    %104 = tpu.matmul %102, %103, %cst_35 {dimension_numbers = #tpu.dot_dimension_numbers<[1], [0], [0], [1], [0, 0, 1, 1], [], []>} : vector<8x32xf32>, vector<32x128xf32>, vector<8x128xf32> -> vector<8x128xf32>
    %105 = arith.addf %60, %104 : vector<8x128xf32>
    %106 = vector.extract_strided_slice %10 {offsets = [16, 0], sizes = [8, 128], strides = [1, 1]} : vector<64x128xf32> to vector<8x128xf32>
    %cst_36 = arith.constant dense<0.000000e+00> : vector<8x128xf32>
    %107 = tpu.matmul %78, %0, %cst_36 {dimension_numbers = #tpu.dot_dimension_numbers<[1], [0], [0], [1], [0, 0, 1, 1], [], []>} : vector<8x32xf32>, vector<32x128xf32>, vector<8x128xf32> -> vector<8x128xf32>
    %108 = arith.addf %106, %107 : vector<8x128xf32>
    %109 = arith.negf %108 : vector<8x128xf32>
    %110 = math.exp %109 : vector<8x128xf32>
    %cst_37 = arith.constant 1.000000e+00 : f32
    %111 = vector.broadcast %cst_37 : f32 to vector<8x128xf32>
    %112 = arith.addf %111, %110 : vector<8x128xf32>
    %113 = arith.divf %111, %112 : vector<8x128xf32>
    %114 = math.tanh %108 : vector<8x128xf32>
    %115 = vector.extract_strided_slice %113 {offsets = [0, 0], sizes = [8, 32], strides = [1, 1]} : vector<8x128xf32> to vector<8x32xf32>
    %116 = vector.extract_strided_slice %113 {offsets = [0, 32], sizes = [8, 32], strides = [1, 1]} : vector<8x128xf32> to vector<8x32xf32>
    %117 = vector.extract_strided_slice %114 {offsets = [0, 64], sizes = [8, 32], strides = [1, 1]} : vector<8x128xf32> to vector<8x32xf32>
    %118 = vector.extract_strided_slice %113 {offsets = [0, 96], sizes = [8, 32], strides = [1, 1]} : vector<8x128xf32> to vector<8x32xf32>
    %119 = arith.mulf %116, %76 : vector<8x32xf32>
    %120 = arith.mulf %115, %117 : vector<8x32xf32>
    %121 = arith.addf %119, %120 : vector<8x32xf32>
    %122 = math.tanh %121 : vector<8x32xf32>
    %123 = arith.mulf %118, %122 : vector<8x32xf32>
    %cst_38 = arith.constant 0.000000e+00 : f32
    %124 = vector.broadcast %cst_38 : f32 to vector<8x32xf32>
    %125 = arith.maximumf %123, %124 : vector<8x32xf32>
    %cst_39 = arith.constant dense<0.000000e+00> : vector<8x128xf32>
    %126 = tpu.matmul %125, %2, %cst_39 {dimension_numbers = #tpu.dot_dimension_numbers<[1], [0], [0], [1], [0, 0, 1, 1], [], []>} : vector<8x32xf32>, vector<32x128xf32>, vector<8x128xf32> -> vector<8x128xf32>
    %127 = vector.broadcast %3 : vector<1x128xf32> to vector<8x128xf32>
    %128 = arith.addf %126, %127 : vector<8x128xf32>
    %cst_40 = arith.constant dense<0.000000e+00> : vector<8x128xf32>
    %129 = tpu.matmul %100, %1, %cst_40 {dimension_numbers = #tpu.dot_dimension_numbers<[1], [0], [0], [1], [0, 0, 1, 1], [], []>} : vector<8x32xf32>, vector<32x128xf32>, vector<8x128xf32> -> vector<8x128xf32>
    %130 = arith.addf %128, %129 : vector<8x128xf32>
    %131 = arith.negf %130 : vector<8x128xf32>
    %132 = math.exp %131 : vector<8x128xf32>
    %cst_41 = arith.constant 1.000000e+00 : f32
    %133 = vector.broadcast %cst_41 : f32 to vector<8x128xf32>
    %134 = arith.addf %133, %132 : vector<8x128xf32>
    %135 = arith.divf %133, %134 : vector<8x128xf32>
    %136 = math.tanh %130 : vector<8x128xf32>
    %137 = vector.extract_strided_slice %135 {offsets = [0, 0], sizes = [8, 32], strides = [1, 1]} : vector<8x128xf32> to vector<8x32xf32>
    %138 = vector.extract_strided_slice %135 {offsets = [0, 32], sizes = [8, 32], strides = [1, 1]} : vector<8x128xf32> to vector<8x32xf32>
    %139 = vector.extract_strided_slice %136 {offsets = [0, 64], sizes = [8, 32], strides = [1, 1]} : vector<8x128xf32> to vector<8x32xf32>
    %140 = vector.extract_strided_slice %135 {offsets = [0, 96], sizes = [8, 32], strides = [1, 1]} : vector<8x128xf32> to vector<8x32xf32>
    %141 = arith.mulf %138, %98 : vector<8x32xf32>
    %142 = arith.mulf %137, %139 : vector<8x32xf32>
    %143 = arith.addf %141, %142 : vector<8x32xf32>
    %144 = math.tanh %143 : vector<8x32xf32>
    %145 = arith.mulf %140, %144 : vector<8x32xf32>
    %cst_42 = arith.constant 0.000000e+00 : f32
    %146 = vector.broadcast %cst_42 : f32 to vector<8x32xf32>
    %147 = arith.maximumf %145, %146 : vector<8x32xf32>
    %148 = vector.extract_strided_slice %4 {offsets = [64, 0], sizes = [32, 128], strides = [1, 1]} : vector<256x128xf32> to vector<32x128xf32>
    %cst_43 = arith.constant dense<0.000000e+00> : vector<8x128xf32>
    %149 = tpu.matmul %147, %148, %cst_43 {dimension_numbers = #tpu.dot_dimension_numbers<[1], [0], [0], [1], [0, 0, 1, 1], [], []>} : vector<8x32xf32>, vector<32x128xf32>, vector<8x128xf32> -> vector<8x128xf32>
    %150 = arith.addf %105, %149 : vector<8x128xf32>
    %151 = vector.extract_strided_slice %10 {offsets = [24, 0], sizes = [8, 128], strides = [1, 1]} : vector<64x128xf32> to vector<8x128xf32>
    %cst_44 = arith.constant dense<0.000000e+00> : vector<8x128xf32>
    %152 = tpu.matmul %123, %0, %cst_44 {dimension_numbers = #tpu.dot_dimension_numbers<[1], [0], [0], [1], [0, 0, 1, 1], [], []>} : vector<8x32xf32>, vector<32x128xf32>, vector<8x128xf32> -> vector<8x128xf32>
    %153 = arith.addf %151, %152 : vector<8x128xf32>
    %154 = arith.negf %153 : vector<8x128xf32>
    %155 = math.exp %154 : vector<8x128xf32>
    %cst_45 = arith.constant 1.000000e+00 : f32
    %156 = vector.broadcast %cst_45 : f32 to vector<8x128xf32>
    %157 = arith.addf %156, %155 : vector<8x128xf32>
    %158 = arith.divf %156, %157 : vector<8x128xf32>
    %159 = math.tanh %153 : vector<8x128xf32>
    %160 = vector.extract_strided_slice %158 {offsets = [0, 0], sizes = [8, 32], strides = [1, 1]} : vector<8x128xf32> to vector<8x32xf32>
    %161 = vector.extract_strided_slice %158 {offsets = [0, 32], sizes = [8, 32], strides = [1, 1]} : vector<8x128xf32> to vector<8x32xf32>
    %162 = vector.extract_strided_slice %159 {offsets = [0, 64], sizes = [8, 32], strides = [1, 1]} : vector<8x128xf32> to vector<8x32xf32>
    %163 = vector.extract_strided_slice %158 {offsets = [0, 96], sizes = [8, 32], strides = [1, 1]} : vector<8x128xf32> to vector<8x32xf32>
    %164 = arith.mulf %161, %121 : vector<8x32xf32>
    %165 = arith.mulf %160, %162 : vector<8x32xf32>
    %166 = arith.addf %164, %165 : vector<8x32xf32>
    %167 = math.tanh %166 : vector<8x32xf32>
    %168 = arith.mulf %163, %167 : vector<8x32xf32>
    %cst_46 = arith.constant 0.000000e+00 : f32
    %169 = vector.broadcast %cst_46 : f32 to vector<8x32xf32>
    %170 = arith.maximumf %168, %169 : vector<8x32xf32>
    %cst_47 = arith.constant dense<0.000000e+00> : vector<8x128xf32>
    %171 = tpu.matmul %170, %2, %cst_47 {dimension_numbers = #tpu.dot_dimension_numbers<[1], [0], [0], [1], [0, 0, 1, 1], [], []>} : vector<8x32xf32>, vector<32x128xf32>, vector<8x128xf32> -> vector<8x128xf32>
    %172 = vector.broadcast %3 : vector<1x128xf32> to vector<8x128xf32>
    %173 = arith.addf %171, %172 : vector<8x128xf32>
    %cst_48 = arith.constant dense<0.000000e+00> : vector<8x128xf32>
    %174 = tpu.matmul %145, %1, %cst_48 {dimension_numbers = #tpu.dot_dimension_numbers<[1], [0], [0], [1], [0, 0, 1, 1], [], []>} : vector<8x32xf32>, vector<32x128xf32>, vector<8x128xf32> -> vector<8x128xf32>
    %175 = arith.addf %173, %174 : vector<8x128xf32>
    %176 = arith.negf %175 : vector<8x128xf32>
    %177 = math.exp %176 : vector<8x128xf32>
    %cst_49 = arith.constant 1.000000e+00 : f32
    %178 = vector.broadcast %cst_49 : f32 to vector<8x128xf32>
    %179 = arith.addf %178, %177 : vector<8x128xf32>
    %180 = arith.divf %178, %179 : vector<8x128xf32>
    %181 = math.tanh %175 : vector<8x128xf32>
    %182 = vector.extract_strided_slice %180 {offsets = [0, 0], sizes = [8, 32], strides = [1, 1]} : vector<8x128xf32> to vector<8x32xf32>
    %183 = vector.extract_strided_slice %180 {offsets = [0, 32], sizes = [8, 32], strides = [1, 1]} : vector<8x128xf32> to vector<8x32xf32>
    %184 = vector.extract_strided_slice %181 {offsets = [0, 64], sizes = [8, 32], strides = [1, 1]} : vector<8x128xf32> to vector<8x32xf32>
    %185 = vector.extract_strided_slice %180 {offsets = [0, 96], sizes = [8, 32], strides = [1, 1]} : vector<8x128xf32> to vector<8x32xf32>
    %186 = arith.mulf %183, %143 : vector<8x32xf32>
    %187 = arith.mulf %182, %184 : vector<8x32xf32>
    %188 = arith.addf %186, %187 : vector<8x32xf32>
    %189 = math.tanh %188 : vector<8x32xf32>
    %190 = arith.mulf %185, %189 : vector<8x32xf32>
    %cst_50 = arith.constant 0.000000e+00 : f32
    %191 = vector.broadcast %cst_50 : f32 to vector<8x32xf32>
    %192 = arith.maximumf %190, %191 : vector<8x32xf32>
    %193 = vector.extract_strided_slice %4 {offsets = [96, 0], sizes = [32, 128], strides = [1, 1]} : vector<256x128xf32> to vector<32x128xf32>
    %cst_51 = arith.constant dense<0.000000e+00> : vector<8x128xf32>
    %194 = tpu.matmul %192, %193, %cst_51 {dimension_numbers = #tpu.dot_dimension_numbers<[1], [0], [0], [1], [0, 0, 1, 1], [], []>} : vector<8x32xf32>, vector<32x128xf32>, vector<8x128xf32> -> vector<8x128xf32>
    %195 = arith.addf %150, %194 : vector<8x128xf32>
    %196 = vector.extract_strided_slice %10 {offsets = [32, 0], sizes = [8, 128], strides = [1, 1]} : vector<64x128xf32> to vector<8x128xf32>
    %cst_52 = arith.constant dense<0.000000e+00> : vector<8x128xf32>
    %197 = tpu.matmul %168, %0, %cst_52 {dimension_numbers = #tpu.dot_dimension_numbers<[1], [0], [0], [1], [0, 0, 1, 1], [], []>} : vector<8x32xf32>, vector<32x128xf32>, vector<8x128xf32> -> vector<8x128xf32>
    %198 = arith.addf %196, %197 : vector<8x128xf32>
    %199 = arith.negf %198 : vector<8x128xf32>
    %200 = math.exp %199 : vector<8x128xf32>
    %cst_53 = arith.constant 1.000000e+00 : f32
    %201 = vector.broadcast %cst_53 : f32 to vector<8x128xf32>
    %202 = arith.addf %201, %200 : vector<8x128xf32>
    %203 = arith.divf %201, %202 : vector<8x128xf32>
    %204 = math.tanh %198 : vector<8x128xf32>
    %205 = vector.extract_strided_slice %203 {offsets = [0, 0], sizes = [8, 32], strides = [1, 1]} : vector<8x128xf32> to vector<8x32xf32>
    %206 = vector.extract_strided_slice %203 {offsets = [0, 32], sizes = [8, 32], strides = [1, 1]} : vector<8x128xf32> to vector<8x32xf32>
    %207 = vector.extract_strided_slice %204 {offsets = [0, 64], sizes = [8, 32], strides = [1, 1]} : vector<8x128xf32> to vector<8x32xf32>
    %208 = vector.extract_strided_slice %203 {offsets = [0, 96], sizes = [8, 32], strides = [1, 1]} : vector<8x128xf32> to vector<8x32xf32>
    %209 = arith.mulf %206, %166 : vector<8x32xf32>
    %210 = arith.mulf %205, %207 : vector<8x32xf32>
    %211 = arith.addf %209, %210 : vector<8x32xf32>
    %212 = math.tanh %211 : vector<8x32xf32>
    %213 = arith.mulf %208, %212 : vector<8x32xf32>
    %cst_54 = arith.constant 0.000000e+00 : f32
    %214 = vector.broadcast %cst_54 : f32 to vector<8x32xf32>
    %215 = arith.maximumf %213, %214 : vector<8x32xf32>
    %cst_55 = arith.constant dense<0.000000e+00> : vector<8x128xf32>
    %216 = tpu.matmul %215, %2, %cst_55 {dimension_numbers = #tpu.dot_dimension_numbers<[1], [0], [0], [1], [0, 0, 1, 1], [], []>} : vector<8x32xf32>, vector<32x128xf32>, vector<8x128xf32> -> vector<8x128xf32>
    %217 = vector.broadcast %3 : vector<1x128xf32> to vector<8x128xf32>
    %218 = arith.addf %216, %217 : vector<8x128xf32>
    %cst_56 = arith.constant dense<0.000000e+00> : vector<8x128xf32>
    %219 = tpu.matmul %190, %1, %cst_56 {dimension_numbers = #tpu.dot_dimension_numbers<[1], [0], [0], [1], [0, 0, 1, 1], [], []>} : vector<8x32xf32>, vector<32x128xf32>, vector<8x128xf32> -> vector<8x128xf32>
    %220 = arith.addf %218, %219 : vector<8x128xf32>
    %221 = arith.negf %220 : vector<8x128xf32>
    %222 = math.exp %221 : vector<8x128xf32>
    %cst_57 = arith.constant 1.000000e+00 : f32
    %223 = vector.broadcast %cst_57 : f32 to vector<8x128xf32>
    %224 = arith.addf %223, %222 : vector<8x128xf32>
    %225 = arith.divf %223, %224 : vector<8x128xf32>
    %226 = math.tanh %220 : vector<8x128xf32>
    %227 = vector.extract_strided_slice %225 {offsets = [0, 0], sizes = [8, 32], strides = [1, 1]} : vector<8x128xf32> to vector<8x32xf32>
    %228 = vector.extract_strided_slice %225 {offsets = [0, 32], sizes = [8, 32], strides = [1, 1]} : vector<8x128xf32> to vector<8x32xf32>
    %229 = vector.extract_strided_slice %226 {offsets = [0, 64], sizes = [8, 32], strides = [1, 1]} : vector<8x128xf32> to vector<8x32xf32>
    %230 = vector.extract_strided_slice %225 {offsets = [0, 96], sizes = [8, 32], strides = [1, 1]} : vector<8x128xf32> to vector<8x32xf32>
    %231 = arith.mulf %228, %188 : vector<8x32xf32>
    %232 = arith.mulf %227, %229 : vector<8x32xf32>
    %233 = arith.addf %231, %232 : vector<8x32xf32>
    %234 = math.tanh %233 : vector<8x32xf32>
    %235 = arith.mulf %230, %234 : vector<8x32xf32>
    %cst_58 = arith.constant 0.000000e+00 : f32
    %236 = vector.broadcast %cst_58 : f32 to vector<8x32xf32>
    %237 = arith.maximumf %235, %236 : vector<8x32xf32>
    %238 = vector.extract_strided_slice %4 {offsets = [128, 0], sizes = [32, 128], strides = [1, 1]} : vector<256x128xf32> to vector<32x128xf32>
    %cst_59 = arith.constant dense<0.000000e+00> : vector<8x128xf32>
    %239 = tpu.matmul %237, %238, %cst_59 {dimension_numbers = #tpu.dot_dimension_numbers<[1], [0], [0], [1], [0, 0, 1, 1], [], []>} : vector<8x32xf32>, vector<32x128xf32>, vector<8x128xf32> -> vector<8x128xf32>
    %240 = arith.addf %195, %239 : vector<8x128xf32>
    %241 = vector.extract_strided_slice %10 {offsets = [40, 0], sizes = [8, 128], strides = [1, 1]} : vector<64x128xf32> to vector<8x128xf32>
    %cst_60 = arith.constant dense<0.000000e+00> : vector<8x128xf32>
    %242 = tpu.matmul %213, %0, %cst_60 {dimension_numbers = #tpu.dot_dimension_numbers<[1], [0], [0], [1], [0, 0, 1, 1], [], []>} : vector<8x32xf32>, vector<32x128xf32>, vector<8x128xf32> -> vector<8x128xf32>
    %243 = arith.addf %241, %242 : vector<8x128xf32>
    %244 = arith.negf %243 : vector<8x128xf32>
    %245 = math.exp %244 : vector<8x128xf32>
    %cst_61 = arith.constant 1.000000e+00 : f32
    %246 = vector.broadcast %cst_61 : f32 to vector<8x128xf32>
    %247 = arith.addf %246, %245 : vector<8x128xf32>
    %248 = arith.divf %246, %247 : vector<8x128xf32>
    %249 = math.tanh %243 : vector<8x128xf32>
    %250 = vector.extract_strided_slice %248 {offsets = [0, 0], sizes = [8, 32], strides = [1, 1]} : vector<8x128xf32> to vector<8x32xf32>
    %251 = vector.extract_strided_slice %248 {offsets = [0, 32], sizes = [8, 32], strides = [1, 1]} : vector<8x128xf32> to vector<8x32xf32>
    %252 = vector.extract_strided_slice %249 {offsets = [0, 64], sizes = [8, 32], strides = [1, 1]} : vector<8x128xf32> to vector<8x32xf32>
    %253 = vector.extract_strided_slice %248 {offsets = [0, 96], sizes = [8, 32], strides = [1, 1]} : vector<8x128xf32> to vector<8x32xf32>
    %254 = arith.mulf %251, %211 : vector<8x32xf32>
    %255 = arith.mulf %250, %252 : vector<8x32xf32>
    %256 = arith.addf %254, %255 : vector<8x32xf32>
    %257 = math.tanh %256 : vector<8x32xf32>
    %258 = arith.mulf %253, %257 : vector<8x32xf32>
    %cst_62 = arith.constant 0.000000e+00 : f32
    %259 = vector.broadcast %cst_62 : f32 to vector<8x32xf32>
    %260 = arith.maximumf %258, %259 : vector<8x32xf32>
    %cst_63 = arith.constant dense<0.000000e+00> : vector<8x128xf32>
    %261 = tpu.matmul %260, %2, %cst_63 {dimension_numbers = #tpu.dot_dimension_numbers<[1], [0], [0], [1], [0, 0, 1, 1], [], []>} : vector<8x32xf32>, vector<32x128xf32>, vector<8x128xf32> -> vector<8x128xf32>
    %262 = vector.broadcast %3 : vector<1x128xf32> to vector<8x128xf32>
    %263 = arith.addf %261, %262 : vector<8x128xf32>
    %cst_64 = arith.constant dense<0.000000e+00> : vector<8x128xf32>
    %264 = tpu.matmul %235, %1, %cst_64 {dimension_numbers = #tpu.dot_dimension_numbers<[1], [0], [0], [1], [0, 0, 1, 1], [], []>} : vector<8x32xf32>, vector<32x128xf32>, vector<8x128xf32> -> vector<8x128xf32>
    %265 = arith.addf %263, %264 : vector<8x128xf32>
    %266 = arith.negf %265 : vector<8x128xf32>
    %267 = math.exp %266 : vector<8x128xf32>
    %cst_65 = arith.constant 1.000000e+00 : f32
    %268 = vector.broadcast %cst_65 : f32 to vector<8x128xf32>
    %269 = arith.addf %268, %267 : vector<8x128xf32>
    %270 = arith.divf %268, %269 : vector<8x128xf32>
    %271 = math.tanh %265 : vector<8x128xf32>
    %272 = vector.extract_strided_slice %270 {offsets = [0, 0], sizes = [8, 32], strides = [1, 1]} : vector<8x128xf32> to vector<8x32xf32>
    %273 = vector.extract_strided_slice %270 {offsets = [0, 32], sizes = [8, 32], strides = [1, 1]} : vector<8x128xf32> to vector<8x32xf32>
    %274 = vector.extract_strided_slice %271 {offsets = [0, 64], sizes = [8, 32], strides = [1, 1]} : vector<8x128xf32> to vector<8x32xf32>
    %275 = vector.extract_strided_slice %270 {offsets = [0, 96], sizes = [8, 32], strides = [1, 1]} : vector<8x128xf32> to vector<8x32xf32>
    %276 = arith.mulf %273, %233 : vector<8x32xf32>
    %277 = arith.mulf %272, %274 : vector<8x32xf32>
    %278 = arith.addf %276, %277 : vector<8x32xf32>
    %279 = math.tanh %278 : vector<8x32xf32>
    %280 = arith.mulf %275, %279 : vector<8x32xf32>
    %cst_66 = arith.constant 0.000000e+00 : f32
    %281 = vector.broadcast %cst_66 : f32 to vector<8x32xf32>
    %282 = arith.maximumf %280, %281 : vector<8x32xf32>
    %283 = vector.extract_strided_slice %4 {offsets = [160, 0], sizes = [32, 128], strides = [1, 1]} : vector<256x128xf32> to vector<32x128xf32>
    %cst_67 = arith.constant dense<0.000000e+00> : vector<8x128xf32>
    %284 = tpu.matmul %282, %283, %cst_67 {dimension_numbers = #tpu.dot_dimension_numbers<[1], [0], [0], [1], [0, 0, 1, 1], [], []>} : vector<8x32xf32>, vector<32x128xf32>, vector<8x128xf32> -> vector<8x128xf32>
    %285 = arith.addf %240, %284 : vector<8x128xf32>
    %286 = vector.extract_strided_slice %10 {offsets = [48, 0], sizes = [8, 128], strides = [1, 1]} : vector<64x128xf32> to vector<8x128xf32>
    %cst_68 = arith.constant dense<0.000000e+00> : vector<8x128xf32>
    %287 = tpu.matmul %258, %0, %cst_68 {dimension_numbers = #tpu.dot_dimension_numbers<[1], [0], [0], [1], [0, 0, 1, 1], [], []>} : vector<8x32xf32>, vector<32x128xf32>, vector<8x128xf32> -> vector<8x128xf32>
    %288 = arith.addf %286, %287 : vector<8x128xf32>
    %289 = arith.negf %288 : vector<8x128xf32>
    %290 = math.exp %289 : vector<8x128xf32>
    %cst_69 = arith.constant 1.000000e+00 : f32
    %291 = vector.broadcast %cst_69 : f32 to vector<8x128xf32>
    %292 = arith.addf %291, %290 : vector<8x128xf32>
    %293 = arith.divf %291, %292 : vector<8x128xf32>
    %294 = math.tanh %288 : vector<8x128xf32>
    %295 = vector.extract_strided_slice %293 {offsets = [0, 0], sizes = [8, 32], strides = [1, 1]} : vector<8x128xf32> to vector<8x32xf32>
    %296 = vector.extract_strided_slice %293 {offsets = [0, 32], sizes = [8, 32], strides = [1, 1]} : vector<8x128xf32> to vector<8x32xf32>
    %297 = vector.extract_strided_slice %294 {offsets = [0, 64], sizes = [8, 32], strides = [1, 1]} : vector<8x128xf32> to vector<8x32xf32>
    %298 = vector.extract_strided_slice %293 {offsets = [0, 96], sizes = [8, 32], strides = [1, 1]} : vector<8x128xf32> to vector<8x32xf32>
    %299 = arith.mulf %296, %256 : vector<8x32xf32>
    %300 = arith.mulf %295, %297 : vector<8x32xf32>
    %301 = arith.addf %299, %300 : vector<8x32xf32>
    %302 = math.tanh %301 : vector<8x32xf32>
    %303 = arith.mulf %298, %302 : vector<8x32xf32>
    %cst_70 = arith.constant 0.000000e+00 : f32
    %304 = vector.broadcast %cst_70 : f32 to vector<8x32xf32>
    %305 = arith.maximumf %303, %304 : vector<8x32xf32>
    %cst_71 = arith.constant dense<0.000000e+00> : vector<8x128xf32>
    %306 = tpu.matmul %305, %2, %cst_71 {dimension_numbers = #tpu.dot_dimension_numbers<[1], [0], [0], [1], [0, 0, 1, 1], [], []>} : vector<8x32xf32>, vector<32x128xf32>, vector<8x128xf32> -> vector<8x128xf32>
    %307 = vector.broadcast %3 : vector<1x128xf32> to vector<8x128xf32>
    %308 = arith.addf %306, %307 : vector<8x128xf32>
    %cst_72 = arith.constant dense<0.000000e+00> : vector<8x128xf32>
    %309 = tpu.matmul %280, %1, %cst_72 {dimension_numbers = #tpu.dot_dimension_numbers<[1], [0], [0], [1], [0, 0, 1, 1], [], []>} : vector<8x32xf32>, vector<32x128xf32>, vector<8x128xf32> -> vector<8x128xf32>
    %310 = arith.addf %308, %309 : vector<8x128xf32>
    %311 = arith.negf %310 : vector<8x128xf32>
    %312 = math.exp %311 : vector<8x128xf32>
    %cst_73 = arith.constant 1.000000e+00 : f32
    %313 = vector.broadcast %cst_73 : f32 to vector<8x128xf32>
    %314 = arith.addf %313, %312 : vector<8x128xf32>
    %315 = arith.divf %313, %314 : vector<8x128xf32>
    %316 = math.tanh %310 : vector<8x128xf32>
    %317 = vector.extract_strided_slice %315 {offsets = [0, 0], sizes = [8, 32], strides = [1, 1]} : vector<8x128xf32> to vector<8x32xf32>
    %318 = vector.extract_strided_slice %315 {offsets = [0, 32], sizes = [8, 32], strides = [1, 1]} : vector<8x128xf32> to vector<8x32xf32>
    %319 = vector.extract_strided_slice %316 {offsets = [0, 64], sizes = [8, 32], strides = [1, 1]} : vector<8x128xf32> to vector<8x32xf32>
    %320 = vector.extract_strided_slice %315 {offsets = [0, 96], sizes = [8, 32], strides = [1, 1]} : vector<8x128xf32> to vector<8x32xf32>
    %321 = arith.mulf %318, %278 : vector<8x32xf32>
    %322 = arith.mulf %317, %319 : vector<8x32xf32>
    %323 = arith.addf %321, %322 : vector<8x32xf32>
    %324 = math.tanh %323 : vector<8x32xf32>
    %325 = arith.mulf %320, %324 : vector<8x32xf32>
    %cst_74 = arith.constant 0.000000e+00 : f32
    %326 = vector.broadcast %cst_74 : f32 to vector<8x32xf32>
    %327 = arith.maximumf %325, %326 : vector<8x32xf32>
    %328 = vector.extract_strided_slice %4 {offsets = [192, 0], sizes = [32, 128], strides = [1, 1]} : vector<256x128xf32> to vector<32x128xf32>
    %cst_75 = arith.constant dense<0.000000e+00> : vector<8x128xf32>
    %329 = tpu.matmul %327, %328, %cst_75 {dimension_numbers = #tpu.dot_dimension_numbers<[1], [0], [0], [1], [0, 0, 1, 1], [], []>} : vector<8x32xf32>, vector<32x128xf32>, vector<8x128xf32> -> vector<8x128xf32>
    %330 = arith.addf %285, %329 : vector<8x128xf32>
    %331 = vector.extract_strided_slice %10 {offsets = [56, 0], sizes = [8, 128], strides = [1, 1]} : vector<64x128xf32> to vector<8x128xf32>
    %cst_76 = arith.constant dense<0.000000e+00> : vector<8x128xf32>
    %332 = tpu.matmul %303, %0, %cst_76 {dimension_numbers = #tpu.dot_dimension_numbers<[1], [0], [0], [1], [0, 0, 1, 1], [], []>} : vector<8x32xf32>, vector<32x128xf32>, vector<8x128xf32> -> vector<8x128xf32>
    %333 = arith.addf %331, %332 : vector<8x128xf32>
    %334 = arith.negf %333 : vector<8x128xf32>
    %335 = math.exp %334 : vector<8x128xf32>
    %cst_77 = arith.constant 1.000000e+00 : f32
    %336 = vector.broadcast %cst_77 : f32 to vector<8x128xf32>
    %337 = arith.addf %336, %335 : vector<8x128xf32>
    %338 = arith.divf %336, %337 : vector<8x128xf32>
    %339 = math.tanh %333 : vector<8x128xf32>
    %340 = vector.extract_strided_slice %338 {offsets = [0, 0], sizes = [8, 32], strides = [1, 1]} : vector<8x128xf32> to vector<8x32xf32>
    %341 = vector.extract_strided_slice %338 {offsets = [0, 32], sizes = [8, 32], strides = [1, 1]} : vector<8x128xf32> to vector<8x32xf32>
    %342 = vector.extract_strided_slice %339 {offsets = [0, 64], sizes = [8, 32], strides = [1, 1]} : vector<8x128xf32> to vector<8x32xf32>
    %343 = vector.extract_strided_slice %338 {offsets = [0, 96], sizes = [8, 32], strides = [1, 1]} : vector<8x128xf32> to vector<8x32xf32>
    %344 = arith.mulf %341, %301 : vector<8x32xf32>
    %345 = arith.mulf %340, %342 : vector<8x32xf32>
    %346 = arith.addf %344, %345 : vector<8x32xf32>
    %347 = math.tanh %346 : vector<8x32xf32>
    %348 = arith.mulf %343, %347 : vector<8x32xf32>
    %cst_78 = arith.constant 0.000000e+00 : f32
    %349 = vector.broadcast %cst_78 : f32 to vector<8x32xf32>
    %350 = arith.maximumf %348, %349 : vector<8x32xf32>
    %cst_79 = arith.constant dense<0.000000e+00> : vector<8x128xf32>
    %351 = tpu.matmul %350, %2, %cst_79 {dimension_numbers = #tpu.dot_dimension_numbers<[1], [0], [0], [1], [0, 0, 1, 1], [], []>} : vector<8x32xf32>, vector<32x128xf32>, vector<8x128xf32> -> vector<8x128xf32>
    %352 = vector.broadcast %3 : vector<1x128xf32> to vector<8x128xf32>
    %353 = arith.addf %351, %352 : vector<8x128xf32>
    %cst_80 = arith.constant dense<0.000000e+00> : vector<8x128xf32>
    %354 = tpu.matmul %325, %1, %cst_80 {dimension_numbers = #tpu.dot_dimension_numbers<[1], [0], [0], [1], [0, 0, 1, 1], [], []>} : vector<8x32xf32>, vector<32x128xf32>, vector<8x128xf32> -> vector<8x128xf32>
    %355 = arith.addf %353, %354 : vector<8x128xf32>
    %356 = arith.negf %355 : vector<8x128xf32>
    %357 = math.exp %356 : vector<8x128xf32>
    %cst_81 = arith.constant 1.000000e+00 : f32
    %358 = vector.broadcast %cst_81 : f32 to vector<8x128xf32>
    %359 = arith.addf %358, %357 : vector<8x128xf32>
    %360 = arith.divf %358, %359 : vector<8x128xf32>
    %361 = math.tanh %355 : vector<8x128xf32>
    %362 = vector.extract_strided_slice %360 {offsets = [0, 0], sizes = [8, 32], strides = [1, 1]} : vector<8x128xf32> to vector<8x32xf32>
    %363 = vector.extract_strided_slice %360 {offsets = [0, 32], sizes = [8, 32], strides = [1, 1]} : vector<8x128xf32> to vector<8x32xf32>
    %364 = vector.extract_strided_slice %361 {offsets = [0, 64], sizes = [8, 32], strides = [1, 1]} : vector<8x128xf32> to vector<8x32xf32>
    %365 = vector.extract_strided_slice %360 {offsets = [0, 96], sizes = [8, 32], strides = [1, 1]} : vector<8x128xf32> to vector<8x32xf32>
    %366 = arith.mulf %363, %323 : vector<8x32xf32>
    %367 = arith.mulf %362, %364 : vector<8x32xf32>
    %368 = arith.addf %366, %367 : vector<8x32xf32>
    %369 = math.tanh %368 : vector<8x32xf32>
    %370 = arith.mulf %365, %369 : vector<8x32xf32>
    %cst_82 = arith.constant 0.000000e+00 : f32
    %371 = vector.broadcast %cst_82 : f32 to vector<8x32xf32>
    %372 = arith.maximumf %370, %371 : vector<8x32xf32>
    %373 = vector.extract_strided_slice %4 {offsets = [224, 0], sizes = [32, 128], strides = [1, 1]} : vector<256x128xf32> to vector<32x128xf32>
    %cst_83 = arith.constant dense<0.000000e+00> : vector<8x128xf32>
    %374 = tpu.matmul %372, %373, %cst_83 {dimension_numbers = #tpu.dot_dimension_numbers<[1], [0], [0], [1], [0, 0, 1, 1], [], []>} : vector<8x32xf32>, vector<32x128xf32>, vector<8x128xf32> -> vector<8x128xf32>
    %375 = arith.addf %330, %374 : vector<8x128xf32>
    %c0_84 = arith.constant 0 : index
    %c0_85 = arith.constant 0 : index
    %376 = vector.load %arg9[%c0_84, %c0_85] : memref<1x128xf32, #tpu.memory_space<vmem>>, vector<1x128xf32>
    %377 = vector.broadcast %376 : vector<1x128xf32> to vector<8x128xf32>
    %378 = arith.addf %375, %377 : vector<8x128xf32>
    %cst_86 = arith.constant 0.000000e+00 : f32
    %379 = vector.broadcast %cst_86 : f32 to vector<8x128xf32>
    %380 = arith.maximumf %378, %379 : vector<8x128xf32>
    %c0_87 = arith.constant 0 : index
    %c0_88 = arith.constant 0 : index
    %381 = vector.load %arg10[%c0_87, %c0_88] : memref<128x128xf32, #tpu.memory_space<vmem>>, vector<128x128xf32>
    %cst_89 = arith.constant dense<0.000000e+00> : vector<8x128xf32>
    %382 = tpu.matmul %380, %381, %cst_89 {dimension_numbers = #tpu.dot_dimension_numbers<[1], [0], [0], [1], [0, 0, 1, 1], [], []>} : vector<8x128xf32>, vector<128x128xf32>, vector<8x128xf32> -> vector<8x128xf32>
    %c0_90 = arith.constant 0 : index
    %c0_91 = arith.constant 0 : index
    %383 = vector.load %arg11[%c0_90, %c0_91] : memref<1x128xf32, #tpu.memory_space<vmem>>, vector<1x128xf32>
    %384 = vector.broadcast %383 : vector<1x128xf32> to vector<8x128xf32>
    %385 = arith.addf %382, %384 : vector<8x128xf32>
    %386 = math.tanh %385 : vector<8x128xf32>
    %c0_92 = arith.constant 0 : index
    %c0_93 = arith.constant 0 : index
    %387 = vector.load %arg12[%c0_92, %c0_93] : memref<8x128xf32, #tpu.memory_space<vmem>>, vector<8x128xf32>
    tpu.vector_store %arg12[%c0_92, %c0_93], %386 {strides = array<i32>} : memref<8x128xf32, #tpu.memory_space<vmem>>, vector<8x128xf32>,
    return
  }
  func.func @transform_0(%arg0: i32) -> (i32, i32) {
    %c0_i32 = arith.constant 0 : i32
    %c0_i32_0 = arith.constant 0 : i32
    %c0_i32_1 = arith.constant 0 : i32
    return %c0_i32, %c0_i32_0 : i32, i32
  }
  func.func @transform_1(%arg0: i32) -> (i32, i32) {
    %c0_i32 = arith.constant 0 : i32
    %c0_i32_0 = arith.constant 0 : i32
    %c0_i32_1 = arith.constant 0 : i32
    return %c0_i32, %c0_i32_0 : i32, i32
  }
  func.func @transform_2(%arg0: i32) -> (i32, i32) {
    %c0_i32 = arith.constant 0 : i32
    %c0_i32_0 = arith.constant 0 : i32
    %c0_i32_1 = arith.constant 0 : i32
    return %c0_i32, %c0_i32_0 : i32, i32
  }
  func.func @transform_3(%arg0: i32) -> (i32, i32) {
    %c0_i32 = arith.constant 0 : i32
    %c0_i32_0 = arith.constant 0 : i32
    %c0_i32_1 = arith.constant 0 : i32
    return %c0_i32, %c0_i32_0 : i32, i32
  }
  func.func @transform_4(%arg0: i32) -> (i32, i32) {
    %c0_i32 = arith.constant 0 : i32
    %c0_i32_0 = arith.constant 0 : i32
    %c0_i32_1 = arith.constant 0 : i32
    return %c0_i32, %c0_i32_0 : i32, i32
  }
  func.func @transform_5(%arg0: i32) -> (i32, i32) {
    %c0_i32 = arith.constant 0 : i32
    %c0_i32_0 = arith.constant 0 : i32
    %c0_i32_1 = arith.constant 0 : i32
    return %c0_i32, %c0_i32_0 : i32, i32
  }
  func.func @transform_6(%arg0: i32) -> (i32, i32) {
    %c0_i32 = arith.constant 0 : i32
    %c0_i32_0 = arith.constant 0 : i32
    %c0_i32_1 = arith.constant 0 : i32
    return %c0_i32, %c0_i32_0 : i32, i32
  }
  func.func @transform_7(%arg0: i32) -> (i32, i32) {
    %c0_i32 = arith.constant 0 : i32
    %c0_i32_0 = arith.constant 0 : i32
    %c0_i32_1 = arith.constant 0 : i32
    return %c0_i32, %c0_i32_0 : i32, i32
  }
  func.func @transform_8(%arg0: i32) -> (i32, i32) {
    %c0_i32 = arith.constant 0 : i32
    %c0_i32_0 = arith.constant 0 : i32
    %c0_i32_1 = arith.constant 0 : i32
    return %c0_i32, %c0_i32_0 : i32, i32
  }
  func.func @transform_9(%arg0: i32) -> (i32, i32) {
    %c0_i32 = arith.constant 0 : i32
    %c0_i32_0 = arith.constant 0 : i32
    %c0_i32_1 = arith.constant 0 : i32
    return %c0_i32, %c0_i32_0 : i32, i32
  }
  func.func @transform_10(%arg0: i32) -> (i32, i32) {
    %c0_i32 = arith.constant 0 : i32
    %c0_i32_0 = arith.constant 0 : i32
    %c0_i32_1 = arith.constant 0 : i32
    return %c0_i32, %c0_i32_0 : i32, i32
  }
  func.func @transform_11(%arg0: i32) -> (i32, i32) {
    %c0_i32 = arith.constant 0 : i32
    %c0_i32_0 = arith.constant 0 : i32
    %c0_i32_1 = arith.constant 0 : i32
    return %c0_i32, %c0_i32_0 : i32, i32
  }
}

</mosaic_0001>

<llo_original>
// kernel: lstm_model_forward.1
$region0: #{lstm_model_forward.1}
  #allocation0 [shape = 'u32[]', space=smem, size = 0x4, offset = 0x4, fixed_abs, tag = 'smem constant byte address 0x4 - core index']
  #allocation1 [shape = 'u32[144,128]{1,0:T(1,128)}', space=vmem, size = 0x12000, scoped, tag = 'internal scratch']
  %s0 = inlined_call_operand.vmem [shape: f32[64,4], index: 0, kind: input, shape index: {}]
  %s1 = inlined_call_operand.vmem [shape: f32[4,128], index: 1, kind: input, shape index: {}]
  %s2 = inlined_call_operand.vmem [shape: f32[32,128], index: 2, kind: input, shape index: {}]
  %s3 = inlined_call_operand.vmem [shape: f32[1,128], index: 3, kind: input, shape index: {}]
  %s4 = inlined_call_operand.vmem [shape: f32[32,128], index: 4, kind: input, shape index: {}]
  %s5 = inlined_call_operand.vmem [shape: f32[32,128], index: 5, kind: input, shape index: {}]
  %s6 = inlined_call_operand.vmem [shape: f32[1,128], index: 6, kind: input, shape index: {}]
  %s7 = inlined_call_operand.vmem [shape: f32[256,128], index: 7, kind: input, shape index: {}]
  %s8 = inlined_call_operand.vmem [shape: f32[1,128], index: 8, kind: input, shape index: {}]
  %s9 = inlined_call_operand.vmem [shape: f32[128,128], index: 9, kind: input, shape index: {}]
  %s10 = inlined_call_operand.vmem [shape: f32[1,128], index: 10, kind: input, shape index: {}]
  %s11 = inlined_call_operand.vmem [shape: f32[8,128], index: 11, kind: output, shape index: {}]
  %s12 = sld [smem:[#allocation0]]
  $region54: #{lstm_model_forward.1} parent=0
    _
  %s14 = ssub.s32 1, %s12
  %s15 = scalar_select 0, %s14, %s12
  // Predicated region
  $region2: #{lstm_model_forward.1} parent=0 // pred_check
    _
  $region3: #{lstm_model_forward.1} parent=0 // pred_check_branch
    %17 = sbr.rel (0) target = $region5
  $region4: #{lstm_model_forward.1} parent=0 // pred_region
    _
  $region5: #{lstm_model_forward.1} parent=0 // pred_fallthru
    _
  // Predicated region
  $region6: #{lstm_model_forward.1} parent=0 // pred_check
    _
  $region7: #{lstm_model_forward.1} parent=0 // pred_check_branch
    %19 = sbr.rel (0) target = $region9
  $region8: #{lstm_model_forward.1} parent=0 // pred_region
    _
  $region9: #{lstm_model_forward.1} parent=0 // pred_fallthru
    _
  // Predicated region
  $region10: #{lstm_model_forward.1} parent=0 // pred_check
    _
  $region11: #{lstm_model_forward.1} parent=0 // pred_check_branch
    %21 = sbr.rel (0) target = $region13
  $region12: #{lstm_model_forward.1} parent=0 // pred_region
    _
  $region13: #{lstm_model_forward.1} parent=0 // pred_fallthru
    _
  // Predicated region
  $region14: #{lstm_model_forward.1} parent=0 // pred_check
    _
  $region15: #{lstm_model_forward.1} parent=0 // pred_check_branch
    %23 = sbr.rel (0) target = $region17
  $region16: #{lstm_model_forward.1} parent=0 // pred_region
    _
  $region17: #{lstm_model_forward.1} parent=0 // pred_fallthru
    _
  // Predicated region
  $region18: #{lstm_model_forward.1} parent=0 // pred_check
    _
  $region19: #{lstm_model_forward.1} parent=0 // pred_check_branch
    %25 = sbr.rel (0) target = $region21
  $region20: #{lstm_model_forward.1} parent=0 // pred_region
    _
  $region21: #{lstm_model_forward.1} parent=0 // pred_fallthru
    _
  // Predicated region
  $region22: #{lstm_model_forward.1} parent=0 // pred_check
    _
  $region23: #{lstm_model_forward.1} parent=0 // pred_check_branch
    %27 = sbr.rel (0) target = $region25
  $region24: #{lstm_model_forward.1} parent=0 // pred_region
    _
  $region25: #{lstm_model_forward.1} parent=0 // pred_fallthru
    _
  // Predicated region
  $region26: #{lstm_model_forward.1} parent=0 // pred_check
    _
  $region27: #{lstm_model_forward.1} parent=0 // pred_check_branch
    %29 = sbr.rel (0) target = $region29
  $region28: #{lstm_model_forward.1} parent=0 // pred_region
    _
  $region29: #{lstm_model_forward.1} parent=0 // pred_fallthru
    _
  // Predicated region
  $region30: #{lstm_model_forward.1} parent=0 // pred_check
    _
  $region31: #{lstm_model_forward.1} parent=0 // pred_check_branch
    %31 = sbr.rel (0) target = $region33
  $region32: #{lstm_model_forward.1} parent=0 // pred_region
    _
  $region33: #{lstm_model_forward.1} parent=0 // pred_fallthru
    _
  // Predicated region
  $region34: #{lstm_model_forward.1} parent=0 // pred_check
    _
  $region35: #{lstm_model_forward.1} parent=0 // pred_check_branch
    %33 = sbr.rel (0) target = $region37
  $region36: #{lstm_model_forward.1} parent=0 // pred_region
    _
  $region37: #{lstm_model_forward.1} parent=0 // pred_fallthru
    _
  // Predicated region
  $region38: #{lstm_model_forward.1} parent=0 // pred_check
    _
  $region39: #{lstm_model_forward.1} parent=0 // pred_check_branch
    %35 = sbr.rel (0) target = $region41
  $region40: #{lstm_model_forward.1} parent=0 // pred_region
    _
  $region41: #{lstm_model_forward.1} parent=0 // pred_fallthru
    _
  // Predicated region
  $region42: #{lstm_model_forward.1} parent=0 // pred_check
    _
  $region43: #{lstm_model_forward.1} parent=0 // pred_check_branch
    %37 = sbr.rel (0) target = $region45
  $region44: #{lstm_model_forward.1} parent=0 // pred_region
    _
  $region45: #{lstm_model_forward.1} parent=0 // pred_fallthru
    _
  %v38 = vld [vmem:[%s2] sm:$0xff]
  %v39 = vld [vmem:[%s2 + $0x8] sm:$0xff]
  %v40 = vld [vmem:[%s2 + $0x10] sm:$0xff]
  %v41 = vld [vmem:[%s2 + $0x18] sm:$0xff]
  %v42 = vld [vmem:[%s5] sm:$0xff]
  %v43 = vld [vmem:[%s5 + $0x8] sm:$0xff]
  %v44 = vld [vmem:[%s5 + $0x10] sm:$0xff]
  %v45 = vld [vmem:[%s5 + $0x18] sm:$0xff]
  %v46 = vld [vmem:[%s4] sm:$0xff]
  %v47 = vld [vmem:[%s4 + $0x8] sm:$0xff]
  %v48 = vld [vmem:[%s4 + $0x10] sm:$0xff]
  %v49 = vld [vmem:[%s4 + $0x18] sm:$0xff]
  %v50 = vld [vmem:[%s6] sm:$0x1]
  %v51 = vld [vmem:[%s7] sm:$0xff]
  %v52 = vld [vmem:[%s7 + $0x8] sm:$0xff]
  %v53 = vld [vmem:[%s7 + $0x10] sm:$0xff]
  %v54 = vld [vmem:[%s7 + $0x18] sm:$0xff]
  %v55 = vld [vmem:[%s7 + $0x20] sm:$0xff]
  %v56 = vld [vmem:[%s7 + $0x28] sm:$0xff]
  %v57 = vld [vmem:[%s7 + $0x30] sm:$0xff]
  %v58 = vld [vmem:[%s7 + $0x38] sm:$0xff]
  %v59 = vld [vmem:[%s7 + $0x40] sm:$0xff]
  %v60 = vld [vmem:[%s7 + $0x48] sm:$0xff]
  %v61 = vld [vmem:[%s7 + $0x50] sm:$0xff]
  %v62 = vld [vmem:[%s7 + $0x58] sm:$0xff]
  %v63 = vld [vmem:[%s7 + $0x60] sm:$0xff]
  %v64 = vld [vmem:[%s7 + $0x68] sm:$0xff]
  %v65 = vld [vmem:[%s7 + $0x70] sm:$0xff]
  %v66 = vld [vmem:[%s7 + $0x78] sm:$0xff]
  %v67 = vld [vmem:[%s7 + $0x80] sm:$0xff]
  %v68 = vld [vmem:[%s7 + $0x88] sm:$0xff]
  %v69 = vld [vmem:[%s7 + $0x90] sm:$0xff]
  %v70 = vld [vmem:[%s7 + $0x98] sm:$0xff]
  %v71 = vld [vmem:[%s7 + $0xa0] sm:$0xff]
  %v72 = vld [vmem:[%s7 + $0xa8] sm:$0xff]
  %v73 = vld [vmem:[%s7 + $0xb0] sm:$0xff]
  %v74 = vld [vmem:[%s7 + $0xb8] sm:$0xff]
  %v75 = vld [vmem:[%s7 + $0xc0] sm:$0xff]
  %v76 = vld [vmem:[%s7 + $0xc8] sm:$0xff]
  %v77 = vld [vmem:[%s7 + $0xd0] sm:$0xff]
  %v78 = vld [vmem:[%s7 + $0xd8] sm:$0xff]
  %v79 = vld [vmem:[%s7 + $0xe0] sm:$0xff]
  %v80 = vld [vmem:[%s7 + $0xe8] sm:$0xff]
  %v81 = vld [vmem:[%s7 + $0xf0] sm:$0xff]
  %v82 = vld [vmem:[%s7 + $0xf8] sm:$0xff]
  %v83 = vld [vmem:[%s0] sm:$0xff]
  %v84 = vld [vmem:[%s0 + $0x8] sm:$0xff]
  %v85 = vld [vmem:[%s0 + $0x10] sm:$0xff]
  %v86 = vld [vmem:[%s0 + $0x18] sm:$0xff]
  %v87 = vld [vmem:[%s0 + $0x20] sm:$0xff]
  %v88 = vld [vmem:[%s0 + $0x28] sm:$0xff]
  %v89 = vld [vmem:[%s0 + $0x30] sm:$0xff]
  %v90 = vld [vmem:[%s0 + $0x38] sm:$0xff]
  %v91 = vld [vmem:[%s1] sm:$0xf]
  %v92 = vld [vmem:[%s3] sm:$0x1]
  %v94 = vlaneseq
  %v95 = vshrl.u32 %v94, 7
  %v96 = vsub.s32 0, %v95
  %v97 = vrot.slane %v92, %v96
  %vm99 = vcmask 31744
  %v101 = vsel %vm99, %v83, 0
  %v104 = vsel %vm99, %v84, 0
  %v107 = vsel %vm99, %v85, 0
  %v110 = vsel %vm99, %v86, 0
  %v113 = vsel %vm99, %v87, 0
  %v116 = vsel %vm99, %v88, 0
  %v119 = vsel %vm99, %v89, 0
  %v122 = vsel %vm99, %v90, 0
  %vm124 = vcmask 1043456
  %v126 = vsel %vm124, %v91, 0
  %128 = vmatprep.subr.mxu0 0.0
  %129 = vmatpush1.msra.mxu0 %v126
  %130 = vmatprep.subr.mxu0 0.0
  %131 = vmatpush1.msra.mxu0 0.0
  %132 = vmatprep.subr.mxu0 0.0
  %133 = vmatpush1.msra.mxu0 0.0
  %134 = vmatprep.subr.mxu0 0.0
  %135 = vmatpush1.msra.mxu0 0.0
  %136 = vmatprep.subr.mxu0 0.0
  %137 = vmatpush1.msra.mxu0 0.0
  %138 = vmatprep.subr.mxu0 0.0
  %139 = vmatpush1.msra.mxu0 0.0
  %140 = vmatprep.subr.mxu0 0.0
  %141 = vmatpush1.msra.mxu0 0.0
  %142 = vmatprep.subr.mxu0 0.0
  %143 = vmatpush1.msra.mxu0 0.0
  %144 = vmatprep.subr.mxu0 0.0
  %145 = vmatpush1.msra.mxu0 0.0
  %146 = vmatprep.subr.mxu0 0.0
  %147 = vmatpush1.msra.mxu0 0.0
  %148 = vmatprep.subr.mxu0 0.0
  %149 = vmatpush1.msra.mxu0 0.0
  %150 = vmatprep.subr.mxu0 0.0
  %151 = vmatpush1.msra.mxu0 0.0
  %152 = vmatprep.subr.mxu0 0.0
  %153 = vmatpush1.msra.mxu0 0.0
  %154 = vmatprep.subr.mxu0 0.0
  %155 = vmatpush1.msra.mxu0 0.0
  %156 = vmatprep.subr.mxu0 0.0
  %157 = vmatpush1.msra.mxu0 0.0
  %158 = vmatprep.subr.mxu0 0.0
  %159 = vmatpush1.msra.mxu0 0.0
  %160 = vmatprep.subr.mxu0 0.0
  %161 = vmatpush1.msra.mxu0 0.0
  %162 = vmatprep.subr.mxu0 0.0
  %163 = vmatpush1.msra.mxu0 0.0
  %164 = vmatprep.subr.mxu0 0.0
  %165 = vmatpush1.msra.mxu0 0.0
  %166 = vmatprep.subr.mxu0 0.0
  %167 = vmatpush1.msra.mxu0 0.0
  %168 = vmatprep.subr.mxu0 0.0
  %169 = vmatpush1.msra.mxu0 0.0
  %170 = vmatprep.subr.mxu0 0.0
  %171 = vmatpush1.msra.mxu0 0.0
  %172 = vmatprep.subr.mxu0 0.0
  %173 = vmatpush1.msra.mxu0 0.0
  %174 = vmatprep.subr.mxu0 0.0
  %175 = vmatpush1.msra.mxu0 0.0
  %176 = vmatprep.subr.mxu0 0.0
  %177 = vmatpush1.msra.mxu0 0.0
  %178 = vmatprep.subr.mxu0 0.0
  %179 = vmatpush1.msra.mxu0 0.0
  %180 = vmatprep.subr.mxu0 0.0
  %181 = vmatpush1.msra.mxu0 0.0
  %182 = vmatprep.subr.mxu0 0.0
  %183 = vmatpush1.msra.mxu0 0.0
  %184 = vmatprep.subr.mxu0 0.0
  %185 = vmatpush1.msra.mxu0 0.0
  %186 = vmatprep.subr.mxu0 0.0
  %187 = vmatpush1.msra.mxu0 0.0
  %188 = vmatprep.subr.mxu0 0.0
  %189 = vmatpush1.msra.mxu0 0.0
  %190 = vmatprep.subr.mxu0 0.0
  %191 = vmatpush1.msra.mxu0 0.0
  %192 = vmatprep.mubr.f32.mxu0 0.0
  %193 = vmatmul.mubr.f32.gmra.mrb[0].mxu0 %v101
  %v194 = vpop.f32.mrb[0].mxu0
  %v195 = vadd.f32 %v97, %v194
  %v196 = vpop.f32.mrb[0].mxu0
  %197 = vmatprep.mubr.f32.mxu0 0.0
  %198 = vmatmul.mubr.f32.gmra.mrb[0].mxu0 %v104
  %v199 = vpop.f32.mrb[0].mxu0
  %v200 = vadd.f32 %v97, %v199
  %v201 = vpop.f32.mrb[0].mxu0
  %202 = vmatprep.mubr.f32.mxu0 0.0
  %203 = vmatmul.mubr.f32.gmra.mrb[0].mxu0 %v107
  %v204 = vpop.f32.mrb[0].mxu0
  %v205 = vadd.f32 %v97, %v204
  %v206 = vpop.f32.mrb[0].mxu0
  %207 = vmatprep.mubr.f32.mxu0 0.0
  %208 = vmatmul.mubr.f32.gmra.mrb[0].mxu0 %v110
  %v209 = vpop.f32.mrb[0].mxu0
  %v210 = vadd.f32 %v97, %v209
  %v211 = vpop.f32.mrb[0].mxu0
  %212 = vmatprep.mubr.f32.mxu0 0.0
  %213 = vmatmul.mubr.f32.gmra.mrb[0].mxu0 %v113
  %v214 = vpop.f32.mrb[0].mxu0
  %v215 = vadd.f32 %v97, %v214
  %v216 = vpop.f32.mrb[0].mxu0
  %217 = vmatprep.mubr.f32.mxu0 0.0
  %218 = vmatmul.mubr.f32.gmra.mrb[0].mxu0 %v116
  %v219 = vpop.f32.mrb[0].mxu0
  %v220 = vadd.f32 %v97, %v219
  %v221 = vpop.f32.mrb[0].mxu0
  %222 = vmatprep.mubr.f32.mxu0 0.0
  %223 = vmatmul.mubr.f32.gmra.mrb[0].mxu0 %v119
  %v224 = vpop.f32.mrb[0].mxu0
  %v225 = vadd.f32 %v97, %v224
  %v226 = vpop.f32.mrb[0].mxu0
  %227 = vmatprep.mubr.f32.mxu0 0.0
  %228 = vmatmul.mubr.f32.gmra.mrb[0].mxu0 %v122
  %v229 = vpop.f32.mrb[0].mxu0
  %v230 = vadd.f32 %v97, %v229
  %v231 = vpop.f32.mrb[0].mxu0
  %232 = vdwg.mxu0
  %vm233 = vcmask 261120
  %v235 = vsel %vm233, 0.0, 0
  %237 = vmatprep.subr.mxu0 0.0
  %238 = vmatpush1.msra.mxu0 %v38
  %239 = vmatprep.subr.mxu0 0.0
  %240 = vmatpush1.msra.mxu0 %v39
  %241 = vmatprep.subr.mxu0 0.0
  %242 = vmatpush1.msra.mxu0 %v40
  %243 = vmatprep.subr.mxu0 0.0
  %244 = vmatpush1.msra.mxu0 %v41
  %245 = vmatprep.subr.mxu0 0.0
  %246 = vmatpush1.msra.mxu0 0.0
  %247 = vmatprep.subr.mxu0 0.0
  %248 = vmatpush1.msra.mxu0 0.0
  %249 = vmatprep.subr.mxu0 0.0
  %250 = vmatpush1.msra.mxu0 0.0
  %251 = vmatprep.subr.mxu0 0.0
  %252 = vmatpush1.msra.mxu0 0.0
  %253 = vmatprep.subr.mxu0 0.0
  %254 = vmatpush1.msra.mxu0 0.0
  %255 = vmatprep.subr.mxu0 0.0
  %256 = vmatpush1.msra.mxu0 0.0
  %257 = vmatprep.subr.mxu0 0.0
  %258 = vmatpush1.msra.mxu0 0.0
  %259 = vmatprep.subr.mxu0 0.0
  %260 = vmatpush1.msra.mxu0 0.0
  %261 = vmatprep.subr.mxu0 0.0
  %262 = vmatpush1.msra.mxu0 0.0
  %263 = vmatprep.subr.mxu0 0.0
  %264 = vmatpush1.msra.mxu0 0.0
  %265 = vmatprep.subr.mxu0 0.0
  %266 = vmatpush1.msra.mxu0 0.0
  %267 = vmatprep.subr.mxu0 0.0
  %268 = vmatpush1.msra.mxu0 0.0
  %269 = vmatprep.subr.mxu0 0.0
  %270 = vmatpush1.msra.mxu0 0.0
  %271 = vmatprep.subr.mxu0 0.0
  %272 = vmatpush1.msra.mxu0 0.0
  %273 = vmatprep.subr.mxu0 0.0
  %274 = vmatpush1.msra.mxu0 0.0
  %275 = vmatprep.subr.mxu0 0.0
  %276 = vmatpush1.msra.mxu0 0.0
  %277 = vmatprep.subr.mxu0 0.0
  %278 = vmatpush1.msra.mxu0 0.0
  %279 = vmatprep.subr.mxu0 0.0
  %280 = vmatpush1.msra.mxu0 0.0
  %281 = vmatprep.subr.mxu0 0.0
  %282 = vmatpush1.msra.mxu0 0.0
  %283 = vmatprep.subr.mxu0 0.0
  %284 = vmatpush1.msra.mxu0 0.0
  %285 = vmatprep.subr.mxu0 0.0
  %286 = vmatpush1.msra.mxu0 0.0
  %287 = vmatprep.subr.mxu0 0.0
  %288 = vmatpush1.msra.mxu0 0.0
  %289 = vmatprep.subr.mxu0 0.0
  %290 = vmatpush1.msra.mxu0 0.0
  %291 = vmatprep.subr.mxu0 0.0
  %292 = vmatpush1.msra.mxu0 0.0
  %293 = vmatprep.subr.mxu0 0.0
  %294 = vmatpush1.msra.mxu0 0.0
  %295 = vmatprep.subr.mxu0 0.0
  %296 = vmatpush1.msra.mxu0 0.0
  %297 = vmatprep.subr.mxu0 0.0
  %298 = vmatpush1.msra.mxu0 0.0
  %299 = vmatprep.subr.mxu0 0.0
  %300 = vmatpush1.msra.mxu0 0.0
  %301 = vmatprep.mubr.f32.mxu0 0.0
  %302 = vmatmul.mubr.f32.gmra.mrb[0].mxu0 %v235
  %v303 = vpop.f32.mrb[0].mxu0
  %v304 = vadd.f32 0.0, %v303
  %v305 = vpop.f32.mrb[0].mxu0
  %306 = vdwg.mxu0
  %v307 = vadd.f32 %v195, %v304
  %v308 = vxor.u32 %v307, 2147483648
  %v309 = vmul.f32 %v308, 1.442695
  %v310 = vpow.pop %v309
  %v311 = vadd.f32 %v310, 1.0
  %v312 = vrcp.pop %v311
  %v313 = vmul.f32 1.0, %v312
  %v314 = vtanh.pop %v307
  %v315 = vmul.f32 %v313, 0.0
  %317 = vrot.lane.b32.xlu0 %v314, 64
  %v318 = vpop.permute.xlu0 %317
  %v320 = vmul.f32 %v313, %v318
  %322 = vrot.lane.b32.xlu0 %v320, 32
  %v323 = vpop.permute.xlu0 %322
  %v325 = vadd.f32 %v315, %v323
  %v326 = vtanh.pop %v325
  %328 = vrot.lane.b32.xlu0 %v326, 64
  %v329 = vpop.permute.xlu0 %328
  %v331 = vmul.f32 %v313, %v329
  %v332 = vmax.f32 %v331, 0.0
  %v334 = vlaneseq
  %v335 = vshrl.u32 %v334, 7
  %v336 = vsub.s32 0, %v335
  %v337 = vrot.slane %v50, %v336
  %340 = vrot.lane.b32.xlu0 %v332, 32
  %v341 = vpop.permute.xlu0 %340
  %v342 = vsel %vm233, %v341, 0
  %344 = vmatprep.subr.mxu0 0.0
  %345 = vmatpush1.msra.mxu0 %v46
  %346 = vmatprep.subr.mxu0 0.0
  %347 = vmatpush1.msra.mxu0 %v47
  %348 = vmatprep.subr.mxu0 0.0
  %349 = vmatpush1.msra.mxu0 %v48
  %350 = vmatprep.subr.mxu0 0.0
  %351 = vmatpush1.msra.mxu0 %v49
  %352 = vmatprep.subr.mxu0 0.0
  %353 = vmatpush1.msra.mxu0 0.0
  %354 = vmatprep.subr.mxu0 0.0
  %355 = vmatpush1.msra.mxu0 0.0
  %356 = vmatprep.subr.mxu0 0.0
  %357 = vmatpush1.msra.mxu0 0.0
  %358 = vmatprep.subr.mxu0 0.0
  %359 = vmatpush1.msra.mxu0 0.0
  %360 = vmatprep.subr.mxu0 0.0
  %361 = vmatpush1.msra.mxu0 0.0
  %362 = vmatprep.subr.mxu0 0.0
  %363 = vmatpush1.msra.mxu0 0.0
  %364 = vmatprep.subr.mxu0 0.0
  %365 = vmatpush1.msra.mxu0 0.0
  %366 = vmatprep.subr.mxu0 0.0
  %367 = vmatpush1.msra.mxu0 0.0
  %368 = vmatprep.subr.mxu0 0.0
  %369 = vmatpush1.msra.mxu0 0.0
  %370 = vmatprep.subr.mxu0 0.0
  %371 = vmatpush1.msra.mxu0 0.0
  %372 = vmatprep.subr.mxu0 0.0
  %373 = vmatpush1.msra.mxu0 0.0
  %374 = vmatprep.subr.mxu0 0.0
  %375 = vmatpush1.msra.mxu0 0.0
  %376 = vmatprep.subr.mxu0 0.0
  %377 = vmatpush1.msra.mxu0 0.0
  %378 = vmatprep.subr.mxu0 0.0
  %379 = vmatpush1.msra.mxu0 0.0
  %380 = vmatprep.subr.mxu0 0.0
  %381 = vmatpush1.msra.mxu0 0.0
  %382 = vmatprep.subr.mxu0 0.0
  %383 = vmatpush1.msra.mxu0 0.0
  %384 = vmatprep.subr.mxu0 0.0
  %385 = vmatpush1.msra.mxu0 0.0
  %386 = vmatprep.subr.mxu0 0.0
  %387 = vmatpush1.msra.mxu0 0.0
  %388 = vmatprep.subr.mxu0 0.0
  %389 = vmatpush1.msra.mxu0 0.0
  %390 = vmatprep.subr.mxu0 0.0
  %391 = vmatpush1.msra.mxu0 0.0
  %392 = vmatprep.subr.mxu0 0.0
  %393 = vmatpush1.msra.mxu0 0.0
  %394 = vmatprep.subr.mxu0 0.0
  %395 = vmatpush1.msra.mxu0 0.0
  %396 = vmatprep.subr.mxu0 0.0
  %397 = vmatpush1.msra.mxu0 0.0
  %398 = vmatprep.subr.mxu0 0.0
  %399 = vmatpush1.msra.mxu0 0.0
  %400 = vmatprep.subr.mxu0 0.0
  %401 = vmatpush1.msra.mxu0 0.0
  %402 = vmatprep.subr.mxu0 0.0
  %403 = vmatpush1.msra.mxu0 0.0
  %404 = vmatprep.subr.mxu0 0.0
  %405 = vmatpush1.msra.mxu0 0.0
  %406 = vmatprep.subr.mxu0 0.0
  %407 = vmatpush1.msra.mxu0 0.0
  %408 = vmatprep.mubr.f32.mxu0 0.0
  %409 = vmatmul.mubr.f32.gmra.mrb[0].mxu0 %v342
  %v410 = vpop.f32.mrb[0].mxu0
  %v411 = vadd.f32 %v337, %v410
  %v412 = vpop.f32.mrb[0].mxu0
  %413 = vdwg.mxu0
  %414 = vmatprep.subr.mxu0 0.0
  %415 = vmatpush1.msra.mxu0 %v42
  %416 = vmatprep.subr.mxu0 0.0
  %417 = vmatpush1.msra.mxu0 %v43
  %418 = vmatprep.subr.mxu0 0.0
  %419 = vmatpush1.msra.mxu0 %v44
  %420 = vmatprep.subr.mxu0 0.0
  %421 = vmatpush1.msra.mxu0 %v45
  %422 = vmatprep.subr.mxu0 0.0
  %423 = vmatpush1.msra.mxu0 0.0
  %424 = vmatprep.subr.mxu0 0.0
  %425 = vmatpush1.msra.mxu0 0.0
  %426 = vmatprep.subr.mxu0 0.0
  %427 = vmatpush1.msra.mxu0 0.0
  %428 = vmatprep.subr.mxu0 0.0
  %429 = vmatpush1.msra.mxu0 0.0
  %430 = vmatprep.subr.mxu0 0.0
  %431 = vmatpush1.msra.mxu0 0.0
  %432 = vmatprep.subr.mxu0 0.0
  %433 = vmatpush1.msra.mxu0 0.0
  %434 = vmatprep.subr.mxu0 0.0
  %435 = vmatpush1.msra.mxu0 0.0
  %436 = vmatprep.subr.mxu0 0.0
  %437 = vmatpush1.msra.mxu0 0.0
  %438 = vmatprep.subr.mxu0 0.0
  %439 = vmatpush1.msra.mxu0 0.0
  %440 = vmatprep.subr.mxu0 0.0
  %441 = vmatpush1.msra.mxu0 0.0
  %442 = vmatprep.subr.mxu0 0.0
  %443 = vmatpush1.msra.mxu0 0.0
  %444 = vmatprep.subr.mxu0 0.0
  %445 = vmatpush1.msra.mxu0 0.0
  %446 = vmatprep.subr.mxu0 0.0
  %447 = vmatpush1.msra.mxu0 0.0
  %448 = vmatprep.subr.mxu0 0.0
  %449 = vmatpush1.msra.mxu0 0.0
  %450 = vmatprep.subr.mxu0 0.0
  %451 = vmatpush1.msra.mxu0 0.0
  %452 = vmatprep.subr.mxu0 0.0
  %453 = vmatpush1.msra.mxu0 0.0
  %454 = vmatprep.subr.mxu0 0.0
  %455 = vmatpush1.msra.mxu0 0.0
  %456 = vmatprep.subr.mxu0 0.0
  %457 = vmatpush1.msra.mxu0 0.0
  %458 = vmatprep.subr.mxu0 0.0
  %459 = vmatpush1.msra.mxu0 0.0
  %460 = vmatprep.subr.mxu0 0.0
  %461 = vmatpush1.msra.mxu0 0.0
  %462 = vmatprep.subr.mxu0 0.0
  %463 = vmatpush1.msra.mxu0 0.0
  %464 = vmatprep.subr.mxu0 0.0
  %465 = vmatpush1.msra.mxu0 0.0
  %466 = vmatprep.subr.mxu0 0.0
  %467 = vmatpush1.msra.mxu0 0.0
  %468 = vmatprep.subr.mxu0 0.0
  %469 = vmatpush1.msra.mxu0 0.0
  %470 = vmatprep.subr.mxu0 0.0
  %471 = vmatpush1.msra.mxu0 0.0
  %472 = vmatprep.subr.mxu0 0.0
  %473 = vmatpush1.msra.mxu0 0.0
  %474 = vmatprep.subr.mxu0 0.0
  %475 = vmatpush1.msra.mxu0 0.0
  %476 = vmatprep.subr.mxu0 0.0
  %477 = vmatpush1.msra.mxu0 0.0
  %478 = vmatprep.mubr.f32.mxu0 0.0
  %479 = vmatmul.mubr.f32.gmra.mrb[0].mxu0 %v235
  %v480 = vpop.f32.mrb[0].mxu0
  %v481 = vadd.f32 0.0, %v480
  %v482 = vpop.f32.mrb[0].mxu0
  %483 = vdwg.mxu0
  %v484 = vadd.f32 %v411, %v481
  %v485 = vxor.u32 %v484, 2147483648
  %v486 = vmul.f32 %v485, 1.442695
  %v487 = vpow.pop %v486
  %v488 = vadd.f32 %v487, 1.0
  %v489 = vrcp.pop %v488
  %v490 = vmul.f32 1.0, %v489
  %v491 = vtanh.pop %v484
  %v492 = vmul.f32 %v490, 0.0
  %494 = vrot.lane.b32.xlu0 %v491, 64
  %v495 = vpop.permute.xlu0 %494
  %v497 = vmul.f32 %v490, %v495
  %499 = vrot.lane.b32.xlu0 %v497, 32
  %v500 = vpop.permute.xlu0 %499
  %v502 = vadd.f32 %v492, %v500
  %v503 = vtanh.pop %v502
  %505 = vrot.lane.b32.xlu0 %v503, 64
  %v506 = vpop.permute.xlu0 %505
  %v508 = vmul.f32 %v490, %v506
  %v509 = vmax.f32 %v508, 0.0
  %511 = vrot.lane.b32.xlu0 %v331, 32
  %v512 = vpop.permute.xlu0 %511
  %v513 = vsel %vm233, %v512, 0
  %515 = vmatprep.subr.mxu0 0.0
  %516 = vmatpush1.msra.mxu0 %v38
  %517 = vmatprep.subr.mxu0 0.0
  %518 = vmatpush1.msra.mxu0 %v39
  %519 = vmatprep.subr.mxu0 0.0
  %520 = vmatpush1.msra.mxu0 %v40
  %521 = vmatprep.subr.mxu0 0.0
  %522 = vmatpush1.msra.mxu0 %v41
  %523 = vmatprep.subr.mxu0 0.0
  %524 = vmatpush1.msra.mxu0 0.0
  %525 = vmatprep.subr.mxu0 0.0
  %526 = vmatpush1.msra.mxu0 0.0
  %527 = vmatprep.subr.mxu0 0.0
  %528 = vmatpush1.msra.mxu0 0.0
  %529 = vmatprep.subr.mxu0 0.0
  %530 = vmatpush1.msra.mxu0 0.0
  %531 = vmatprep.subr.mxu0 0.0
  %532 = vmatpush1.msra.mxu0 0.0
  %533 = vmatprep.subr.mxu0 0.0
  %534 = vmatpush1.msra.mxu0 0.0
  %535 = vmatprep.subr.mxu0 0.0
  %536 = vmatpush1.msra.mxu0 0.0
  %537 = vmatprep.subr.mxu0 0.0
  %538 = vmatpush1.msra.mxu0 0.0
  %539 = vmatprep.subr.mxu0 0.0
  %540 = vmatpush1.msra.mxu0 0.0
  %541 = vmatprep.subr.mxu0 0.0
  %542 = vmatpush1.msra.mxu0 0.0
  %543 = vmatprep.subr.mxu0 0.0
  %544 = vmatpush1.msra.mxu0 0.0
  %545 = vmatprep.subr.mxu0 0.0
  %546 = vmatpush1.msra.mxu0 0.0
  %547 = vmatprep.subr.mxu0 0.0
  %548 = vmatpush1.msra.mxu0 0.0
  %549 = vmatprep.subr.mxu0 0.0
  %550 = vmatpush1.msra.mxu0 0.0
  %551 = vmatprep.subr.mxu0 0.0
  %552 = vmatpush1.msra.mxu0 0.0
  %553 = vmatprep.subr.mxu0 0.0
  %554 = vmatpush1.msra.mxu0 0.0
  %555 = vmatprep.subr.mxu0 0.0
  %556 = vmatpush1.msra.mxu0 0.0
  %557 = vmatprep.subr.mxu0 0.0
  %558 = vmatpush1.msra.mxu0 0.0
  %559 = vmatprep.subr.mxu0 0.0
  %560 = vmatpush1.msra.mxu0 0.0
  %561 = vmatprep.subr.mxu0 0.0
  %562 = vmatpush1.msra.mxu0 0.0
  %563 = vmatprep.subr.mxu0 0.0
  %564 = vmatpush1.msra.mxu0 0.0
  %565 = vmatprep.subr.mxu0 0.0
  %566 = vmatpush1.msra.mxu0 0.0
  %567 = vmatprep.subr.mxu0 0.0
  %568 = vmatpush1.msra.mxu0 0.0
  %569 = vmatprep.subr.mxu0 0.0
  %570 = vmatpush1.msra.mxu0 0.0
  %571 = vmatprep.subr.mxu0 0.0
  %572 = vmatpush1.msra.mxu0 0.0
  %573 = vmatprep.subr.mxu0 0.0
  %574 = vmatpush1.msra.mxu0 0.0
  %575 = vmatprep.subr.mxu0 0.0
  %576 = vmatpush1.msra.mxu0 0.0
  %577 = vmatprep.subr.mxu0 0.0
  %578 = vmatpush1.msra.mxu0 0.0
  %579 = vmatprep.mubr.f32.mxu0 0.0
  %580 = vmatmul.mubr.f32.gmra.mrb[0].mxu0 %v513
  %v581 = vpop.f32.mrb[0].mxu0
  %v582 = vadd.f32 0.0, %v581
  %v583 = vpop.f32.mrb[0].mxu0
  %584 = vdwg.mxu0
  %v585 = vadd.f32 %v200, %v582
  %v586 = vxor.u32 %v585, 2147483648
  %v587 = vmul.f32 %v586, 1.442695
  %v588 = vpow.pop %v587
  %v589 = vadd.f32 %v588, 1.0
  %v590 = vrcp.pop %v589
  %v591 = vmul.f32 1.0, %v590
  %v592 = vtanh.pop %v585
  %v593 = vmul.f32 %v591, %v325
  %595 = vrot.lane.b32.xlu0 %v592, 64
  %v596 = vpop.permute.xlu0 %595
  %v598 = vmul.f32 %v591, %v596
  %600 = vrot.lane.b32.xlu0 %v598, 32
  %v601 = vpop.permute.xlu0 %600
  %v603 = vadd.f32 %v593, %v601
  %v604 = vtanh.pop %v603
  %606 = vrot.lane.b32.xlu0 %v604, 64
  %v607 = vpop.permute.xlu0 %606
  %v609 = vmul.f32 %v591, %v607
  %v610 = vmax.f32 %v609, 0.0
  %612 = vrot.lane.b32.xlu0 %v610, 32
  %v613 = vpop.permute.xlu0 %612
  %v614 = vsel %vm233, %v613, 0
  %616 = vmatprep.subr.mxu0 0.0
  %617 = vmatpush1.msra.mxu0 %v46
  %618 = vmatprep.subr.mxu0 0.0
  %619 = vmatpush1.msra.mxu0 %v47
  %620 = vmatprep.subr.mxu0 0.0
  %621 = vmatpush1.msra.mxu0 %v48
  %622 = vmatprep.subr.mxu0 0.0
  %623 = vmatpush1.msra.mxu0 %v49
  %624 = vmatprep.subr.mxu0 0.0
  %625 = vmatpush1.msra.mxu0 0.0
  %626 = vmatprep.subr.mxu0 0.0
  %627 = vmatpush1.msra.mxu0 0.0
  %628 = vmatprep.subr.mxu0 0.0
  %629 = vmatpush1.msra.mxu0 0.0
  %630 = vmatprep.subr.mxu0 0.0
  %631 = vmatpush1.msra.mxu0 0.0
  %632 = vmatprep.subr.mxu0 0.0
  %633 = vmatpush1.msra.mxu0 0.0
  %634 = vmatprep.subr.mxu0 0.0
  %635 = vmatpush1.msra.mxu0 0.0
  %636 = vmatprep.subr.mxu0 0.0
  %637 = vmatpush1.msra.mxu0 0.0
  %638 = vmatprep.subr.mxu0 0.0
  %639 = vmatpush1.msra.mxu0 0.0
  %640 = vmatprep.subr.mxu0 0.0
  %641 = vmatpush1.msra.mxu0 0.0
  %642 = vmatprep.subr.mxu0 0.0
  %643 = vmatpush1.msra.mxu0 0.0
  %644 = vmatprep.subr.mxu0 0.0
  %645 = vmatpush1.msra.mxu0 0.0
  %646 = vmatprep.subr.mxu0 0.0
  %647 = vmatpush1.msra.mxu0 0.0
  %648 = vmatprep.subr.mxu0 0.0
  %649 = vmatpush1.msra.mxu0 0.0
  %650 = vmatprep.subr.mxu0 0.0
  %651 = vmatpush1.msra.mxu0 0.0
  %652 = vmatprep.subr.mxu0 0.0
  %653 = vmatpush1.msra.mxu0 0.0
  %654 = vmatprep.subr.mxu0 0.0
  %655 = vmatpush1.msra.mxu0 0.0
  %656 = vmatprep.subr.mxu0 0.0
  %657 = vmatpush1.msra.mxu0 0.0
  %658 = vmatprep.subr.mxu0 0.0
  %659 = vmatpush1.msra.mxu0 0.0
  %660 = vmatprep.subr.mxu0 0.0
  %661 = vmatpush1.msra.mxu0 0.0
  %662 = vmatprep.subr.mxu0 0.0
  %663 = vmatpush1.msra.mxu0 0.0
  %664 = vmatprep.subr.mxu0 0.0
  %665 = vmatpush1.msra.mxu0 0.0
  %666 = vmatprep.subr.mxu0 0.0
  %667 = vmatpush1.msra.mxu0 0.0
  %668 = vmatprep.subr.mxu0 0.0
  %669 = vmatpush1.msra.mxu0 0.0
  %670 = vmatprep.subr.mxu0 0.0
  %671 = vmatpush1.msra.mxu0 0.0
  %672 = vmatprep.subr.mxu0 0.0
  %673 = vmatpush1.msra.mxu0 0.0
  %674 = vmatprep.subr.mxu0 0.0
  %675 = vmatpush1.msra.mxu0 0.0
  %676 = vmatprep.subr.mxu0 0.0
  %677 = vmatpush1.msra.mxu0 0.0
  %678 = vmatprep.subr.mxu0 0.0
  %679 = vmatpush1.msra.mxu0 0.0
  %680 = vmatprep.mubr.f32.mxu0 0.0
  %681 = vmatmul.mubr.f32.gmra.mrb[0].mxu0 %v614
  %v682 = vpop.f32.mrb[0].mxu0
  %v683 = vadd.f32 %v337, %v682
  %v684 = vpop.f32.mrb[0].mxu0
  %685 = vdwg.mxu0
  %687 = vrot.lane.b32.xlu0 %v508, 32
  %v688 = vpop.permute.xlu0 %687
  %v689 = vsel %vm233, %v688, 0
  %691 = vmatprep.subr.mxu0 0.0
  %692 = vmatpush1.msra.mxu0 %v42
  %693 = vmatprep.subr.mxu0 0.0
  %694 = vmatpush1.msra.mxu0 %v43
  %695 = vmatprep.subr.mxu0 0.0
  %696 = vmatpush1.msra.mxu0 %v44
  %697 = vmatprep.subr.mxu0 0.0
  %698 = vmatpush1.msra.mxu0 %v45
  %699 = vmatprep.subr.mxu0 0.0
  %700 = vmatpush1.msra.mxu0 0.0
  %701 = vmatprep.subr.mxu0 0.0
  %702 = vmatpush1.msra.mxu0 0.0
  %703 = vmatprep.subr.mxu0 0.0
  %704 = vmatpush1.msra.mxu0 0.0
  %705 = vmatprep.subr.mxu0 0.0
  %706 = vmatpush1.msra.mxu0 0.0
  %707 = vmatprep.subr.mxu0 0.0
  %708 = vmatpush1.msra.mxu0 0.0
  %709 = vmatprep.subr.mxu0 0.0
  %710 = vmatpush1.msra.mxu0 0.0
  %711 = vmatprep.subr.mxu0 0.0
  %712 = vmatpush1.msra.mxu0 0.0
  %713 = vmatprep.subr.mxu0 0.0
  %714 = vmatpush1.msra.mxu0 0.0
  %715 = vmatprep.subr.mxu0 0.0
  %716 = vmatpush1.msra.mxu0 0.0
  %717 = vmatprep.subr.mxu0 0.0
  %718 = vmatpush1.msra.mxu0 0.0
  %719 = vmatprep.subr.mxu0 0.0
  %720 = vmatpush1.msra.mxu0 0.0
  %721 = vmatprep.subr.mxu0 0.0
  %722 = vmatpush1.msra.mxu0 0.0
  %723 = vmatprep.subr.mxu0 0.0
  %724 = vmatpush1.msra.mxu0 0.0
  %725 = vmatprep.subr.mxu0 0.0
  %726 = vmatpush1.msra.mxu0 0.0
  %727 = vmatprep.subr.mxu0 0.0
  %728 = vmatpush1.msra.mxu0 0.0
  %729 = vmatprep.subr.mxu0 0.0
  %730 = vmatpush1.msra.mxu0 0.0
  %731 = vmatprep.subr.mxu0 0.0
  %732 = vmatpush1.msra.mxu0 0.0
  %733 = vmatprep.subr.mxu0 0.0
  %734 = vmatpush1.msra.mxu0 0.0
  %735 = vmatprep.subr.mxu0 0.0
  %736 = vmatpush1.msra.mxu0 0.0
  %737 = vmatprep.subr.mxu0 0.0
  %738 = vmatpush1.msra.mxu0 0.0
  %739 = vmatprep.subr.mxu0 0.0
  %740 = vmatpush1.msra.mxu0 0.0
  %741 = vmatprep.subr.mxu0 0.0
  %742 = vmatpush1.msra.mxu0 0.0
  %743 = vmatprep.subr.mxu0 0.0
  %744 = vmatpush1.msra.mxu0 0.0
  %745 = vmatprep.subr.mxu0 0.0
  %746 = vmatpush1.msra.mxu0 0.0
  %747 = vmatprep.subr.mxu0 0.0
  %748 = vmatpush1.msra.mxu0 0.0
  %749 = vmatprep.subr.mxu0 0.0
  %750 = vmatpush1.msra.mxu0 0.0
  %751 = vmatprep.subr.mxu0 0.0
  %752 = vmatpush1.msra.mxu0 0.0
  %753 = vmatprep.subr.mxu0 0.0
  %754 = vmatpush1.msra.mxu0 0.0
  %755 = vmatprep.mubr.f32.mxu0 0.0
  %756 = vmatmul.mubr.f32.gmra.mrb[0].mxu0 %v689
  %v757 = vpop.f32.mrb[0].mxu0
  %v758 = vadd.f32 0.0, %v757
  %v759 = vpop.f32.mrb[0].mxu0
  %760 = vdwg.mxu0
  %v761 = vadd.f32 %v683, %v758
  %v762 = vxor.u32 %v761, 2147483648
  %v763 = vmul.f32 %v762, 1.442695
  %v764 = vpow.pop %v763
  %v765 = vadd.f32 %v764, 1.0
  %v766 = vrcp.pop %v765
  %v767 = vmul.f32 1.0, %v766
  %v768 = vtanh.pop %v761
  %v769 = vmul.f32 %v767, %v502
  %771 = vrot.lane.b32.xlu0 %v768, 64
  %v772 = vpop.permute.xlu0 %771
  %v774 = vmul.f32 %v767, %v772
  %776 = vrot.lane.b32.xlu0 %v774, 32
  %v777 = vpop.permute.xlu0 %776
  %v779 = vadd.f32 %v769, %v777
  %v780 = vtanh.pop %v779
  %782 = vrot.lane.b32.xlu0 %v780, 64
  %v783 = vpop.permute.xlu0 %782
  %v785 = vmul.f32 %v767, %v783
  %v786 = vmax.f32 %v785, 0.0
  %788 = vrot.lane.b32.xlu0 %v786, 32
  %v789 = vpop.permute.xlu0 %788
  %v790 = vsel %vm233, %v789, 0
  %792 = vmatprep.subr.mxu0 0.0
  %793 = vmatpush1.msra.mxu0 %v55
  %794 = vmatprep.subr.mxu0 0.0
  %795 = vmatpush1.msra.mxu0 %v56
  %796 = vmatprep.subr.mxu0 0.0
  %797 = vmatpush1.msra.mxu0 %v57
  %798 = vmatprep.subr.mxu0 0.0
  %799 = vmatpush1.msra.mxu0 %v58
  %800 = vmatprep.subr.mxu0 0.0
  %801 = vmatpush1.msra.mxu0 0.0
  %802 = vmatprep.subr.mxu0 0.0
  %803 = vmatpush1.msra.mxu0 0.0
  %804 = vmatprep.subr.mxu0 0.0
  %805 = vmatpush1.msra.mxu0 0.0
  %806 = vmatprep.subr.mxu0 0.0
  %807 = vmatpush1.msra.mxu0 0.0
  %808 = vmatprep.subr.mxu0 0.0
  %809 = vmatpush1.msra.mxu0 0.0
  %810 = vmatprep.subr.mxu0 0.0
  %811 = vmatpush1.msra.mxu0 0.0
  %812 = vmatprep.subr.mxu0 0.0
  %813 = vmatpush1.msra.mxu0 0.0
  %814 = vmatprep.subr.mxu0 0.0
  %815 = vmatpush1.msra.mxu0 0.0
  %816 = vmatprep.subr.mxu0 0.0
  %817 = vmatpush1.msra.mxu0 0.0
  %818 = vmatprep.subr.mxu0 0.0
  %819 = vmatpush1.msra.mxu0 0.0
  %820 = vmatprep.subr.mxu0 0.0
  %821 = vmatpush1.msra.mxu0 0.0
  %822 = vmatprep.subr.mxu0 0.0
  %823 = vmatpush1.msra.mxu0 0.0
  %824 = vmatprep.subr.mxu0 0.0
  %825 = vmatpush1.msra.mxu0 0.0
  %826 = vmatprep.subr.mxu0 0.0
  %827 = vmatpush1.msra.mxu0 0.0
  %828 = vmatprep.subr.mxu0 0.0
  %829 = vmatpush1.msra.mxu0 0.0
  %830 = vmatprep.subr.mxu0 0.0
  %831 = vmatpush1.msra.mxu0 0.0
  %832 = vmatprep.subr.mxu0 0.0
  %833 = vmatpush1.msra.mxu0 0.0
  %834 = vmatprep.subr.mxu0 0.0
  %835 = vmatpush1.msra.mxu0 0.0
  %836 = vmatprep.subr.mxu0 0.0
  %837 = vmatpush1.msra.mxu0 0.0
  %838 = vmatprep.subr.mxu0 0.0
  %839 = vmatpush1.msra.mxu0 0.0
  %840 = vmatprep.subr.mxu0 0.0
  %841 = vmatpush1.msra.mxu0 0.0
  %842 = vmatprep.subr.mxu0 0.0
  %843 = vmatpush1.msra.mxu0 0.0
  %844 = vmatprep.subr.mxu0 0.0
  %845 = vmatpush1.msra.mxu0 0.0
  %846 = vmatprep.subr.mxu0 0.0
  %847 = vmatpush1.msra.mxu0 0.0
  %848 = vmatprep.subr.mxu0 0.0
  %849 = vmatpush1.msra.mxu0 0.0
  %850 = vmatprep.subr.mxu0 0.0
  %851 = vmatpush1.msra.mxu0 0.0
  %852 = vmatprep.subr.mxu0 0.0
  %853 = vmatpush1.msra.mxu0 0.0
  %854 = vmatprep.subr.mxu0 0.0
  %855 = vmatpush1.msra.mxu0 0.0
  %856 = vmatprep.mubr.f32.mxu0 0.0
  %857 = vmatmul.mubr.f32.gmra.mrb[0].mxu0 %v790
  %v858 = vpop.f32.mrb[0].mxu0
  %v859 = vadd.f32 0.0, %v858
  %v860 = vpop.f32.mrb[0].mxu0
  %861 = vdwg.mxu0
  %863 = vrot.lane.b32.xlu0 %v509, 32
  %v864 = vpop.permute.xlu0 %863
  %v865 = vsel %vm233, %v864, 0
  %867 = vmatprep.subr.mxu0 0.0
  %868 = vmatpush1.msra.mxu0 %v51
  %869 = vmatprep.subr.mxu0 0.0
  %870 = vmatpush1.msra.mxu0 %v52
  %871 = vmatprep.subr.mxu0 0.0
  %872 = vmatpush1.msra.mxu0 %v53
  %873 = vmatprep.subr.mxu0 0.0
  %874 = vmatpush1.msra.mxu0 %v54
  %875 = vmatprep.subr.mxu0 0.0
  %876 = vmatpush1.msra.mxu0 0.0
  %877 = vmatprep.subr.mxu0 0.0
  %878 = vmatpush1.msra.mxu0 0.0
  %879 = vmatprep.subr.mxu0 0.0
  %880 = vmatpush1.msra.mxu0 0.0
  %881 = vmatprep.subr.mxu0 0.0
  %882 = vmatpush1.msra.mxu0 0.0
  %883 = vmatprep.subr.mxu0 0.0
  %884 = vmatpush1.msra.mxu0 0.0
  %885 = vmatprep.subr.mxu0 0.0
  %886 = vmatpush1.msra.mxu0 0.0
  %887 = vmatprep.subr.mxu0 0.0
  %888 = vmatpush1.msra.mxu0 0.0
  %889 = vmatprep.subr.mxu0 0.0
  %890 = vmatpush1.msra.mxu0 0.0
  %891 = vmatprep.subr.mxu0 0.0
  %892 = vmatpush1.msra.mxu0 0.0
  %893 = vmatprep.subr.mxu0 0.0
  %894 = vmatpush1.msra.mxu0 0.0
  %895 = vmatprep.subr.mxu0 0.0
  %896 = vmatpush1.msra.mxu0 0.0
  %897 = vmatprep.subr.mxu0 0.0
  %898 = vmatpush1.msra.mxu0 0.0
  %899 = vmatprep.subr.mxu0 0.0
  %900 = vmatpush1.msra.mxu0 0.0
  %901 = vmatprep.subr.mxu0 0.0
  %902 = vmatpush1.msra.mxu0 0.0
  %903 = vmatprep.subr.mxu0 0.0
  %904 = vmatpush1.msra.mxu0 0.0
  %905 = vmatprep.subr.mxu0 0.0
  %906 = vmatpush1.msra.mxu0 0.0
  %907 = vmatprep.subr.mxu0 0.0
  %908 = vmatpush1.msra.mxu0 0.0
  %909 = vmatprep.subr.mxu0 0.0
  %910 = vmatpush1.msra.mxu0 0.0
  %911 = vmatprep.subr.mxu0 0.0
  %912 = vmatpush1.msra.mxu0 0.0
  %913 = vmatprep.subr.mxu0 0.0
  %914 = vmatpush1.msra.mxu0 0.0
  %915 = vmatprep.subr.mxu0 0.0
  %916 = vmatpush1.msra.mxu0 0.0
  %917 = vmatprep.subr.mxu0 0.0
  %918 = vmatpush1.msra.mxu0 0.0
  %919 = vmatprep.subr.mxu0 0.0
  %920 = vmatpush1.msra.mxu0 0.0
  %921 = vmatprep.subr.mxu0 0.0
  %922 = vmatpush1.msra.mxu0 0.0
  %923 = vmatprep.subr.mxu0 0.0
  %924 = vmatpush1.msra.mxu0 0.0
  %925 = vmatprep.subr.mxu0 0.0
  %926 = vmatpush1.msra.mxu0 0.0
  %927 = vmatprep.subr.mxu0 0.0
  %928 = vmatpush1.msra.mxu0 0.0
  %929 = vmatprep.subr.mxu0 0.0
  %930 = vmatpush1.msra.mxu0 0.0
  %931 = vmatprep.mubr.f32.mxu0 0.0
  %932 = vmatmul.mubr.f32.gmra.mrb[0].mxu0 %v865
  %v933 = vpop.f32.mrb[0].mxu0
  %v934 = vadd.f32 %v859, %v933
  %v935 = vpop.f32.mrb[0].mxu0
  %936 = vdwg.mxu0
  %938 = vrot.lane.b32.xlu0 %v609, 32
  %v939 = vpop.permute.xlu0 %938
  %v940 = vsel %vm233, %v939, 0
  %942 = vmatprep.subr.mxu0 0.0
  %943 = vmatpush1.msra.mxu0 %v38
  %944 = vmatprep.subr.mxu0 0.0
  %945 = vmatpush1.msra.mxu0 %v39
  %946 = vmatprep.subr.mxu0 0.0
  %947 = vmatpush1.msra.mxu0 %v40
  %948 = vmatprep.subr.mxu0 0.0
  %949 = vmatpush1.msra.mxu0 %v41
  %950 = vmatprep.subr.mxu0 0.0
  %951 = vmatpush1.msra.mxu0 0.0
  %952 = vmatprep.subr.mxu0 0.0
  %953 = vmatpush1.msra.mxu0 0.0
  %954 = vmatprep.subr.mxu0 0.0
  %955 = vmatpush1.msra.mxu0 0.0
  %956 = vmatprep.subr.mxu0 0.0
  %957 = vmatpush1.msra.mxu0 0.0
  %958 = vmatprep.subr.mxu0 0.0
  %959 = vmatpush1.msra.mxu0 0.0
  %960 = vmatprep.subr.mxu0 0.0
  %961 = vmatpush1.msra.mxu0 0.0
  %962 = vmatprep.subr.mxu0 0.0
  %963 = vmatpush1.msra.mxu0 0.0
  %964 = vmatprep.subr.mxu0 0.0
  %965 = vmatpush1.msra.mxu0 0.0
  %966 = vmatprep.subr.mxu0 0.0
  %967 = vmatpush1.msra.mxu0 0.0
  %968 = vmatprep.subr.mxu0 0.0
  %969 = vmatpush1.msra.mxu0 0.0
  %970 = vmatprep.subr.mxu0 0.0
  %971 = vmatpush1.msra.mxu0 0.0
  %972 = vmatprep.subr.mxu0 0.0
  %973 = vmatpush1.msra.mxu0 0.0
  %974 = vmatprep.subr.mxu0 0.0
  %975 = vmatpush1.msra.mxu0 0.0
  %976 = vmatprep.subr.mxu0 0.0
  %977 = vmatpush1.msra.mxu0 0.0
  %978 = vmatprep.subr.mxu0 0.0
  %979 = vmatpush1.msra.mxu0 0.0
  %980 = vmatprep.subr.mxu0 0.0
  %981 = vmatpush1.msra.mxu0 0.0
  %982 = vmatprep.subr.mxu0 0.0
  %983 = vmatpush1.msra.mxu0 0.0
  %984 = vmatprep.subr.mxu0 0.0
  %985 = vmatpush1.msra.mxu0 0.0
  %986 = vmatprep.subr.mxu0 0.0
  %987 = vmatpush1.msra.mxu0 0.0
  %988 = vmatprep.subr.mxu0 0.0
  %989 = vmatpush1.msra.mxu0 0.0
  %990 = vmatprep.subr.mxu0 0.0
  %991 = vmatpush1.msra.mxu0 0.0
  %992 = vmatprep.subr.mxu0 0.0
  %993 = vmatpush1.msra.mxu0 0.0
  %994 = vmatprep.subr.mxu0 0.0
  %995 = vmatpush1.msra.mxu0 0.0
  %996 = vmatprep.subr.mxu0 0.0
  %997 = vmatpush1.msra.mxu0 0.0
  %998 = vmatprep.subr.mxu0 0.0
  %999 = vmatpush1.msra.mxu0 0.0
  %1000 = vmatprep.subr.mxu0 0.0
  %1001 = vmatpush1.msra.mxu0 0.0
  %1002 = vmatprep.subr.mxu0 0.0
  %1003 = vmatpush1.msra.mxu0 0.0
  %1004 = vmatprep.subr.mxu0 0.0
  %1005 = vmatpush1.msra.mxu0 0.0
  %1006 = vmatprep.mubr.f32.mxu0 0.0
  %1007 = vmatmul.mubr.f32.gmra.mrb[0].mxu0 %v940
  %v1008 = vpop.f32.mrb[0].mxu0
  %v1009 = vadd.f32 0.0, %v1008
  %v1010 = vpop.f32.mrb[0].mxu0
  %1011 = vdwg.mxu0
  %v1012 = vadd.f32 %v205, %v1009
  %v1013 = vxor.u32 %v1012, 2147483648
  %v1014 = vmul.f32 %v1013, 1.442695
  %v1015 = vpow.pop %v1014
  %v1016 = vadd.f32 %v1015, 1.0
  %v1017 = vrcp.pop %v1016
  %v1018 = vmul.f32 1.0, %v1017
  %v1019 = vtanh.pop %v1012
  %v1020 = vmul.f32 %v1018, %v603
  %1022 = vrot.lane.b32.xlu0 %v1019, 64
  %v1023 = vpop.permute.xlu0 %1022
  %v1025 = vmul.f32 %v1018, %v1023
  %1027 = vrot.lane.b32.xlu0 %v1025, 32
  %v1028 = vpop.permute.xlu0 %1027
  %v1030 = vadd.f32 %v1020, %v1028
  %v1031 = vtanh.pop %v1030
  %1033 = vrot.lane.b32.xlu0 %v1031, 64
  %v1034 = vpop.permute.xlu0 %1033
  %v1036 = vmul.f32 %v1018, %v1034
  %v1037 = vmax.f32 %v1036, 0.0
  %1039 = vrot.lane.b32.xlu0 %v1037, 32
  %v1040 = vpop.permute.xlu0 %1039
  %v1041 = vsel %vm233, %v1040, 0
  %1043 = vmatprep.subr.mxu0 0.0
  %1044 = vmatpush1.msra.mxu0 %v46
  %1045 = vmatprep.subr.mxu0 0.0
  %1046 = vmatpush1.msra.mxu0 %v47
  %1047 = vmatprep.subr.mxu0 0.0
  %1048 = vmatpush1.msra.mxu0 %v48
  %1049 = vmatprep.subr.mxu0 0.0
  %1050 = vmatpush1.msra.mxu0 %v49
  %1051 = vmatprep.subr.mxu0 0.0
  %1052 = vmatpush1.msra.mxu0 0.0
  %1053 = vmatprep.subr.mxu0 0.0
  %1054 = vmatpush1.msra.mxu0 0.0
  %1055 = vmatprep.subr.mxu0 0.0
  %1056 = vmatpush1.msra.mxu0 0.0
  %1057 = vmatprep.subr.mxu0 0.0
  %1058 = vmatpush1.msra.mxu0 0.0
  %1059 = vmatprep.subr.mxu0 0.0
  %1060 = vmatpush1.msra.mxu0 0.0
  %1061 = vmatprep.subr.mxu0 0.0
  %1062 = vmatpush1.msra.mxu0 0.0
  %1063 = vmatprep.subr.mxu0 0.0
  %1064 = vmatpush1.msra.mxu0 0.0
  %1065 = vmatprep.subr.mxu0 0.0
  %1066 = vmatpush1.msra.mxu0 0.0
  %1067 = vmatprep.subr.mxu0 0.0
  %1068 = vmatpush1.msra.mxu0 0.0
  %1069 = vmatprep.subr.mxu0 0.0
  %1070 = vmatpush1.msra.mxu0 0.0
  %1071 = vmatprep.subr.mxu0 0.0
  %1072 = vmatpush1.msra.mxu0 0.0
  %1073 = vmatprep.subr.mxu0 0.0
  %1074 = vmatpush1.msra.mxu0 0.0
  %1075 = vmatprep.subr.mxu0 0.0
  %1076 = vmatpush1.msra.mxu0 0.0
  %1077 = vmatprep.subr.mxu0 0.0
  %1078 = vmatpush1.msra.mxu0 0.0
  %1079 = vmatprep.subr.mxu0 0.0
  %1080 = vmatpush1.msra.mxu0 0.0
  %1081 = vmatprep.subr.mxu0 0.0
  %1082 = vmatpush1.msra.mxu0 0.0
  %1083 = vmatprep.subr.mxu0 0.0
  %1084 = vmatpush1.msra.mxu0 0.0
  %1085 = vmatprep.subr.mxu0 0.0
  %1086 = vmatpush1.msra.mxu0 0.0
  %1087 = vmatprep.subr.mxu0 0.0
  %1088 = vmatpush1.msra.mxu0 0.0
  %1089 = vmatprep.subr.mxu0 0.0
  %1090 = vmatpush1.msra.mxu0 0.0
  %1091 = vmatprep.subr.mxu0 0.0
  %1092 = vmatpush1.msra.mxu0 0.0
  %1093 = vmatprep.subr.mxu0 0.0
  %1094 = vmatpush1.msra.mxu0 0.0
  %1095 = vmatprep.subr.mxu0 0.0
  %1096 = vmatpush1.msra.mxu0 0.0
  %1097 = vmatprep.subr.mxu0 0.0
  %1098 = vmatpush1.msra.mxu0 0.0
  %1099 = vmatprep.subr.mxu0 0.0
  %1100 = vmatpush1.msra.mxu0 0.0
  %1101 = vmatprep.subr.mxu0 0.0
  %1102 = vmatpush1.msra.mxu0 0.0
  %1103 = vmatprep.subr.mxu0 0.0
  %1104 = vmatpush1.msra.mxu0 0.0
  %1105 = vmatprep.subr.mxu0 0.0
  %1106 = vmatpush1.msra.mxu0 0.0
  %1107 = vmatprep.mubr.f32.mxu0 0.0
  %1108 = vmatmul.mubr.f32.gmra.mrb[0].mxu0 %v1041
  %v1109 = vpop.f32.mrb[0].mxu0
  %v1110 = vadd.f32 %v337, %v1109
  %v1111 = vpop.f32.mrb[0].mxu0
  %1112 = vdwg.mxu0
  %1114 = vrot.lane.b32.xlu0 %v785, 32
  %v1115 = vpop.permute.xlu0 %1114
  %v1116 = vsel %vm233, %v1115, 0
  %1118 = vmatprep.subr.mxu0 0.0
  %1119 = vmatpush1.msra.mxu0 %v42
  %1120 = vmatprep.subr.mxu0 0.0
  %1121 = vmatpush1.msra.mxu0 %v43
  %1122 = vmatprep.subr.mxu0 0.0
  %1123 = vmatpush1.msra.mxu0 %v44
  %1124 = vmatprep.subr.mxu0 0.0
  %1125 = vmatpush1.msra.mxu0 %v45
  %1126 = vmatprep.subr.mxu0 0.0
  %1127 = vmatpush1.msra.mxu0 0.0
  %1128 = vmatprep.subr.mxu0 0.0
  %1129 = vmatpush1.msra.mxu0 0.0
  %1130 = vmatprep.subr.mxu0 0.0
  %1131 = vmatpush1.msra.mxu0 0.0
  %1132 = vmatprep.subr.mxu0 0.0
  %1133 = vmatpush1.msra.mxu0 0.0
  %1134 = vmatprep.subr.mxu0 0.0
  %1135 = vmatpush1.msra.mxu0 0.0
  %1136 = vmatprep.subr.mxu0 0.0
  %1137 = vmatpush1.msra.mxu0 0.0
  %1138 = vmatprep.subr.mxu0 0.0
  %1139 = vmatpush1.msra.mxu0 0.0
  %1140 = vmatprep.subr.mxu0 0.0
  %1141 = vmatpush1.msra.mxu0 0.0
  %1142 = vmatprep.subr.mxu0 0.0
  %1143 = vmatpush1.msra.mxu0 0.0
  %1144 = vmatprep.subr.mxu0 0.0
  %1145 = vmatpush1.msra.mxu0 0.0
  %1146 = vmatprep.subr.mxu0 0.0
  %1147 = vmatpush1.msra.mxu0 0.0
  %1148 = vmatprep.subr.mxu0 0.0
  %1149 = vmatpush1.msra.mxu0 0.0
  %1150 = vmatprep.subr.mxu0 0.0
  %1151 = vmatpush1.msra.mxu0 0.0
  %1152 = vmatprep.subr.mxu0 0.0
  %1153 = vmatpush1.msra.mxu0 0.0
  %1154 = vmatprep.subr.mxu0 0.0
  %1155 = vmatpush1.msra.mxu0 0.0
  %1156 = vmatprep.subr.mxu0 0.0
  %1157 = vmatpush1.msra.mxu0 0.0
  %1158 = vmatprep.subr.mxu0 0.0
  %1159 = vmatpush1.msra.mxu0 0.0
  %1160 = vmatprep.subr.mxu0 0.0
  %1161 = vmatpush1.msra.mxu0 0.0
  %1162 = vmatprep.subr.mxu0 0.0
  %1163 = vmatpush1.msra.mxu0 0.0
  %1164 = vmatprep.subr.mxu0 0.0
  %1165 = vmatpush1.msra.mxu0 0.0
  %1166 = vmatprep.subr.mxu0 0.0
  %1167 = vmatpush1.msra.mxu0 0.0
  %1168 = vmatprep.subr.mxu0 0.0
  %1169 = vmatpush1.msra.mxu0 0.0
  %1170 = vmatprep.subr.mxu0 0.0
  %1171 = vmatpush1.msra.mxu0 0.0
  %1172 = vmatprep.subr.mxu0 0.0
  %1173 = vmatpush1.msra.mxu0 0.0
  %1174 = vmatprep.subr.mxu0 0.0
  %1175 = vmatpush1.msra.mxu0 0.0
  %1176 = vmatprep.subr.mxu0 0.0
  %1177 = vmatpush1.msra.mxu0 0.0
  %1178 = vmatprep.subr.mxu0 0.0
  %1179 = vmatpush1.msra.mxu0 0.0
  %1180 = vmatprep.subr.mxu0 0.0
  %1181 = vmatpush1.msra.mxu0 0.0
  %1182 = vmatprep.mubr.f32.mxu0 0.0
  %1183 = vmatmul.mubr.f32.gmra.mrb[0].mxu0 %v1116
  %v1184 = vpop.f32.mrb[0].mxu0
  %v1185 = vadd.f32 0.0, %v1184
  %v1186 = vpop.f32.mrb[0].mxu0
  %1187 = vdwg.mxu0
  %v1188 = vadd.f32 %v1110, %v1185
  %v1189 = vxor.u32 %v1188, 2147483648
  %v1190 = vmul.f32 %v1189, 1.442695
  %v1191 = vpow.pop %v1190
  %v1192 = vadd.f32 %v1191, 1.0
  %v1193 = vrcp.pop %v1192
  %v1194 = vmul.f32 1.0, %v1193
  %v1195 = vtanh.pop %v1188
  %v1196 = vmul.f32 %v1194, %v779
  %1198 = vrot.lane.b32.xlu0 %v1195, 64
  %v1199 = vpop.permute.xlu0 %1198
  %v1201 = vmul.f32 %v1194, %v1199
  %1203 = vrot.lane.b32.xlu0 %v1201, 32
  %v1204 = vpop.permute.xlu0 %1203
  %v1206 = vadd.f32 %v1196, %v1204
  %v1207 = vtanh.pop %v1206
  %1209 = vrot.lane.b32.xlu0 %v1207, 64
  %v1210 = vpop.permute.xlu0 %1209
  %v1212 = vmul.f32 %v1194, %v1210
  %v1213 = vmax.f32 %v1212, 0.0
  %1215 = vrot.lane.b32.xlu0 %v1213, 32
  %v1216 = vpop.permute.xlu0 %1215
  %v1217 = vsel %vm233, %v1216, 0
  %1219 = vmatprep.subr.mxu0 0.0
  %1220 = vmatpush1.msra.mxu0 %v59
  %1221 = vmatprep.subr.mxu0 0.0
  %1222 = vmatpush1.msra.mxu0 %v60
  %1223 = vmatprep.subr.mxu0 0.0
  %1224 = vmatpush1.msra.mxu0 %v61
  %1225 = vmatprep.subr.mxu0 0.0
  %1226 = vmatpush1.msra.mxu0 %v62
  %1227 = vmatprep.subr.mxu0 0.0
  %1228 = vmatpush1.msra.mxu0 0.0
  %1229 = vmatprep.subr.mxu0 0.0
  %1230 = vmatpush1.msra.mxu0 0.0
  %1231 = vmatprep.subr.mxu0 0.0
  %1232 = vmatpush1.msra.mxu0 0.0
  %1233 = vmatprep.subr.mxu0 0.0
  %1234 = vmatpush1.msra.mxu0 0.0
  %1235 = vmatprep.subr.mxu0 0.0
  %1236 = vmatpush1.msra.mxu0 0.0
  %1237 = vmatprep.subr.mxu0 0.0
  %1238 = vmatpush1.msra.mxu0 0.0
  %1239 = vmatprep.subr.mxu0 0.0
  %1240 = vmatpush1.msra.mxu0 0.0
  %1241 = vmatprep.subr.mxu0 0.0
  %1242 = vmatpush1.msra.mxu0 0.0
  %1243 = vmatprep.subr.mxu0 0.0
  %1244 = vmatpush1.msra.mxu0 0.0
  %1245 = vmatprep.subr.mxu0 0.0
  %1246 = vmatpush1.msra.mxu0 0.0
  %1247 = vmatprep.subr.mxu0 0.0
  %1248 = vmatpush1.msra.mxu0 0.0
  %1249 = vmatprep.subr.mxu0 0.0
  %1250 = vmatpush1.msra.mxu0 0.0
  %1251 = vmatprep.subr.mxu0 0.0
  %1252 = vmatpush1.msra.mxu0 0.0
  %1253 = vmatprep.subr.mxu0 0.0
  %1254 = vmatpush1.msra.mxu0 0.0
  %1255 = vmatprep.subr.mxu0 0.0
  %1256 = vmatpush1.msra.mxu0 0.0
  %1257 = vmatprep.subr.mxu0 0.0
  %1258 = vmatpush1.msra.mxu0 0.0
  %1259 = vmatprep.subr.mxu0 0.0
  %1260 = vmatpush1.msra.mxu0 0.0
  %1261 = vmatprep.subr.mxu0 0.0
  %1262 = vmatpush1.msra.mxu0 0.0
  %1263 = vmatprep.subr.mxu0 0.0
  %1264 = vmatpush1.msra.mxu0 0.0
  %1265 = vmatprep.subr.mxu0 0.0
  %1266 = vmatpush1.msra.mxu0 0.0
  %1267 = vmatprep.subr.mxu0 0.0
  %1268 = vmatpush1.msra.mxu0 0.0
  %1269 = vmatprep.subr.mxu0 0.0
  %1270 = vmatpush1.msra.mxu0 0.0
  %1271 = vmatprep.subr.mxu0 0.0
  %1272 = vmatpush1.msra.mxu0 0.0
  %1273 = vmatprep.subr.mxu0 0.0
  %1274 = vmatpush1.msra.mxu0 0.0
  %1275 = vmatprep.subr.mxu0 0.0
  %1276 = vmatpush1.msra.mxu0 0.0
  %1277 = vmatprep.subr.mxu0 0.0
  %1278 = vmatpush1.msra.mxu0 0.0
  %1279 = vmatprep.subr.mxu0 0.0
  %1280 = vmatpush1.msra.mxu0 0.0
  %1281 = vmatprep.subr.mxu0 0.0
  %1282 = vmatpush1.msra.mxu0 0.0
  %1283 = vmatprep.mubr.f32.mxu0 0.0
  %1284 = vmatmul.mubr.f32.gmra.mrb[0].mxu0 %v1217
  %v1285 = vpop.f32.mrb[0].mxu0
  %v1286 = vadd.f32 0.0, %v1285
  %v1287 = vpop.f32.mrb[0].mxu0
  %1288 = vdwg.mxu0
  %v1289 = vadd.f32 %v934, %v1286
  %1291 = vrot.lane.b32.xlu0 %v1036, 32
  %v1292 = vpop.permute.xlu0 %1291
  %v1293 = vsel %vm233, %v1292, 0
  %1295 = vmatprep.subr.mxu0 0.0
  %1296 = vmatpush1.msra.mxu0 %v38
  %1297 = vmatprep.subr.mxu0 0.0
  %1298 = vmatpush1.msra.mxu0 %v39
  %1299 = vmatprep.subr.mxu0 0.0
  %1300 = vmatpush1.msra.mxu0 %v40
  %1301 = vmatprep.subr.mxu0 0.0
  %1302 = vmatpush1.msra.mxu0 %v41
  %1303 = vmatprep.subr.mxu0 0.0
  %1304 = vmatpush1.msra.mxu0 0.0
  %1305 = vmatprep.subr.mxu0 0.0
  %1306 = vmatpush1.msra.mxu0 0.0
  %1307 = vmatprep.subr.mxu0 0.0
  %1308 = vmatpush1.msra.mxu0 0.0
  %1309 = vmatprep.subr.mxu0 0.0
  %1310 = vmatpush1.msra.mxu0 0.0
  %1311 = vmatprep.subr.mxu0 0.0
  %1312 = vmatpush1.msra.mxu0 0.0
  %1313 = vmatprep.subr.mxu0 0.0
  %1314 = vmatpush1.msra.mxu0 0.0
  %1315 = vmatprep.subr.mxu0 0.0
  %1316 = vmatpush1.msra.mxu0 0.0
  %1317 = vmatprep.subr.mxu0 0.0
  %1318 = vmatpush1.msra.mxu0 0.0
  %1319 = vmatprep.subr.mxu0 0.0
  %1320 = vmatpush1.msra.mxu0 0.0
  %1321 = vmatprep.subr.mxu0 0.0
  %1322 = vmatpush1.msra.mxu0 0.0
  %1323 = vmatprep.subr.mxu0 0.0
  %1324 = vmatpush1.msra.mxu0 0.0
  %1325 = vmatprep.subr.mxu0 0.0
  %1326 = vmatpush1.msra.mxu0 0.0
  %1327 = vmatprep.subr.mxu0 0.0
  %1328 = vmatpush1.msra.mxu0 0.0
  %1329 = vmatprep.subr.mxu0 0.0
  %1330 = vmatpush1.msra.mxu0 0.0
  %1331 = vmatprep.subr.mxu0 0.0
  %1332 = vmatpush1.msra.mxu0 0.0
  %1333 = vmatprep.subr.mxu0 0.0
  %1334 = vmatpush1.msra.mxu0 0.0
  %1335 = vmatprep.subr.mxu0 0.0
  %1336 = vmatpush1.msra.mxu0 0.0
  %1337 = vmatprep.subr.mxu0 0.0
  %1338 = vmatpush1.msra.mxu0 0.0
  %1339 = vmatprep.subr.mxu0 0.0
  %1340 = vmatpush1.msra.mxu0 0.0
  %1341 = vmatprep.subr.mxu0 0.0
  %1342 = vmatpush1.msra.mxu0 0.0
  %1343 = vmatprep.subr.mxu0 0.0
  %1344 = vmatpush1.msra.mxu0 0.0
  %1345 = vmatprep.subr.mxu0 0.0
  %1346 = vmatpush1.msra.mxu0 0.0
  %1347 = vmatprep.subr.mxu0 0.0
  %1348 = vmatpush1.msra.mxu0 0.0
  %1349 = vmatprep.subr.mxu0 0.0
  %1350 = vmatpush1.msra.mxu0 0.0
  %1351 = vmatprep.subr.mxu0 0.0
  %1352 = vmatpush1.msra.mxu0 0.0
  %1353 = vmatprep.subr.mxu0 0.0
  %1354 = vmatpush1.msra.mxu0 0.0
  %1355 = vmatprep.subr.mxu0 0.0
  %1356 = vmatpush1.msra.mxu0 0.0
  %1357 = vmatprep.subr.mxu0 0.0
  %1358 = vmatpush1.msra.mxu0 0.0
  %1359 = vmatprep.mubr.f32.mxu0 0.0
  %1360 = vmatmul.mubr.f32.gmra.mrb[0].mxu0 %v1293
  %v1361 = vpop.f32.mrb[0].mxu0
  %v1362 = vadd.f32 0.0, %v1361
  %v1363 = vpop.f32.mrb[0].mxu0
  %1364 = vdwg.mxu0
  %v1365 = vadd.f32 %v210, %v1362
  %v1366 = vxor.u32 %v1365, 2147483648
  %v1367 = vmul.f32 %v1366, 1.442695
  %v1368 = vpow.pop %v1367
  %v1369 = vadd.f32 %v1368, 1.0
  %v1370 = vrcp.pop %v1369
  %v1371 = vmul.f32 1.0, %v1370
  %v1372 = vtanh.pop %v1365
  %v1373 = vmul.f32 %v1371, %v1030
  %1375 = vrot.lane.b32.xlu0 %v1372, 64
  %v1376 = vpop.permute.xlu0 %1375
  %v1378 = vmul.f32 %v1371, %v1376
  %1380 = vrot.lane.b32.xlu0 %v1378, 32
  %v1381 = vpop.permute.xlu0 %1380
  %v1383 = vadd.f32 %v1373, %v1381
  %v1384 = vtanh.pop %v1383
  %1386 = vrot.lane.b32.xlu0 %v1384, 64
  %v1387 = vpop.permute.xlu0 %1386
  %v1389 = vmul.f32 %v1371, %v1387
  %v1390 = vmax.f32 %v1389, 0.0
  %1392 = vrot.lane.b32.xlu0 %v1390, 32
  %v1393 = vpop.permute.xlu0 %1392
  %v1394 = vsel %vm233, %v1393, 0
  %1396 = vmatprep.subr.mxu0 0.0
  %1397 = vmatpush1.msra.mxu0 %v46
  %1398 = vmatprep.subr.mxu0 0.0
  %1399 = vmatpush1.msra.mxu0 %v47
  %1400 = vmatprep.subr.mxu0 0.0
  %1401 = vmatpush1.msra.mxu0 %v48
  %1402 = vmatprep.subr.mxu0 0.0
  %1403 = vmatpush1.msra.mxu0 %v49
  %1404 = vmatprep.subr.mxu0 0.0
  %1405 = vmatpush1.msra.mxu0 0.0
  %1406 = vmatprep.subr.mxu0 0.0
  %1407 = vmatpush1.msra.mxu0 0.0
  %1408 = vmatprep.subr.mxu0 0.0
  %1409 = vmatpush1.msra.mxu0 0.0
  %1410 = vmatprep.subr.mxu0 0.0
  %1411 = vmatpush1.msra.mxu0 0.0
  %1412 = vmatprep.subr.mxu0 0.0
  %1413 = vmatpush1.msra.mxu0 0.0
  %1414 = vmatprep.subr.mxu0 0.0
  %1415 = vmatpush1.msra.mxu0 0.0
  %1416 = vmatprep.subr.mxu0 0.0
  %1417 = vmatpush1.msra.mxu0 0.0
  %1418 = vmatprep.subr.mxu0 0.0
  %1419 = vmatpush1.msra.mxu0 0.0
  %1420 = vmatprep.subr.mxu0 0.0
  %1421 = vmatpush1.msra.mxu0 0.0
  %1422 = vmatprep.subr.mxu0 0.0
  %1423 = vmatpush1.msra.mxu0 0.0
  %1424 = vmatprep.subr.mxu0 0.0
  %1425 = vmatpush1.msra.mxu0 0.0
  %1426 = vmatprep.subr.mxu0 0.0
  %1427 = vmatpush1.msra.mxu0 0.0
  %1428 = vmatprep.subr.mxu0 0.0
  %1429 = vmatpush1.msra.mxu0 0.0
  %1430 = vmatprep.subr.mxu0 0.0
  %1431 = vmatpush1.msra.mxu0 0.0
  %1432 = vmatprep.subr.mxu0 0.0
  %1433 = vmatpush1.msra.mxu0 0.0
  %1434 = vmatprep.subr.mxu0 0.0
  %1435 = vmatpush1.msra.mxu0 0.0
  %1436 = vmatprep.subr.mxu0 0.0
  %1437 = vmatpush1.msra.mxu0 0.0
  %1438 = vmatprep.subr.mxu0 0.0
  %1439 = vmatpush1.msra.mxu0 0.0
  %1440 = vmatprep.subr.mxu0 0.0
  %1441 = vmatpush1.msra.mxu0 0.0
  %1442 = vmatprep.subr.mxu0 0.0
  %1443 = vmatpush1.msra.mxu0 0.0
  %1444 = vmatprep.subr.mxu0 0.0
  %1445 = vmatpush1.msra.mxu0 0.0
  %1446 = vmatprep.subr.mxu0 0.0
  %1447 = vmatpush1.msra.mxu0 0.0
  %1448 = vmatprep.subr.mxu0 0.0
  %1449 = vmatpush1.msra.mxu0 0.0
  %1450 = vmatprep.subr.mxu0 0.0
  %1451 = vmatpush1.msra.mxu0 0.0
  %1452 = vmatprep.subr.mxu0 0.0
  %1453 = vmatpush1.msra.mxu0 0.0
  %1454 = vmatprep.subr.mxu0 0.0
  %1455 = vmatpush1.msra.mxu0 0.0
  %1456 = vmatprep.subr.mxu0 0.0
  %1457 = vmatpush1.msra.mxu0 0.0
  %1458 = vmatprep.subr.mxu0 0.0
  %1459 = vmatpush1.msra.mxu0 0.0
  %1460 = vmatprep.mubr.f32.mxu0 0.0
  %1461 = vmatmul.mubr.f32.gmra.mrb[0].mxu0 %v1394
  %v1462 = vpop.f32.mrb[0].mxu0
  %v1463 = vadd.f32 %v337, %v1462
  %v1464 = vpop.f32.mrb[0].mxu0
  %1465 = vdwg.mxu0
  %1467 = vrot.lane.b32.xlu0 %v1212, 32
  %v1468 = vpop.permute.xlu0 %1467
  %v1469 = vsel %vm233, %v1468, 0
  %1471 = vmatprep.subr.mxu0 0.0
  %1472 = vmatpush1.msra.mxu0 %v42
  %1473 = vmatprep.subr.mxu0 0.0
  %1474 = vmatpush1.msra.mxu0 %v43
  %1475 = vmatprep.subr.mxu0 0.0
  %1476 = vmatpush1.msra.mxu0 %v44
  %1477 = vmatprep.subr.mxu0 0.0
  %1478 = vmatpush1.msra.mxu0 %v45
  %1479 = vmatprep.subr.mxu0 0.0
  %1480 = vmatpush1.msra.mxu0 0.0
  %1481 = vmatprep.subr.mxu0 0.0
  %1482 = vmatpush1.msra.mxu0 0.0
  %1483 = vmatprep.subr.mxu0 0.0
  %1484 = vmatpush1.msra.mxu0 0.0
  %1485 = vmatprep.subr.mxu0 0.0
  %1486 = vmatpush1.msra.mxu0 0.0
  %1487 = vmatprep.subr.mxu0 0.0
  %1488 = vmatpush1.msra.mxu0 0.0
  %1489 = vmatprep.subr.mxu0 0.0
  %1490 = vmatpush1.msra.mxu0 0.0
  %1491 = vmatprep.subr.mxu0 0.0
  %1492 = vmatpush1.msra.mxu0 0.0
  %1493 = vmatprep.subr.mxu0 0.0
  %1494 = vmatpush1.msra.mxu0 0.0
  %1495 = vmatprep.subr.mxu0 0.0
  %1496 = vmatpush1.msra.mxu0 0.0
  %1497 = vmatprep.subr.mxu0 0.0
  %1498 = vmatpush1.msra.mxu0 0.0
  %1499 = vmatprep.subr.mxu0 0.0
  %1500 = vmatpush1.msra.mxu0 0.0
  %1501 = vmatprep.subr.mxu0 0.0
  %1502 = vmatpush1.msra.mxu0 0.0
  %1503 = vmatprep.subr.mxu0 0.0
  %1504 = vmatpush1.msra.mxu0 0.0
  %1505 = vmatprep.subr.mxu0 0.0
  %1506 = vmatpush1.msra.mxu0 0.0
  %1507 = vmatprep.subr.mxu0 0.0
  %1508 = vmatpush1.msra.mxu0 0.0
  %1509 = vmatprep.subr.mxu0 0.0
  %1510 = vmatpush1.msra.mxu0 0.0
  %1511 = vmatprep.subr.mxu0 0.0
  %1512 = vmatpush1.msra.mxu0 0.0
  %1513 = vmatprep.subr.mxu0 0.0
  %1514 = vmatpush1.msra.mxu0 0.0
  %1515 = vmatprep.subr.mxu0 0.0
  %1516 = vmatpush1.msra.mxu0 0.0
  %1517 = vmatprep.subr.mxu0 0.0
  %1518 = vmatpush1.msra.mxu0 0.0
  %1519 = vmatprep.subr.mxu0 0.0
  %1520 = vmatpush1.msra.mxu0 0.0
  %1521 = vmatprep.subr.mxu0 0.0
  %1522 = vmatpush1.msra.mxu0 0.0
  %1523 = vmatprep.subr.mxu0 0.0
  %1524 = vmatpush1.msra.mxu0 0.0
  %1525 = vmatprep.subr.mxu0 0.0
  %1526 = vmatpush1.msra.mxu0 0.0
  %1527 = vmatprep.subr.mxu0 0.0
  %1528 = vmatpush1.msra.mxu0 0.0
  %1529 = vmatprep.subr.mxu0 0.0
  %1530 = vmatpush1.msra.mxu0 0.0
  %1531 = vmatprep.subr.mxu0 0.0
  %1532 = vmatpush1.msra.mxu0 0.0
  %1533 = vmatprep.subr.mxu0 0.0
  %1534 = vmatpush1.msra.mxu0 0.0
  %1535 = vmatprep.mubr.f32.mxu0 0.0
  %1536 = vmatmul.mubr.f32.gmra.mrb[0].mxu0 %v1469
  %v1537 = vpop.f32.mrb[0].mxu0
  %v1538 = vadd.f32 0.0, %v1537
  %v1539 = vpop.f32.mrb[0].mxu0
  %1540 = vdwg.mxu0
  %v1541 = vadd.f32 %v1463, %v1538
  %v1542 = vxor.u32 %v1541, 2147483648
  %v1543 = vmul.f32 %v1542, 1.442695
  %v1544 = vpow.pop %v1543
  %v1545 = vadd.f32 %v1544, 1.0
  %v1546 = vrcp.pop %v1545
  %v1547 = vmul.f32 1.0, %v1546
  %v1548 = vtanh.pop %v1541
  %v1549 = vmul.f32 %v1547, %v1206
  %1551 = vrot.lane.b32.xlu0 %v1548, 64
  %v1552 = vpop.permute.xlu0 %1551
  %v1554 = vmul.f32 %v1547, %v1552
  %1556 = vrot.lane.b32.xlu0 %v1554, 32
  %v1557 = vpop.permute.xlu0 %1556
  %v1559 = vadd.f32 %v1549, %v1557
  %v1560 = vtanh.pop %v1559
  %1562 = vrot.lane.b32.xlu0 %v1560, 64
  %v1563 = vpop.permute.xlu0 %1562
  %v1565 = vmul.f32 %v1547, %v1563
  %v1566 = vmax.f32 %v1565, 0.0
  %1568 = vrot.lane.b32.xlu0 %v1566, 32
  %v1569 = vpop.permute.xlu0 %1568
  %v1570 = vsel %vm233, %v1569, 0
  %1572 = vmatprep.subr.mxu0 0.0
  %1573 = vmatpush1.msra.mxu0 %v63
  %1574 = vmatprep.subr.mxu0 0.0
  %1575 = vmatpush1.msra.mxu0 %v64
  %1576 = vmatprep.subr.mxu0 0.0
  %1577 = vmatpush1.msra.mxu0 %v65
  %1578 = vmatprep.subr.mxu0 0.0
  %1579 = vmatpush1.msra.mxu0 %v66
  %1580 = vmatprep.subr.mxu0 0.0
  %1581 = vmatpush1.msra.mxu0 0.0
  %1582 = vmatprep.subr.mxu0 0.0
  %1583 = vmatpush1.msra.mxu0 0.0
  %1584 = vmatprep.subr.mxu0 0.0
  %1585 = vmatpush1.msra.mxu0 0.0
  %1586 = vmatprep.subr.mxu0 0.0
  %1587 = vmatpush1.msra.mxu0 0.0
  %1588 = vmatprep.subr.mxu0 0.0
  %1589 = vmatpush1.msra.mxu0 0.0
  %1590 = vmatprep.subr.mxu0 0.0
  %1591 = vmatpush1.msra.mxu0 0.0
  %1592 = vmatprep.subr.mxu0 0.0
  %1593 = vmatpush1.msra.mxu0 0.0
  %1594 = vmatprep.subr.mxu0 0.0
  %1595 = vmatpush1.msra.mxu0 0.0
  %1596 = vmatprep.subr.mxu0 0.0
  %1597 = vmatpush1.msra.mxu0 0.0
  %1598 = vmatprep.subr.mxu0 0.0
  %1599 = vmatpush1.msra.mxu0 0.0
  %1600 = vmatprep.subr.mxu0 0.0
  %1601 = vmatpush1.msra.mxu0 0.0
  %1602 = vmatprep.subr.mxu0 0.0
  %1603 = vmatpush1.msra.mxu0 0.0
  %1604 = vmatprep.subr.mxu0 0.0
  %1605 = vmatpush1.msra.mxu0 0.0
  %1606 = vmatprep.subr.mxu0 0.0
  %1607 = vmatpush1.msra.mxu0 0.0
  %1608 = vmatprep.subr.mxu0 0.0
  %1609 = vmatpush1.msra.mxu0 0.0
  %1610 = vmatprep.subr.mxu0 0.0
  %1611 = vmatpush1.msra.mxu0 0.0
  %1612 = vmatprep.subr.mxu0 0.0
  %1613 = vmatpush1.msra.mxu0 0.0
  %1614 = vmatprep.subr.mxu0 0.0
  %1615 = vmatpush1.msra.mxu0 0.0
  %1616 = vmatprep.subr.mxu0 0.0
  %1617 = vmatpush1.msra.mxu0 0.0
  %1618 = vmatprep.subr.mxu0 0.0
  %1619 = vmatpush1.msra.mxu0 0.0
  %1620 = vmatprep.subr.mxu0 0.0
  %1621 = vmatpush1.msra.mxu0 0.0
  %1622 = vmatprep.subr.mxu0 0.0
  %1623 = vmatpush1.msra.mxu0 0.0
  %1624 = vmatprep.subr.mxu0 0.0
  %1625 = vmatpush1.msra.mxu0 0.0
  %1626 = vmatprep.subr.mxu0 0.0
  %1627 = vmatpush1.msra.mxu0 0.0
  %1628 = vmatprep.subr.mxu0 0.0
  %1629 = vmatpush1.msra.mxu0 0.0
  %1630 = vmatprep.subr.mxu0 0.0
  %1631 = vmatpush1.msra.mxu0 0.0
  %1632 = vmatprep.subr.mxu0 0.0
  %1633 = vmatpush1.msra.mxu0 0.0
  %1634 = vmatprep.subr.mxu0 0.0
  %1635 = vmatpush1.msra.mxu0 0.0
  %1636 = vmatprep.mubr.f32.mxu0 0.0
  %1637 = vmatmul.mubr.f32.gmra.mrb[0].mxu0 %v1570
  %v1638 = vpop.f32.mrb[0].mxu0
  %v1639 = vadd.f32 0.0, %v1638
  %v1640 = vpop.f32.mrb[0].mxu0
  %1641 = vdwg.mxu0
  %v1642 = vadd.f32 %v1289, %v1639
  %1644 = vrot.lane.b32.xlu0 %v1389, 32
  %v1645 = vpop.permute.xlu0 %1644
  %v1646 = vsel %vm233, %v1645, 0
  %1648 = vmatprep.subr.mxu0 0.0
  %1649 = vmatpush1.msra.mxu0 %v38
  %1650 = vmatprep.subr.mxu0 0.0
  %1651 = vmatpush1.msra.mxu0 %v39
  %1652 = vmatprep.subr.mxu0 0.0
  %1653 = vmatpush1.msra.mxu0 %v40
  %1654 = vmatprep.subr.mxu0 0.0
  %1655 = vmatpush1.msra.mxu0 %v41
  %1656 = vmatprep.subr.mxu0 0.0
  %1657 = vmatpush1.msra.mxu0 0.0
  %1658 = vmatprep.subr.mxu0 0.0
  %1659 = vmatpush1.msra.mxu0 0.0
  %1660 = vmatprep.subr.mxu0 0.0
  %1661 = vmatpush1.msra.mxu0 0.0
  %1662 = vmatprep.subr.mxu0 0.0
  %1663 = vmatpush1.msra.mxu0 0.0
  %1664 = vmatprep.subr.mxu0 0.0
  %1665 = vmatpush1.msra.mxu0 0.0
  %1666 = vmatprep.subr.mxu0 0.0
  %1667 = vmatpush1.msra.mxu0 0.0
  %1668 = vmatprep.subr.mxu0 0.0
  %1669 = vmatpush1.msra.mxu0 0.0
  %1670 = vmatprep.subr.mxu0 0.0
  %1671 = vmatpush1.msra.mxu0 0.0
  %1672 = vmatprep.subr.mxu0 0.0
  %1673 = vmatpush1.msra.mxu0 0.0
  %1674 = vmatprep.subr.mxu0 0.0
  %1675 = vmatpush1.msra.mxu0 0.0
  %1676 = vmatprep.subr.mxu0 0.0
  %1677 = vmatpush1.msra.mxu0 0.0
  %1678 = vmatprep.subr.mxu0 0.0
  %1679 = vmatpush1.msra.mxu0 0.0
  %1680 = vmatprep.subr.mxu0 0.0
  %1681 = vmatpush1.msra.mxu0 0.0
  %1682 = vmatprep.subr.mxu0 0.0
  %1683 = vmatpush1.msra.mxu0 0.0
  %1684 = vmatprep.subr.mxu0 0.0
  %1685 = vmatpush1.msra.mxu0 0.0
  %1686 = vmatprep.subr.mxu0 0.0
  %1687 = vmatpush1.msra.mxu0 0.0
  %1688 = vmatprep.subr.mxu0 0.0
  %1689 = vmatpush1.msra.mxu0 0.0
  %1690 = vmatprep.subr.mxu0 0.0
  %1691 = vmatpush1.msra.mxu0 0.0
  %1692 = vmatprep.subr.mxu0 0.0
  %1693 = vmatpush1.msra.mxu0 0.0
  %1694 = vmatprep.subr.mxu0 0.0
  %1695 = vmatpush1.msra.mxu0 0.0
  %1696 = vmatprep.subr.mxu0 0.0
  %1697 = vmatpush1.msra.mxu0 0.0
  %1698 = vmatprep.subr.mxu0 0.0
  %1699 = vmatpush1.msra.mxu0 0.0
  %1700 = vmatprep.subr.mxu0 0.0
  %1701 = vmatpush1.msra.mxu0 0.0
  %1702 = vmatprep.subr.mxu0 0.0
  %1703 = vmatpush1.msra.mxu0 0.0
  %1704 = vmatprep.subr.mxu0 0.0
  %1705 = vmatpush1.msra.mxu0 0.0
  %1706 = vmatprep.subr.mxu0 0.0
  %1707 = vmatpush1.msra.mxu0 0.0
  %1708 = vmatprep.subr.mxu0 0.0
  %1709 = vmatpush1.msra.mxu0 0.0
  %1710 = vmatprep.subr.mxu0 0.0
  %1711 = vmatpush1.msra.mxu0 0.0
  %1712 = vmatprep.mubr.f32.mxu0 0.0
  %1713 = vmatmul.mubr.f32.gmra.mrb[0].mxu0 %v1646
  %v1714 = vpop.f32.mrb[0].mxu0
  %v1715 = vadd.f32 0.0, %v1714
  %v1716 = vpop.f32.mrb[0].mxu0
  %1717 = vdwg.mxu0
  %v1718 = vadd.f32 %v215, %v1715
  %v1719 = vxor.u32 %v1718, 2147483648
  %v1720 = vmul.f32 %v1719, 1.442695
  %v1721 = vpow.pop %v1720
  %v1722 = vadd.f32 %v1721, 1.0
  %v1723 = vrcp.pop %v1722
  %v1724 = vmul.f32 1.0, %v1723
  %v1725 = vtanh.pop %v1718
  %v1726 = vmul.f32 %v1724, %v1383
  %1728 = vrot.lane.b32.xlu0 %v1725, 64
  %v1729 = vpop.permute.xlu0 %1728
  %v1731 = vmul.f32 %v1724, %v1729
  %1733 = vrot.lane.b32.xlu0 %v1731, 32
  %v1734 = vpop.permute.xlu0 %1733
  %v1736 = vadd.f32 %v1726, %v1734
  %v1737 = vtanh.pop %v1736
  %1739 = vrot.lane.b32.xlu0 %v1737, 64
  %v1740 = vpop.permute.xlu0 %1739
  %v1742 = vmul.f32 %v1724, %v1740
  %v1743 = vmax.f32 %v1742, 0.0
  %1745 = vrot.lane.b32.xlu0 %v1743, 32
  %v1746 = vpop.permute.xlu0 %1745
  %v1747 = vsel %vm233, %v1746, 0
  %1749 = vmatprep.subr.mxu0 0.0
  %1750 = vmatpush1.msra.mxu0 %v46
  %1751 = vmatprep.subr.mxu0 0.0
  %1752 = vmatpush1.msra.mxu0 %v47
  %1753 = vmatprep.subr.mxu0 0.0
  %1754 = vmatpush1.msra.mxu0 %v48
  %1755 = vmatprep.subr.mxu0 0.0
  %1756 = vmatpush1.msra.mxu0 %v49
  %1757 = vmatprep.subr.mxu0 0.0
  %1758 = vmatpush1.msra.mxu0 0.0
  %1759 = vmatprep.subr.mxu0 0.0
  %1760 = vmatpush1.msra.mxu0 0.0
  %1761 = vmatprep.subr.mxu0 0.0
  %1762 = vmatpush1.msra.mxu0 0.0
  %1763 = vmatprep.subr.mxu0 0.0
  %1764 = vmatpush1.msra.mxu0 0.0
  %1765 = vmatprep.subr.mxu0 0.0
  %1766 = vmatpush1.msra.mxu0 0.0
  %1767 = vmatprep.subr.mxu0 0.0
  %1768 = vmatpush1.msra.mxu0 0.0
  %1769 = vmatprep.subr.mxu0 0.0
  %1770 = vmatpush1.msra.mxu0 0.0
  %1771 = vmatprep.subr.mxu0 0.0
  %1772 = vmatpush1.msra.mxu0 0.0
  %1773 = vmatprep.subr.mxu0 0.0
  %1774 = vmatpush1.msra.mxu0 0.0
  %1775 = vmatprep.subr.mxu0 0.0
  %1776 = vmatpush1.msra.mxu0 0.0
  %1777 = vmatprep.subr.mxu0 0.0
  %1778 = vmatpush1.msra.mxu0 0.0
  %1779 = vmatprep.subr.mxu0 0.0
  %1780 = vmatpush1.msra.mxu0 0.0
  %1781 = vmatprep.subr.mxu0 0.0
  %1782 = vmatpush1.msra.mxu0 0.0
  %1783 = vmatprep.subr.mxu0 0.0
  %1784 = vmatpush1.msra.mxu0 0.0
  %1785 = vmatprep.subr.mxu0 0.0
  %1786 = vmatpush1.msra.mxu0 0.0
  %1787 = vmatprep.subr.mxu0 0.0
  %1788 = vmatpush1.msra.mxu0 0.0
  %1789 = vmatprep.subr.mxu0 0.0
  %1790 = vmatpush1.msra.mxu0 0.0
  %1791 = vmatprep.subr.mxu0 0.0
  %1792 = vmatpush1.msra.mxu0 0.0
  %1793 = vmatprep.subr.mxu0 0.0
  %1794 = vmatpush1.msra.mxu0 0.0
  %1795 = vmatprep.subr.mxu0 0.0
  %1796 = vmatpush1.msra.mxu0 0.0
  %1797 = vmatprep.subr.mxu0 0.0
  %1798 = vmatpush1.msra.mxu0 0.0
  %1799 = vmatprep.subr.mxu0 0.0
  %1800 = vmatpush1.msra.mxu0 0.0
  %1801 = vmatprep.subr.mxu0 0.0
  %1802 = vmatpush1.msra.mxu0 0.0
  %1803 = vmatprep.subr.mxu0 0.0
  %1804 = vmatpush1.msra.mxu0 0.0
  %1805 = vmatprep.subr.mxu0 0.0
  %1806 = vmatpush1.msra.mxu0 0.0
  %1807 = vmatprep.subr.mxu0 0.0
  %1808 = vmatpush1.msra.mxu0 0.0
  %1809 = vmatprep.subr.mxu0 0.0
  %1810 = vmatpush1.msra.mxu0 0.0
  %1811 = vmatprep.subr.mxu0 0.0
  %1812 = vmatpush1.msra.mxu0 0.0
  %1813 = vmatprep.mubr.f32.mxu0 0.0
  %1814 = vmatmul.mubr.f32.gmra.mrb[0].mxu0 %v1747
  %v1815 = vpop.f32.mrb[0].mxu0
  %v1816 = vadd.f32 %v337, %v1815
  %v1817 = vpop.f32.mrb[0].mxu0
  %1818 = vdwg.mxu0
  %1820 = vrot.lane.b32.xlu0 %v1565, 32
  %v1821 = vpop.permute.xlu0 %1820
  %v1822 = vsel %vm233, %v1821, 0
  %1824 = vmatprep.subr.mxu0 0.0
  %1825 = vmatpush1.msra.mxu0 %v42
  %1826 = vmatprep.subr.mxu0 0.0
  %1827 = vmatpush1.msra.mxu0 %v43
  %1828 = vmatprep.subr.mxu0 0.0
  %1829 = vmatpush1.msra.mxu0 %v44
  %1830 = vmatprep.subr.mxu0 0.0
  %1831 = vmatpush1.msra.mxu0 %v45
  %1832 = vmatprep.subr.mxu0 0.0
  %1833 = vmatpush1.msra.mxu0 0.0
  %1834 = vmatprep.subr.mxu0 0.0
  %1835 = vmatpush1.msra.mxu0 0.0
  %1836 = vmatprep.subr.mxu0 0.0
  %1837 = vmatpush1.msra.mxu0 0.0
  %1838 = vmatprep.subr.mxu0 0.0
  %1839 = vmatpush1.msra.mxu0 0.0
  %1840 = vmatprep.subr.mxu0 0.0
  %1841 = vmatpush1.msra.mxu0 0.0
  %1842 = vmatprep.subr.mxu0 0.0
  %1843 = vmatpush1.msra.mxu0 0.0
  %1844 = vmatprep.subr.mxu0 0.0
  %1845 = vmatpush1.msra.mxu0 0.0
  %1846 = vmatprep.subr.mxu0 0.0
  %1847 = vmatpush1.msra.mxu0 0.0
  %1848 = vmatprep.subr.mxu0 0.0
  %1849 = vmatpush1.msra.mxu0 0.0
  %1850 = vmatprep.subr.mxu0 0.0
  %1851 = vmatpush1.msra.mxu0 0.0
  %1852 = vmatprep.subr.mxu0 0.0
  %1853 = vmatpush1.msra.mxu0 0.0
  %1854 = vmatprep.subr.mxu0 0.0
  %1855 = vmatpush1.msra.mxu0 0.0
  %1856 = vmatprep.subr.mxu0 0.0
  %1857 = vmatpush1.msra.mxu0 0.0
  %1858 = vmatprep.subr.mxu0 0.0
  %1859 = vmatpush1.msra.mxu0 0.0
  %1860 = vmatprep.subr.mxu0 0.0
  %1861 = vmatpush1.msra.mxu0 0.0
  %1862 = vmatprep.subr.mxu0 0.0
  %1863 = vmatpush1.msra.mxu0 0.0
  %1864 = vmatprep.subr.mxu0 0.0
  %1865 = vmatpush1.msra.mxu0 0.0
  %1866 = vmatprep.subr.mxu0 0.0
  %1867 = vmatpush1.msra.mxu0 0.0
  %1868 = vmatprep.subr.mxu0 0.0
  %1869 = vmatpush1.msra.mxu0 0.0
  %1870 = vmatprep.subr.mxu0 0.0
  %1871 = vmatpush1.msra.mxu0 0.0
  %1872 = vmatprep.subr.mxu0 0.0
  %1873 = vmatpush1.msra.mxu0 0.0
  %1874 = vmatprep.subr.mxu0 0.0
  %1875 = vmatpush1.msra.mxu0 0.0
  %1876 = vmatprep.subr.mxu0 0.0
  %1877 = vmatpush1.msra.mxu0 0.0
  %1878 = vmatprep.subr.mxu0 0.0
  %1879 = vmatpush1.msra.mxu0 0.0
  %1880 = vmatprep.subr.mxu0 0.0
  %1881 = vmatpush1.msra.mxu0 0.0
  %1882 = vmatprep.subr.mxu0 0.0
  %1883 = vmatpush1.msra.mxu0 0.0
  %1884 = vmatprep.subr.mxu0 0.0
  %1885 = vmatpush1.msra.mxu0 0.0
  %1886 = vmatprep.subr.mxu0 0.0
  %1887 = vmatpush1.msra.mxu0 0.0
  %1888 = vmatprep.mubr.f32.mxu0 0.0
  %1889 = vmatmul.mubr.f32.gmra.mrb[0].mxu0 %v1822
  %v1890 = vpop.f32.mrb[0].mxu0
  %v1891 = vadd.f32 0.0, %v1890
  %v1892 = vpop.f32.mrb[0].mxu0
  %1893 = vdwg.mxu0
  %v1894 = vadd.f32 %v1816, %v1891
  %v1895 = vxor.u32 %v1894, 2147483648
  %v1896 = vmul.f32 %v1895, 1.442695
  %v1897 = vpow.pop %v1896
  %v1898 = vadd.f32 %v1897, 1.0
  %v1899 = vrcp.pop %v1898
  %v1900 = vmul.f32 1.0, %v1899
  %v1901 = vtanh.pop %v1894
  %v1902 = vmul.f32 %v1900, %v1559
  %1904 = vrot.lane.b32.xlu0 %v1901, 64
  %v1905 = vpop.permute.xlu0 %1904
  %v1907 = vmul.f32 %v1900, %v1905
  %1909 = vrot.lane.b32.xlu0 %v1907, 32
  %v1910 = vpop.permute.xlu0 %1909
  %v1912 = vadd.f32 %v1902, %v1910
  %v1913 = vtanh.pop %v1912
  %1915 = vrot.lane.b32.xlu0 %v1913, 64
  %v1916 = vpop.permute.xlu0 %1915
  %v1918 = vmul.f32 %v1900, %v1916
  %v1919 = vmax.f32 %v1918, 0.0
  %1921 = vrot.lane.b32.xlu0 %v1919, 32
  %v1922 = vpop.permute.xlu0 %1921
  %v1923 = vsel %vm233, %v1922, 0
  %1925 = vmatprep.subr.mxu0 0.0
  %1926 = vmatpush1.msra.mxu0 %v67
  %1927 = vmatprep.subr.mxu0 0.0
  %1928 = vmatpush1.msra.mxu0 %v68
  %1929 = vmatprep.subr.mxu0 0.0
  %1930 = vmatpush1.msra.mxu0 %v69
  %1931 = vmatprep.subr.mxu0 0.0
  %1932 = vmatpush1.msra.mxu0 %v70
  %1933 = vmatprep.subr.mxu0 0.0
  %1934 = vmatpush1.msra.mxu0 0.0
  %1935 = vmatprep.subr.mxu0 0.0
  %1936 = vmatpush1.msra.mxu0 0.0
  %1937 = vmatprep.subr.mxu0 0.0
  %1938 = vmatpush1.msra.mxu0 0.0
  %1939 = vmatprep.subr.mxu0 0.0
  %1940 = vmatpush1.msra.mxu0 0.0
  %1941 = vmatprep.subr.mxu0 0.0
  %1942 = vmatpush1.msra.mxu0 0.0
  %1943 = vmatprep.subr.mxu0 0.0
  %1944 = vmatpush1.msra.mxu0 0.0
  %1945 = vmatprep.subr.mxu0 0.0
  %1946 = vmatpush1.msra.mxu0 0.0
  %1947 = vmatprep.subr.mxu0 0.0
  %1948 = vmatpush1.msra.mxu0 0.0
  %1949 = vmatprep.subr.mxu0 0.0
  %1950 = vmatpush1.msra.mxu0 0.0
  %1951 = vmatprep.subr.mxu0 0.0
  %1952 = vmatpush1.msra.mxu0 0.0
  %1953 = vmatprep.subr.mxu0 0.0
  %1954 = vmatpush1.msra.mxu0 0.0
  %1955 = vmatprep.subr.mxu0 0.0
  %1956 = vmatpush1.msra.mxu0 0.0
  %1957 = vmatprep.subr.mxu0 0.0
  %1958 = vmatpush1.msra.mxu0 0.0
  %1959 = vmatprep.subr.mxu0 0.0
  %1960 = vmatpush1.msra.mxu0 0.0
  %1961 = vmatprep.subr.mxu0 0.0
  %1962 = vmatpush1.msra.mxu0 0.0
  %1963 = vmatprep.subr.mxu0 0.0
  %1964 = vmatpush1.msra.mxu0 0.0
  %1965 = vmatprep.subr.mxu0 0.0
  %1966 = vmatpush1.msra.mxu0 0.0
  %1967 = vmatprep.subr.mxu0 0.0
  %1968 = vmatpush1.msra.mxu0 0.0
  %1969 = vmatprep.subr.mxu0 0.0
  %1970 = vmatpush1.msra.mxu0 0.0
  %1971 = vmatprep.subr.mxu0 0.0
  %1972 = vmatpush1.msra.mxu0 0.0
  %1973 = vmatprep.subr.mxu0 0.0
  %1974 = vmatpush1.msra.mxu0 0.0
  %1975 = vmatprep.subr.mxu0 0.0
  %1976 = vmatpush1.msra.mxu0 0.0
  %1977 = vmatprep.subr.mxu0 0.0
  %1978 = vmatpush1.msra.mxu0 0.0
  %1979 = vmatprep.subr.mxu0 0.0
  %1980 = vmatpush1.msra.mxu0 0.0
  %1981 = vmatprep.subr.mxu0 0.0
  %1982 = vmatpush1.msra.mxu0 0.0
  %1983 = vmatprep.subr.mxu0 0.0
  %1984 = vmatpush1.msra.mxu0 0.0
  %1985 = vmatprep.subr.mxu0 0.0
  %1986 = vmatpush1.msra.mxu0 0.0
  %1987 = vmatprep.subr.mxu0 0.0
  %1988 = vmatpush1.msra.mxu0 0.0
  %1989 = vmatprep.mubr.f32.mxu0 0.0
  %1990 = vmatmul.mubr.f32.gmra.mrb[0].mxu0 %v1923
  %v1991 = vpop.f32.mrb[0].mxu0
  %v1992 = vadd.f32 0.0, %v1991
  %v1993 = vpop.f32.mrb[0].mxu0
  %1994 = vdwg.mxu0
  %v1995 = vadd.f32 %v1642, %v1992
  %1997 = vrot.lane.b32.xlu0 %v1742, 32
  %v1998 = vpop.permute.xlu0 %1997
  %v1999 = vsel %vm233, %v1998, 0
  %2001 = vmatprep.subr.mxu0 0.0
  %2002 = vmatpush1.msra.mxu0 %v38
  %2003 = vmatprep.subr.mxu0 0.0
  %2004 = vmatpush1.msra.mxu0 %v39
  %2005 = vmatprep.subr.mxu0 0.0
  %2006 = vmatpush1.msra.mxu0 %v40
  %2007 = vmatprep.subr.mxu0 0.0
  %2008 = vmatpush1.msra.mxu0 %v41
  %2009 = vmatprep.subr.mxu0 0.0
  %2010 = vmatpush1.msra.mxu0 0.0
  %2011 = vmatprep.subr.mxu0 0.0
  %2012 = vmatpush1.msra.mxu0 0.0
  %2013 = vmatprep.subr.mxu0 0.0
  %2014 = vmatpush1.msra.mxu0 0.0
  %2015 = vmatprep.subr.mxu0 0.0
  %2016 = vmatpush1.msra.mxu0 0.0
  %2017 = vmatprep.subr.mxu0 0.0
  %2018 = vmatpush1.msra.mxu0 0.0
  %2019 = vmatprep.subr.mxu0 0.0
  %2020 = vmatpush1.msra.mxu0 0.0
  %2021 = vmatprep.subr.mxu0 0.0
  %2022 = vmatpush1.msra.mxu0 0.0
  %2023 = vmatprep.subr.mxu0 0.0
  %2024 = vmatpush1.msra.mxu0 0.0
  %2025 = vmatprep.subr.mxu0 0.0
  %2026 = vmatpush1.msra.mxu0 0.0
  %2027 = vmatprep.subr.mxu0 0.0
  %2028 = vmatpush1.msra.mxu0 0.0
  %2029 = vmatprep.subr.mxu0 0.0
  %2030 = vmatpush1.msra.mxu0 0.0
  %2031 = vmatprep.subr.mxu0 0.0
  %2032 = vmatpush1.msra.mxu0 0.0
  %2033 = vmatprep.subr.mxu0 0.0
  %2034 = vmatpush1.msra.mxu0 0.0
  %2035 = vmatprep.subr.mxu0 0.0
  %2036 = vmatpush1.msra.mxu0 0.0
  %2037 = vmatprep.subr.mxu0 0.0
  %2038 = vmatpush1.msra.mxu0 0.0
  %2039 = vmatprep.subr.mxu0 0.0
  %2040 = vmatpush1.msra.mxu0 0.0
  %2041 = vmatprep.subr.mxu0 0.0
  %2042 = vmatpush1.msra.mxu0 0.0
  %2043 = vmatprep.subr.mxu0 0.0
  %2044 = vmatpush1.msra.mxu0 0.0
  %2045 = vmatprep.subr.mxu0 0.0
  %2046 = vmatpush1.msra.mxu0 0.0
  %2047 = vmatprep.subr.mxu0 0.0
  %2048 = vmatpush1.msra.mxu0 0.0
  %2049 = vmatprep.subr.mxu0 0.0
  %2050 = vmatpush1.msra.mxu0 0.0
  %2051 = vmatprep.subr.mxu0 0.0
  %2052 = vmatpush1.msra.mxu0 0.0
  %2053 = vmatprep.subr.mxu0 0.0
  %2054 = vmatpush1.msra.mxu0 0.0
  %2055 = vmatprep.subr.mxu0 0.0
  %2056 = vmatpush1.msra.mxu0 0.0
  %2057 = vmatprep.subr.mxu0 0.0
  %2058 = vmatpush1.msra.mxu0 0.0
  %2059 = vmatprep.subr.mxu0 0.0
  %2060 = vmatpush1.msra.mxu0 0.0
  %2061 = vmatprep.subr.mxu0 0.0
  %2062 = vmatpush1.msra.mxu0 0.0
  %2063 = vmatprep.subr.mxu0 0.0
  %2064 = vmatpush1.msra.mxu0 0.0
  %2065 = vmatprep.mubr.f32.mxu0 0.0
  %2066 = vmatmul.mubr.f32.gmra.mrb[0].mxu0 %v1999
  %v2067 = vpop.f32.mrb[0].mxu0
  %v2068 = vadd.f32 0.0, %v2067
  %v2069 = vpop.f32.mrb[0].mxu0
  %2070 = vdwg.mxu0
  %v2071 = vadd.f32 %v220, %v2068
  %v2072 = vxor.u32 %v2071, 2147483648
  %v2073 = vmul.f32 %v2072, 1.442695
  %v2074 = vpow.pop %v2073
  %v2075 = vadd.f32 %v2074, 1.0
  %v2076 = vrcp.pop %v2075
  %v2077 = vmul.f32 1.0, %v2076
  %v2078 = vtanh.pop %v2071
  %v2079 = vmul.f32 %v2077, %v1736
  %2081 = vrot.lane.b32.xlu0 %v2078, 64
  %v2082 = vpop.permute.xlu0 %2081
  %v2084 = vmul.f32 %v2077, %v2082
  %2086 = vrot.lane.b32.xlu0 %v2084, 32
  %v2087 = vpop.permute.xlu0 %2086
  %v2089 = vadd.f32 %v2079, %v2087
  %v2090 = vtanh.pop %v2089
  %2092 = vrot.lane.b32.xlu0 %v2090, 64
  %v2093 = vpop.permute.xlu0 %2092
  %v2095 = vmul.f32 %v2077, %v2093
  %v2096 = vmax.f32 %v2095, 0.0
  %2098 = vrot.lane.b32.xlu0 %v2096, 32
  %v2099 = vpop.permute.xlu0 %2098
  %v2100 = vsel %vm233, %v2099, 0
  %2102 = vmatprep.subr.mxu0 0.0
  %2103 = vmatpush1.msra.mxu0 %v46
  %2104 = vmatprep.subr.mxu0 0.0
  %2105 = vmatpush1.msra.mxu0 %v47
  %2106 = vmatprep.subr.mxu0 0.0
  %2107 = vmatpush1.msra.mxu0 %v48
  %2108 = vmatprep.subr.mxu0 0.0
  %2109 = vmatpush1.msra.mxu0 %v49
  %2110 = vmatprep.subr.mxu0 0.0
  %2111 = vmatpush1.msra.mxu0 0.0
  %2112 = vmatprep.subr.mxu0 0.0
  %2113 = vmatpush1.msra.mxu0 0.0
  %2114 = vmatprep.subr.mxu0 0.0
  %2115 = vmatpush1.msra.mxu0 0.0
  %2116 = vmatprep.subr.mxu0 0.0
  %2117 = vmatpush1.msra.mxu0 0.0
  %2118 = vmatprep.subr.mxu0 0.0
  %2119 = vmatpush1.msra.mxu0 0.0
  %2120 = vmatprep.subr.mxu0 0.0
  %2121 = vmatpush1.msra.mxu0 0.0
  %2122 = vmatprep.subr.mxu0 0.0
  %2123 = vmatpush1.msra.mxu0 0.0
  %2124 = vmatprep.subr.mxu0 0.0
  %2125 = vmatpush1.msra.mxu0 0.0
  %2126 = vmatprep.subr.mxu0 0.0
  %2127 = vmatpush1.msra.mxu0 0.0
  %2128 = vmatprep.subr.mxu0 0.0
  %2129 = vmatpush1.msra.mxu0 0.0
  %2130 = vmatprep.subr.mxu0 0.0
  %2131 = vmatpush1.msra.mxu0 0.0
  %2132 = vmatprep.subr.mxu0 0.0
  %2133 = vmatpush1.msra.mxu0 0.0
  %2134 = vmatprep.subr.mxu0 0.0
  %2135 = vmatpush1.msra.mxu0 0.0
  %2136 = vmatprep.subr.mxu0 0.0
  %2137 = vmatpush1.msra.mxu0 0.0
  %2138 = vmatprep.subr.mxu0 0.0
  %2139 = vmatpush1.msra.mxu0 0.0
  %2140 = vmatprep.subr.mxu0 0.0
  %2141 = vmatpush1.msra.mxu0 0.0
  %2142 = vmatprep.subr.mxu0 0.0
  %2143 = vmatpush1.msra.mxu0 0.0
  %2144 = vmatprep.subr.mxu0 0.0
  %2145 = vmatpush1.msra.mxu0 0.0
  %2146 = vmatprep.subr.mxu0 0.0
  %2147 = vmatpush1.msra.mxu0 0.0
  %2148 = vmatprep.subr.mxu0 0.0
  %2149 = vmatpush1.msra.mxu0 0.0
  %2150 = vmatprep.subr.mxu0 0.0
  %2151 = vmatpush1.msra.mxu0 0.0
  %2152 = vmatprep.subr.mxu0 0.0
  %2153 = vmatpush1.msra.mxu0 0.0
  %2154 = vmatprep.subr.mxu0 0.0
  %2155 = vmatpush1.msra.mxu0 0.0
  %2156 = vmatprep.subr.mxu0 0.0
  %2157 = vmatpush1.msra.mxu0 0.0
  %2158 = vmatprep.subr.mxu0 0.0
  %2159 = vmatpush1.msra.mxu0 0.0
  %2160 = vmatprep.subr.mxu0 0.0
  %2161 = vmatpush1.msra.mxu0 0.0
  %2162 = vmatprep.subr.mxu0 0.0
  %2163 = vmatpush1.msra.mxu0 0.0
  %2164 = vmatprep.subr.mxu0 0.0
  %2165 = vmatpush1.msra.mxu0 0.0
  %2166 = vmatprep.mubr.f32.mxu0 0.0
  %2167 = vmatmul.mubr.f32.gmra.mrb[0].mxu0 %v2100
  %v2168 = vpop.f32.mrb[0].mxu0
  %v2169 = vadd.f32 %v337, %v2168
  %v2170 = vpop.f32.mrb[0].mxu0
  %2171 = vdwg.mxu0
  %2173 = vrot.lane.b32.xlu0 %v1918, 32
  %v2174 = vpop.permute.xlu0 %2173
  %v2175 = vsel %vm233, %v2174, 0
  %2177 = vmatprep.subr.mxu0 0.0
  %2178 = vmatpush1.msra.mxu0 %v42
  %2179 = vmatprep.subr.mxu0 0.0
  %2180 = vmatpush1.msra.mxu0 %v43
  %2181 = vmatprep.subr.mxu0 0.0
  %2182 = vmatpush1.msra.mxu0 %v44
  %2183 = vmatprep.subr.mxu0 0.0
  %2184 = vmatpush1.msra.mxu0 %v45
  %2185 = vmatprep.subr.mxu0 0.0
  %2186 = vmatpush1.msra.mxu0 0.0
  %2187 = vmatprep.subr.mxu0 0.0
  %2188 = vmatpush1.msra.mxu0 0.0
  %2189 = vmatprep.subr.mxu0 0.0
  %2190 = vmatpush1.msra.mxu0 0.0
  %2191 = vmatprep.subr.mxu0 0.0
  %2192 = vmatpush1.msra.mxu0 0.0
  %2193 = vmatprep.subr.mxu0 0.0
  %2194 = vmatpush1.msra.mxu0 0.0
  %2195 = vmatprep.subr.mxu0 0.0
  %2196 = vmatpush1.msra.mxu0 0.0
  %2197 = vmatprep.subr.mxu0 0.0
  %2198 = vmatpush1.msra.mxu0 0.0
  %2199 = vmatprep.subr.mxu0 0.0
  %2200 = vmatpush1.msra.mxu0 0.0
  %2201 = vmatprep.subr.mxu0 0.0
  %2202 = vmatpush1.msra.mxu0 0.0
  %2203 = vmatprep.subr.mxu0 0.0
  %2204 = vmatpush1.msra.mxu0 0.0
  %2205 = vmatprep.subr.mxu0 0.0
  %2206 = vmatpush1.msra.mxu0 0.0
  %2207 = vmatprep.subr.mxu0 0.0
  %2208 = vmatpush1.msra.mxu0 0.0
  %2209 = vmatprep.subr.mxu0 0.0
  %2210 = vmatpush1.msra.mxu0 0.0
  %2211 = vmatprep.subr.mxu0 0.0
  %2212 = vmatpush1.msra.mxu0 0.0
  %2213 = vmatprep.subr.mxu0 0.0
  %2214 = vmatpush1.msra.mxu0 0.0
  %2215 = vmatprep.subr.mxu0 0.0
  %2216 = vmatpush1.msra.mxu0 0.0
  %2217 = vmatprep.subr.mxu0 0.0
  %2218 = vmatpush1.msra.mxu0 0.0
  %2219 = vmatprep.subr.mxu0 0.0
  %2220 = vmatpush1.msra.mxu0 0.0
  %2221 = vmatprep.subr.mxu0 0.0
  %2222 = vmatpush1.msra.mxu0 0.0
  %2223 = vmatprep.subr.mxu0 0.0
  %2224 = vmatpush1.msra.mxu0 0.0
  %2225 = vmatprep.subr.mxu0 0.0
  %2226 = vmatpush1.msra.mxu0 0.0
  %2227 = vmatprep.subr.mxu0 0.0
  %2228 = vmatpush1.msra.mxu0 0.0
  %2229 = vmatprep.subr.mxu0 0.0
  %2230 = vmatpush1.msra.mxu0 0.0
  %2231 = vmatprep.subr.mxu0 0.0
  %2232 = vmatpush1.msra.mxu0 0.0
  %2233 = vmatprep.subr.mxu0 0.0
  %2234 = vmatpush1.msra.mxu0 0.0
  %2235 = vmatprep.subr.mxu0 0.0
  %2236 = vmatpush1.msra.mxu0 0.0
  %2237 = vmatprep.subr.mxu0 0.0
  %2238 = vmatpush1.msra.mxu0 0.0
  %2239 = vmatprep.subr.mxu0 0.0
  %2240 = vmatpush1.msra.mxu0 0.0
  %2241 = vmatprep.mubr.f32.mxu0 0.0
  %2242 = vmatmul.mubr.f32.gmra.mrb[0].mxu0 %v2175
  %v2243 = vpop.f32.mrb[0].mxu0
  %v2244 = vadd.f32 0.0, %v2243
  %v2245 = vpop.f32.mrb[0].mxu0
  %2246 = vdwg.mxu0
  %v2247 = vadd.f32 %v2169, %v2244
  %v2248 = vxor.u32 %v2247, 2147483648
  %v2249 = vmul.f32 %v2248, 1.442695
  %v2250 = vpow.pop %v2249
  %v2251 = vadd.f32 %v2250, 1.0
  %v2252 = vrcp.pop %v2251
  %v2253 = vmul.f32 1.0, %v2252
  %v2254 = vtanh.pop %v2247
  %v2255 = vmul.f32 %v2253, %v1912
  %2257 = vrot.lane.b32.xlu0 %v2254, 64
  %v2258 = vpop.permute.xlu0 %2257
  %v2260 = vmul.f32 %v2253, %v2258
  %2262 = vrot.lane.b32.xlu0 %v2260, 32
  %v2263 = vpop.permute.xlu0 %2262
  %v2265 = vadd.f32 %v2255, %v2263
  %v2266 = vtanh.pop %v2265
  %2268 = vrot.lane.b32.xlu0 %v2266, 64
  %v2269 = vpop.permute.xlu0 %2268
  %v2271 = vmul.f32 %v2253, %v2269
  %v2272 = vmax.f32 %v2271, 0.0
  %2274 = vrot.lane.b32.xlu0 %v2272, 32
  %v2275 = vpop.permute.xlu0 %2274
  %v2276 = vsel %vm233, %v2275, 0
  %2278 = vmatprep.subr.mxu0 0.0
  %2279 = vmatpush1.msra.mxu0 %v71
  %2280 = vmatprep.subr.mxu0 0.0
  %2281 = vmatpush1.msra.mxu0 %v72
  %2282 = vmatprep.subr.mxu0 0.0
  %2283 = vmatpush1.msra.mxu0 %v73
  %2284 = vmatprep.subr.mxu0 0.0
  %2285 = vmatpush1.msra.mxu0 %v74
  %2286 = vmatprep.subr.mxu0 0.0
  %2287 = vmatpush1.msra.mxu0 0.0
  %2288 = vmatprep.subr.mxu0 0.0
  %2289 = vmatpush1.msra.mxu0 0.0
  %2290 = vmatprep.subr.mxu0 0.0
  %2291 = vmatpush1.msra.mxu0 0.0
  %2292 = vmatprep.subr.mxu0 0.0
  %2293 = vmatpush1.msra.mxu0 0.0
  %2294 = vmatprep.subr.mxu0 0.0
  %2295 = vmatpush1.msra.mxu0 0.0
  %2296 = vmatprep.subr.mxu0 0.0
  %2297 = vmatpush1.msra.mxu0 0.0
  %2298 = vmatprep.subr.mxu0 0.0
  %2299 = vmatpush1.msra.mxu0 0.0
  %2300 = vmatprep.subr.mxu0 0.0
  %2301 = vmatpush1.msra.mxu0 0.0
  %2302 = vmatprep.subr.mxu0 0.0
  %2303 = vmatpush1.msra.mxu0 0.0
  %2304 = vmatprep.subr.mxu0 0.0
  %2305 = vmatpush1.msra.mxu0 0.0
  %2306 = vmatprep.subr.mxu0 0.0
  %2307 = vmatpush1.msra.mxu0 0.0
  %2308 = vmatprep.subr.mxu0 0.0
  %2309 = vmatpush1.msra.mxu0 0.0
  %2310 = vmatprep.subr.mxu0 0.0
  %2311 = vmatpush1.msra.mxu0 0.0
  %2312 = vmatprep.subr.mxu0 0.0
  %2313 = vmatpush1.msra.mxu0 0.0
  %2314 = vmatprep.subr.mxu0 0.0
  %2315 = vmatpush1.msra.mxu0 0.0
  %2316 = vmatprep.subr.mxu0 0.0
  %2317 = vmatpush1.msra.mxu0 0.0
  %2318 = vmatprep.subr.mxu0 0.0
  %2319 = vmatpush1.msra.mxu0 0.0
  %2320 = vmatprep.subr.mxu0 0.0
  %2321 = vmatpush1.msra.mxu0 0.0
  %2322 = vmatprep.subr.mxu0 0.0
  %2323 = vmatpush1.msra.mxu0 0.0
  %2324 = vmatprep.subr.mxu0 0.0
  %2325 = vmatpush1.msra.mxu0 0.0
  %2326 = vmatprep.subr.mxu0 0.0
  %2327 = vmatpush1.msra.mxu0 0.0
  %2328 = vmatprep.subr.mxu0 0.0
  %2329 = vmatpush1.msra.mxu0 0.0
  %2330 = vmatprep.subr.mxu0 0.0
  %2331 = vmatpush1.msra.mxu0 0.0
  %2332 = vmatprep.subr.mxu0 0.0
  %2333 = vmatpush1.msra.mxu0 0.0
  %2334 = vmatprep.subr.mxu0 0.0
  %2335 = vmatpush1.msra.mxu0 0.0
  %2336 = vmatprep.subr.mxu0 0.0
  %2337 = vmatpush1.msra.mxu0 0.0
  %2338 = vmatprep.subr.mxu0 0.0
  %2339 = vmatpush1.msra.mxu0 0.0
  %2340 = vmatprep.subr.mxu0 0.0
  %2341 = vmatpush1.msra.mxu0 0.0
  %2342 = vmatprep.mubr.f32.mxu0 0.0
  %2343 = vmatmul.mubr.f32.gmra.mrb[0].mxu0 %v2276
  %v2344 = vpop.f32.mrb[0].mxu0
  %v2345 = vadd.f32 0.0, %v2344
  %v2346 = vpop.f32.mrb[0].mxu0
  %2347 = vdwg.mxu0
  %v2348 = vadd.f32 %v1995, %v2345
  %2350 = vrot.lane.b32.xlu0 %v2095, 32
  %v2351 = vpop.permute.xlu0 %2350
  %v2352 = vsel %vm233, %v2351, 0
  %2354 = vmatprep.subr.mxu0 0.0
  %2355 = vmatpush1.msra.mxu0 %v38
  %2356 = vmatprep.subr.mxu0 0.0
  %2357 = vmatpush1.msra.mxu0 %v39
  %2358 = vmatprep.subr.mxu0 0.0
  %2359 = vmatpush1.msra.mxu0 %v40
  %2360 = vmatprep.subr.mxu0 0.0
  %2361 = vmatpush1.msra.mxu0 %v41
  %2362 = vmatprep.subr.mxu0 0.0
  %2363 = vmatpush1.msra.mxu0 0.0
  %2364 = vmatprep.subr.mxu0 0.0
  %2365 = vmatpush1.msra.mxu0 0.0
  %2366 = vmatprep.subr.mxu0 0.0
  %2367 = vmatpush1.msra.mxu0 0.0
  %2368 = vmatprep.subr.mxu0 0.0
  %2369 = vmatpush1.msra.mxu0 0.0
  %2370 = vmatprep.subr.mxu0 0.0
  %2371 = vmatpush1.msra.mxu0 0.0
  %2372 = vmatprep.subr.mxu0 0.0
  %2373 = vmatpush1.msra.mxu0 0.0
  %2374 = vmatprep.subr.mxu0 0.0
  %2375 = vmatpush1.msra.mxu0 0.0
  %2376 = vmatprep.subr.mxu0 0.0
  %2377 = vmatpush1.msra.mxu0 0.0
  %2378 = vmatprep.subr.mxu0 0.0
  %2379 = vmatpush1.msra.mxu0 0.0
  %2380 = vmatprep.subr.mxu0 0.0
  %2381 = vmatpush1.msra.mxu0 0.0
  %2382 = vmatprep.subr.mxu0 0.0
  %2383 = vmatpush1.msra.mxu0 0.0
  %2384 = vmatprep.subr.mxu0 0.0
  %2385 = vmatpush1.msra.mxu0 0.0
  %2386 = vmatprep.subr.mxu0 0.0
  %2387 = vmatpush1.msra.mxu0 0.0
  %2388 = vmatprep.subr.mxu0 0.0
  %2389 = vmatpush1.msra.mxu0 0.0
  %2390 = vmatprep.subr.mxu0 0.0
  %2391 = vmatpush1.msra.mxu0 0.0
  %2392 = vmatprep.subr.mxu0 0.0
  %2393 = vmatpush1.msra.mxu0 0.0
  %2394 = vmatprep.subr.mxu0 0.0
  %2395 = vmatpush1.msra.mxu0 0.0
  %2396 = vmatprep.subr.mxu0 0.0
  %2397 = vmatpush1.msra.mxu0 0.0
  %2398 = vmatprep.subr.mxu0 0.0
  %2399 = vmatpush1.msra.mxu0 0.0
  %2400 = vmatprep.subr.mxu0 0.0
  %2401 = vmatpush1.msra.mxu0 0.0
  %2402 = vmatprep.subr.mxu0 0.0
  %2403 = vmatpush1.msra.mxu0 0.0
  %2404 = vmatprep.subr.mxu0 0.0
  %2405 = vmatpush1.msra.mxu0 0.0
  %2406 = vmatprep.subr.mxu0 0.0
  %2407 = vmatpush1.msra.mxu0 0.0
  %2408 = vmatprep.subr.mxu0 0.0
  %2409 = vmatpush1.msra.mxu0 0.0
  %2410 = vmatprep.subr.mxu0 0.0
  %2411 = vmatpush1.msra.mxu0 0.0
  %2412 = vmatprep.subr.mxu0 0.0
  %2413 = vmatpush1.msra.mxu0 0.0
  %2414 = vmatprep.subr.mxu0 0.0
  %2415 = vmatpush1.msra.mxu0 0.0
  %2416 = vmatprep.subr.mxu0 0.0
  %2417 = vmatpush1.msra.mxu0 0.0
  %2418 = vmatprep.mubr.f32.mxu0 0.0
  %2419 = vmatmul.mubr.f32.gmra.mrb[0].mxu0 %v2352
  %v2420 = vpop.f32.mrb[0].mxu0
  %v2421 = vadd.f32 0.0, %v2420
  %v2422 = vpop.f32.mrb[0].mxu0
  %2423 = vdwg.mxu0
  %v2424 = vadd.f32 %v225, %v2421
  %v2425 = vxor.u32 %v2424, 2147483648
  %v2426 = vmul.f32 %v2425, 1.442695
  %v2427 = vpow.pop %v2426
  %v2428 = vadd.f32 %v2427, 1.0
  %v2429 = vrcp.pop %v2428
  %v2430 = vmul.f32 1.0, %v2429
  %v2431 = vtanh.pop %v2424
  %v2432 = vmul.f32 %v2430, %v2089
  %2434 = vrot.lane.b32.xlu0 %v2431, 64
  %v2435 = vpop.permute.xlu0 %2434
  %v2437 = vmul.f32 %v2430, %v2435
  %2439 = vrot.lane.b32.xlu0 %v2437, 32
  %v2440 = vpop.permute.xlu0 %2439
  %v2442 = vadd.f32 %v2432, %v2440
  %v2443 = vtanh.pop %v2442
  %2445 = vrot.lane.b32.xlu0 %v2443, 64
  %v2446 = vpop.permute.xlu0 %2445
  %v2448 = vmul.f32 %v2430, %v2446
  %v2449 = vmax.f32 %v2448, 0.0
  %2451 = vrot.lane.b32.xlu0 %v2449, 32
  %v2452 = vpop.permute.xlu0 %2451
  %v2453 = vsel %vm233, %v2452, 0
  %2455 = vmatprep.subr.mxu0 0.0
  %2456 = vmatpush1.msra.mxu0 %v46
  %2457 = vmatprep.subr.mxu0 0.0
  %2458 = vmatpush1.msra.mxu0 %v47
  %2459 = vmatprep.subr.mxu0 0.0
  %2460 = vmatpush1.msra.mxu0 %v48
  %2461 = vmatprep.subr.mxu0 0.0
  %2462 = vmatpush1.msra.mxu0 %v49
  %2463 = vmatprep.subr.mxu0 0.0
  %2464 = vmatpush1.msra.mxu0 0.0
  %2465 = vmatprep.subr.mxu0 0.0
  %2466 = vmatpush1.msra.mxu0 0.0
  %2467 = vmatprep.subr.mxu0 0.0
  %2468 = vmatpush1.msra.mxu0 0.0
  %2469 = vmatprep.subr.mxu0 0.0
  %2470 = vmatpush1.msra.mxu0 0.0
  %2471 = vmatprep.subr.mxu0 0.0
  %2472 = vmatpush1.msra.mxu0 0.0
  %2473 = vmatprep.subr.mxu0 0.0
  %2474 = vmatpush1.msra.mxu0 0.0
  %2475 = vmatprep.subr.mxu0 0.0
  %2476 = vmatpush1.msra.mxu0 0.0
  %2477 = vmatprep.subr.mxu0 0.0
  %2478 = vmatpush1.msra.mxu0 0.0
  %2479 = vmatprep.subr.mxu0 0.0
  %2480 = vmatpush1.msra.mxu0 0.0
  %2481 = vmatprep.subr.mxu0 0.0
  %2482 = vmatpush1.msra.mxu0 0.0
  %2483 = vmatprep.subr.mxu0 0.0
  %2484 = vmatpush1.msra.mxu0 0.0
  %2485 = vmatprep.subr.mxu0 0.0
  %2486 = vmatpush1.msra.mxu0 0.0
  %2487 = vmatprep.subr.mxu0 0.0
  %2488 = vmatpush1.msra.mxu0 0.0
  %2489 = vmatprep.subr.mxu0 0.0
  %2490 = vmatpush1.msra.mxu0 0.0
  %2491 = vmatprep.subr.mxu0 0.0
  %2492 = vmatpush1.msra.mxu0 0.0
  %2493 = vmatprep.subr.mxu0 0.0
  %2494 = vmatpush1.msra.mxu0 0.0
  %2495 = vmatprep.subr.mxu0 0.0
  %2496 = vmatpush1.msra.mxu0 0.0
  %2497 = vmatprep.subr.mxu0 0.0
  %2498 = vmatpush1.msra.mxu0 0.0
  %2499 = vmatprep.subr.mxu0 0.0
  %2500 = vmatpush1.msra.mxu0 0.0
  %2501 = vmatprep.subr.mxu0 0.0
  %2502 = vmatpush1.msra.mxu0 0.0
  %2503 = vmatprep.subr.mxu0 0.0
  %2504 = vmatpush1.msra.mxu0 0.0
  %2505 = vmatprep.subr.mxu0 0.0
  %2506 = vmatpush1.msra.mxu0 0.0
  %2507 = vmatprep.subr.mxu0 0.0
  %2508 = vmatpush1.msra.mxu0 0.0
  %2509 = vmatprep.subr.mxu0 0.0
  %2510 = vmatpush1.msra.mxu0 0.0
  %2511 = vmatprep.subr.mxu0 0.0
  %2512 = vmatpush1.msra.mxu0 0.0
  %2513 = vmatprep.subr.mxu0 0.0
  %2514 = vmatpush1.msra.mxu0 0.0
  %2515 = vmatprep.subr.mxu0 0.0
  %2516 = vmatpush1.msra.mxu0 0.0
  %2517 = vmatprep.subr.mxu0 0.0
  %2518 = vmatpush1.msra.mxu0 0.0
  %2519 = vmatprep.mubr.f32.mxu0 0.0
  %2520 = vmatmul.mubr.f32.gmra.mrb[0].mxu0 %v2453
  %v2521 = vpop.f32.mrb[0].mxu0
  %v2522 = vadd.f32 %v337, %v2521
  %v2523 = vpop.f32.mrb[0].mxu0
  %2524 = vdwg.mxu0
  %2526 = vrot.lane.b32.xlu0 %v2271, 32
  %v2527 = vpop.permute.xlu0 %2526
  %v2528 = vsel %vm233, %v2527, 0
  %2530 = vmatprep.subr.mxu0 0.0
  %2531 = vmatpush1.msra.mxu0 %v42
  %2532 = vmatprep.subr.mxu0 0.0
  %2533 = vmatpush1.msra.mxu0 %v43
  %2534 = vmatprep.subr.mxu0 0.0
  %2535 = vmatpush1.msra.mxu0 %v44
  %2536 = vmatprep.subr.mxu0 0.0
  %2537 = vmatpush1.msra.mxu0 %v45
  %2538 = vmatprep.subr.mxu0 0.0
  %2539 = vmatpush1.msra.mxu0 0.0
  %2540 = vmatprep.subr.mxu0 0.0
  %2541 = vmatpush1.msra.mxu0 0.0
  %2542 = vmatprep.subr.mxu0 0.0
  %2543 = vmatpush1.msra.mxu0 0.0
  %2544 = vmatprep.subr.mxu0 0.0
  %2545 = vmatpush1.msra.mxu0 0.0
  %2546 = vmatprep.subr.mxu0 0.0
  %2547 = vmatpush1.msra.mxu0 0.0
  %2548 = vmatprep.subr.mxu0 0.0
  %2549 = vmatpush1.msra.mxu0 0.0
  %2550 = vmatprep.subr.mxu0 0.0
  %2551 = vmatpush1.msra.mxu0 0.0
  %2552 = vmatprep.subr.mxu0 0.0
  %2553 = vmatpush1.msra.mxu0 0.0
  %2554 = vmatprep.subr.mxu0 0.0
  %2555 = vmatpush1.msra.mxu0 0.0
  %2556 = vmatprep.subr.mxu0 0.0
  %2557 = vmatpush1.msra.mxu0 0.0
  %2558 = vmatprep.subr.mxu0 0.0
  %2559 = vmatpush1.msra.mxu0 0.0
  %2560 = vmatprep.subr.mxu0 0.0
  %2561 = vmatpush1.msra.mxu0 0.0
  %2562 = vmatprep.subr.mxu0 0.0
  %2563 = vmatpush1.msra.mxu0 0.0
  %2564 = vmatprep.subr.mxu0 0.0
  %2565 = vmatpush1.msra.mxu0 0.0
  %2566 = vmatprep.subr.mxu0 0.0
  %2567 = vmatpush1.msra.mxu0 0.0
  %2568 = vmatprep.subr.mxu0 0.0
  %2569 = vmatpush1.msra.mxu0 0.0
  %2570 = vmatprep.subr.mxu0 0.0
  %2571 = vmatpush1.msra.mxu0 0.0
  %2572 = vmatprep.subr.mxu0 0.0
  %2573 = vmatpush1.msra.mxu0 0.0
  %2574 = vmatprep.subr.mxu0 0.0
  %2575 = vmatpush1.msra.mxu0 0.0
  %2576 = vmatprep.subr.mxu0 0.0
  %2577 = vmatpush1.msra.mxu0 0.0
  %2578 = vmatprep.subr.mxu0 0.0
  %2579 = vmatpush1.msra.mxu0 0.0
  %2580 = vmatprep.subr.mxu0 0.0
  %2581 = vmatpush1.msra.mxu0 0.0
  %2582 = vmatprep.subr.mxu0 0.0
  %2583 = vmatpush1.msra.mxu0 0.0
  %2584 = vmatprep.subr.mxu0 0.0
  %2585 = vmatpush1.msra.mxu0 0.0
  %2586 = vmatprep.subr.mxu0 0.0
  %2587 = vmatpush1.msra.mxu0 0.0
  %2588 = vmatprep.subr.mxu0 0.0
  %2589 = vmatpush1.msra.mxu0 0.0
  %2590 = vmatprep.subr.mxu0 0.0
  %2591 = vmatpush1.msra.mxu0 0.0
  %2592 = vmatprep.subr.mxu0 0.0
  %2593 = vmatpush1.msra.mxu0 0.0
  %2594 = vmatprep.mubr.f32.mxu0 0.0
  %2595 = vmatmul.mubr.f32.gmra.mrb[0].mxu0 %v2528
  %v2596 = vpop.f32.mrb[0].mxu0
  %v2597 = vadd.f32 0.0, %v2596
  %v2598 = vpop.f32.mrb[0].mxu0
  %2599 = vdwg.mxu0
  %v2600 = vadd.f32 %v2522, %v2597
  %v2601 = vxor.u32 %v2600, 2147483648
  %v2602 = vmul.f32 %v2601, 1.442695
  %v2603 = vpow.pop %v2602
  %v2604 = vadd.f32 %v2603, 1.0
  %v2605 = vrcp.pop %v2604
  %v2606 = vmul.f32 1.0, %v2605
  %v2607 = vtanh.pop %v2600
  %v2608 = vmul.f32 %v2606, %v2265
  %2610 = vrot.lane.b32.xlu0 %v2607, 64
  %v2611 = vpop.permute.xlu0 %2610
  %v2613 = vmul.f32 %v2606, %v2611
  %2615 = vrot.lane.b32.xlu0 %v2613, 32
  %v2616 = vpop.permute.xlu0 %2615
  %v2618 = vadd.f32 %v2608, %v2616
  %v2619 = vtanh.pop %v2618
  %2621 = vrot.lane.b32.xlu0 %v2619, 64
  %v2622 = vpop.permute.xlu0 %2621
  %v2624 = vmul.f32 %v2606, %v2622
  %v2625 = vmax.f32 %v2624, 0.0
  %2627 = vrot.lane.b32.xlu0 %v2625, 32
  %v2628 = vpop.permute.xlu0 %2627
  %v2629 = vsel %vm233, %v2628, 0
  %2631 = vmatprep.subr.mxu0 0.0
  %2632 = vmatpush1.msra.mxu0 %v75
  %2633 = vmatprep.subr.mxu0 0.0
  %2634 = vmatpush1.msra.mxu0 %v76
  %2635 = vmatprep.subr.mxu0 0.0
  %2636 = vmatpush1.msra.mxu0 %v77
  %2637 = vmatprep.subr.mxu0 0.0
  %2638 = vmatpush1.msra.mxu0 %v78
  %2639 = vmatprep.subr.mxu0 0.0
  %2640 = vmatpush1.msra.mxu0 0.0
  %2641 = vmatprep.subr.mxu0 0.0
  %2642 = vmatpush1.msra.mxu0 0.0
  %2643 = vmatprep.subr.mxu0 0.0
  %2644 = vmatpush1.msra.mxu0 0.0
  %2645 = vmatprep.subr.mxu0 0.0
  %2646 = vmatpush1.msra.mxu0 0.0
  %2647 = vmatprep.subr.mxu0 0.0
  %2648 = vmatpush1.msra.mxu0 0.0
  %2649 = vmatprep.subr.mxu0 0.0
  %2650 = vmatpush1.msra.mxu0 0.0
  %2651 = vmatprep.subr.mxu0 0.0
  %2652 = vmatpush1.msra.mxu0 0.0
  %2653 = vmatprep.subr.mxu0 0.0
  %2654 = vmatpush1.msra.mxu0 0.0
  %2655 = vmatprep.subr.mxu0 0.0
  %2656 = vmatpush1.msra.mxu0 0.0
  %2657 = vmatprep.subr.mxu0 0.0
  %2658 = vmatpush1.msra.mxu0 0.0
  %2659 = vmatprep.subr.mxu0 0.0
  %2660 = vmatpush1.msra.mxu0 0.0
  %2661 = vmatprep.subr.mxu0 0.0
  %2662 = vmatpush1.msra.mxu0 0.0
  %2663 = vmatprep.subr.mxu0 0.0
  %2664 = vmatpush1.msra.mxu0 0.0
  %2665 = vmatprep.subr.mxu0 0.0
  %2666 = vmatpush1.msra.mxu0 0.0
  %2667 = vmatprep.subr.mxu0 0.0
  %2668 = vmatpush1.msra.mxu0 0.0
  %2669 = vmatprep.subr.mxu0 0.0
  %2670 = vmatpush1.msra.mxu0 0.0
  %2671 = vmatprep.subr.mxu0 0.0
  %2672 = vmatpush1.msra.mxu0 0.0
  %2673 = vmatprep.subr.mxu0 0.0
  %2674 = vmatpush1.msra.mxu0 0.0
  %2675 = vmatprep.subr.mxu0 0.0
  %2676 = vmatpush1.msra.mxu0 0.0
  %2677 = vmatprep.subr.mxu0 0.0
  %2678 = vmatpush1.msra.mxu0 0.0
  %2679 = vmatprep.subr.mxu0 0.0
  %2680 = vmatpush1.msra.mxu0 0.0
  %2681 = vmatprep.subr.mxu0 0.0
  %2682 = vmatpush1.msra.mxu0 0.0
  %2683 = vmatprep.subr.mxu0 0.0
  %2684 = vmatpush1.msra.mxu0 0.0
  %2685 = vmatprep.subr.mxu0 0.0
  %2686 = vmatpush1.msra.mxu0 0.0
  %2687 = vmatprep.subr.mxu0 0.0
  %2688 = vmatpush1.msra.mxu0 0.0
  %2689 = vmatprep.subr.mxu0 0.0
  %2690 = vmatpush1.msra.mxu0 0.0
  %2691 = vmatprep.subr.mxu0 0.0
  %2692 = vmatpush1.msra.mxu0 0.0
  %2693 = vmatprep.subr.mxu0 0.0
  %2694 = vmatpush1.msra.mxu0 0.0
  %2695 = vmatprep.mubr.f32.mxu0 0.0
  %2696 = vmatmul.mubr.f32.gmra.mrb[0].mxu0 %v2629
  %v2697 = vpop.f32.mrb[0].mxu0
  %v2698 = vadd.f32 0.0, %v2697
  %v2699 = vpop.f32.mrb[0].mxu0
  %2700 = vdwg.mxu0
  %v2701 = vadd.f32 %v2348, %v2698
  %2703 = vrot.lane.b32.xlu0 %v2448, 32
  %v2704 = vpop.permute.xlu0 %2703
  %v2705 = vsel %vm233, %v2704, 0
  %2707 = vmatprep.subr.mxu0 0.0
  %2708 = vmatpush1.msra.mxu0 %v38
  %2709 = vmatprep.subr.mxu0 0.0
  %2710 = vmatpush1.msra.mxu0 %v39
  %2711 = vmatprep.subr.mxu0 0.0
  %2712 = vmatpush1.msra.mxu0 %v40
  %2713 = vmatprep.subr.mxu0 0.0
  %2714 = vmatpush1.msra.mxu0 %v41
  %2715 = vmatprep.subr.mxu0 0.0
  %2716 = vmatpush1.msra.mxu0 0.0
  %2717 = vmatprep.subr.mxu0 0.0
  %2718 = vmatpush1.msra.mxu0 0.0
  %2719 = vmatprep.subr.mxu0 0.0
  %2720 = vmatpush1.msra.mxu0 0.0
  %2721 = vmatprep.subr.mxu0 0.0
  %2722 = vmatpush1.msra.mxu0 0.0
  %2723 = vmatprep.subr.mxu0 0.0
  %2724 = vmatpush1.msra.mxu0 0.0
  %2725 = vmatprep.subr.mxu0 0.0
  %2726 = vmatpush1.msra.mxu0 0.0
  %2727 = vmatprep.subr.mxu0 0.0
  %2728 = vmatpush1.msra.mxu0 0.0
  %2729 = vmatprep.subr.mxu0 0.0
  %2730 = vmatpush1.msra.mxu0 0.0
  %2731 = vmatprep.subr.mxu0 0.0
  %2732 = vmatpush1.msra.mxu0 0.0
  %2733 = vmatprep.subr.mxu0 0.0
  %2734 = vmatpush1.msra.mxu0 0.0
  %2735 = vmatprep.subr.mxu0 0.0
  %2736 = vmatpush1.msra.mxu0 0.0
  %2737 = vmatprep.subr.mxu0 0.0
  %2738 = vmatpush1.msra.mxu0 0.0
  %2739 = vmatprep.subr.mxu0 0.0
  %2740 = vmatpush1.msra.mxu0 0.0
  %2741 = vmatprep.subr.mxu0 0.0
  %2742 = vmatpush1.msra.mxu0 0.0
  %2743 = vmatprep.subr.mxu0 0.0
  %2744 = vmatpush1.msra.mxu0 0.0
  %2745 = vmatprep.subr.mxu0 0.0
  %2746 = vmatpush1.msra.mxu0 0.0
  %2747 = vmatprep.subr.mxu0 0.0
  %2748 = vmatpush1.msra.mxu0 0.0
  %2749 = vmatprep.subr.mxu0 0.0
  %2750 = vmatpush1.msra.mxu0 0.0
  %2751 = vmatprep.subr.mxu0 0.0
  %2752 = vmatpush1.msra.mxu0 0.0
  %2753 = vmatprep.subr.mxu0 0.0
  %2754 = vmatpush1.msra.mxu0 0.0
  %2755 = vmatprep.subr.mxu0 0.0
  %2756 = vmatpush1.msra.mxu0 0.0
  %2757 = vmatprep.subr.mxu0 0.0
  %2758 = vmatpush1.msra.mxu0 0.0
  %2759 = vmatprep.subr.mxu0 0.0
  %2760 = vmatpush1.msra.mxu0 0.0
  %2761 = vmatprep.subr.mxu0 0.0
  %2762 = vmatpush1.msra.mxu0 0.0
  %2763 = vmatprep.subr.mxu0 0.0
  %2764 = vmatpush1.msra.mxu0 0.0
  %2765 = vmatprep.subr.mxu0 0.0
  %2766 = vmatpush1.msra.mxu0 0.0
  %2767 = vmatprep.subr.mxu0 0.0
  %2768 = vmatpush1.msra.mxu0 0.0
  %2769 = vmatprep.subr.mxu0 0.0
  %2770 = vmatpush1.msra.mxu0 0.0
  %2771 = vmatprep.mubr.f32.mxu0 0.0
  %2772 = vmatmul.mubr.f32.gmra.mrb[0].mxu0 %v2705
  %v2773 = vpop.f32.mrb[0].mxu0
  %v2774 = vadd.f32 0.0, %v2773
  %v2775 = vpop.f32.mrb[0].mxu0
  %2776 = vdwg.mxu0
  %v2777 = vadd.f32 %v230, %v2774
  %v2778 = vxor.u32 %v2777, 2147483648
  %v2779 = vmul.f32 %v2778, 1.442695
  %v2780 = vpow.pop %v2779
  %v2781 = vadd.f32 %v2780, 1.0
  %v2782 = vrcp.pop %v2781
  %v2783 = vmul.f32 1.0, %v2782
  %v2784 = vtanh.pop %v2777
  %v2785 = vmul.f32 %v2783, %v2442
  %2787 = vrot.lane.b32.xlu0 %v2784, 64
  %v2788 = vpop.permute.xlu0 %2787
  %v2790 = vmul.f32 %v2783, %v2788
  %2792 = vrot.lane.b32.xlu0 %v2790, 32
  %v2793 = vpop.permute.xlu0 %2792
  %v2795 = vadd.f32 %v2785, %v2793
  %v2796 = vtanh.pop %v2795
  %2798 = vrot.lane.b32.xlu0 %v2796, 64
  %v2799 = vpop.permute.xlu0 %2798
  %v2801 = vmul.f32 %v2783, %v2799
  %v2802 = vmax.f32 %v2801, 0.0
  %2804 = vrot.lane.b32.xlu0 %v2802, 32
  %v2805 = vpop.permute.xlu0 %2804
  %v2806 = vsel %vm233, %v2805, 0
  %2808 = vmatprep.subr.mxu0 0.0
  %2809 = vmatpush1.msra.mxu0 %v46
  %2810 = vmatprep.subr.mxu0 0.0
  %2811 = vmatpush1.msra.mxu0 %v47
  %2812 = vmatprep.subr.mxu0 0.0
  %2813 = vmatpush1.msra.mxu0 %v48
  %2814 = vmatprep.subr.mxu0 0.0
  %2815 = vmatpush1.msra.mxu0 %v49
  %2816 = vmatprep.subr.mxu0 0.0
  %2817 = vmatpush1.msra.mxu0 0.0
  %2818 = vmatprep.subr.mxu0 0.0
  %2819 = vmatpush1.msra.mxu0 0.0
  %2820 = vmatprep.subr.mxu0 0.0
  %2821 = vmatpush1.msra.mxu0 0.0
  %2822 = vmatprep.subr.mxu0 0.0
  %2823 = vmatpush1.msra.mxu0 0.0
  %2824 = vmatprep.subr.mxu0 0.0
  %2825 = vmatpush1.msra.mxu0 0.0
  %2826 = vmatprep.subr.mxu0 0.0
  %2827 = vmatpush1.msra.mxu0 0.0
  %2828 = vmatprep.subr.mxu0 0.0
  %2829 = vmatpush1.msra.mxu0 0.0
  %2830 = vmatprep.subr.mxu0 0.0
  %2831 = vmatpush1.msra.mxu0 0.0
  %2832 = vmatprep.subr.mxu0 0.0
  %2833 = vmatpush1.msra.mxu0 0.0
  %2834 = vmatprep.subr.mxu0 0.0
  %2835 = vmatpush1.msra.mxu0 0.0
  %2836 = vmatprep.subr.mxu0 0.0
  %2837 = vmatpush1.msra.mxu0 0.0
  %2838 = vmatprep.subr.mxu0 0.0
  %2839 = vmatpush1.msra.mxu0 0.0
  %2840 = vmatprep.subr.mxu0 0.0
  %2841 = vmatpush1.msra.mxu0 0.0
  %2842 = vmatprep.subr.mxu0 0.0
  %2843 = vmatpush1.msra.mxu0 0.0
  %2844 = vmatprep.subr.mxu0 0.0
  %2845 = vmatpush1.msra.mxu0 0.0
  %2846 = vmatprep.subr.mxu0 0.0
  %2847 = vmatpush1.msra.mxu0 0.0
  %2848 = vmatprep.subr.mxu0 0.0
  %2849 = vmatpush1.msra.mxu0 0.0
  %2850 = vmatprep.subr.mxu0 0.0
  %2851 = vmatpush1.msra.mxu0 0.0
  %2852 = vmatprep.subr.mxu0 0.0
  %2853 = vmatpush1.msra.mxu0 0.0
  %2854 = vmatprep.subr.mxu0 0.0
  %2855 = vmatpush1.msra.mxu0 0.0
  %2856 = vmatprep.subr.mxu0 0.0
  %2857 = vmatpush1.msra.mxu0 0.0
  %2858 = vmatprep.subr.mxu0 0.0
  %2859 = vmatpush1.msra.mxu0 0.0
  %2860 = vmatprep.subr.mxu0 0.0
  %2861 = vmatpush1.msra.mxu0 0.0
  %2862 = vmatprep.subr.mxu0 0.0
  %2863 = vmatpush1.msra.mxu0 0.0
  %2864 = vmatprep.subr.mxu0 0.0
  %2865 = vmatpush1.msra.mxu0 0.0
  %2866 = vmatprep.subr.mxu0 0.0
  %2867 = vmatpush1.msra.mxu0 0.0
  %2868 = vmatprep.subr.mxu0 0.0
  %2869 = vmatpush1.msra.mxu0 0.0
  %2870 = vmatprep.subr.mxu0 0.0
  %2871 = vmatpush1.msra.mxu0 0.0
  %2872 = vmatprep.mubr.f32.mxu0 0.0
  %2873 = vmatmul.mubr.f32.gmra.mrb[0].mxu0 %v2806
  %v2874 = vpop.f32.mrb[0].mxu0
  %v2875 = vadd.f32 %v337, %v2874
  %v2876 = vpop.f32.mrb[0].mxu0
  %2877 = vdwg.mxu0
  %2879 = vrot.lane.b32.xlu0 %v2624, 32
  %v2880 = vpop.permute.xlu0 %2879
  %v2881 = vsel %vm233, %v2880, 0
  %2883 = vmatprep.subr.mxu0 0.0
  %2884 = vmatpush1.msra.mxu0 %v42
  %2885 = vmatprep.subr.mxu0 0.0
  %2886 = vmatpush1.msra.mxu0 %v43
  %2887 = vmatprep.subr.mxu0 0.0
  %2888 = vmatpush1.msra.mxu0 %v44
  %2889 = vmatprep.subr.mxu0 0.0
  %2890 = vmatpush1.msra.mxu0 %v45
  %2891 = vmatprep.subr.mxu0 0.0
  %2892 = vmatpush1.msra.mxu0 0.0
  %2893 = vmatprep.subr.mxu0 0.0
  %2894 = vmatpush1.msra.mxu0 0.0
  %2895 = vmatprep.subr.mxu0 0.0
  %2896 = vmatpush1.msra.mxu0 0.0
  %2897 = vmatprep.subr.mxu0 0.0
  %2898 = vmatpush1.msra.mxu0 0.0
  %2899 = vmatprep.subr.mxu0 0.0
  %2900 = vmatpush1.msra.mxu0 0.0
  %2901 = vmatprep.subr.mxu0 0.0
  %2902 = vmatpush1.msra.mxu0 0.0
  %2903 = vmatprep.subr.mxu0 0.0
  %2904 = vmatpush1.msra.mxu0 0.0
  %2905 = vmatprep.subr.mxu0 0.0
  %2906 = vmatpush1.msra.mxu0 0.0
  %2907 = vmatprep.subr.mxu0 0.0
  %2908 = vmatpush1.msra.mxu0 0.0
  %2909 = vmatprep.subr.mxu0 0.0
  %2910 = vmatpush1.msra.mxu0 0.0
  %2911 = vmatprep.subr.mxu0 0.0
  %2912 = vmatpush1.msra.mxu0 0.0
  %2913 = vmatprep.subr.mxu0 0.0
  %2914 = vmatpush1.msra.mxu0 0.0
  %2915 = vmatprep.subr.mxu0 0.0
  %2916 = vmatpush1.msra.mxu0 0.0
  %2917 = vmatprep.subr.mxu0 0.0
  %2918 = vmatpush1.msra.mxu0 0.0
  %2919 = vmatprep.subr.mxu0 0.0
  %2920 = vmatpush1.msra.mxu0 0.0
  %2921 = vmatprep.subr.mxu0 0.0
  %2922 = vmatpush1.msra.mxu0 0.0
  %2923 = vmatprep.subr.mxu0 0.0
  %2924 = vmatpush1.msra.mxu0 0.0
  %2925 = vmatprep.subr.mxu0 0.0
  %2926 = vmatpush1.msra.mxu0 0.0
  %2927 = vmatprep.subr.mxu0 0.0
  %2928 = vmatpush1.msra.mxu0 0.0
  %2929 = vmatprep.subr.mxu0 0.0
  %2930 = vmatpush1.msra.mxu0 0.0
  %2931 = vmatprep.subr.mxu0 0.0
  %2932 = vmatpush1.msra.mxu0 0.0
  %2933 = vmatprep.subr.mxu0 0.0
  %2934 = vmatpush1.msra.mxu0 0.0
  %2935 = vmatprep.subr.mxu0 0.0
  %2936 = vmatpush1.msra.mxu0 0.0
  %2937 = vmatprep.subr.mxu0 0.0
  %2938 = vmatpush1.msra.mxu0 0.0
  %2939 = vmatprep.subr.mxu0 0.0
  %2940 = vmatpush1.msra.mxu0 0.0
  %2941 = vmatprep.subr.mxu0 0.0
  %2942 = vmatpush1.msra.mxu0 0.0
  %2943 = vmatprep.subr.mxu0 0.0
  %2944 = vmatpush1.msra.mxu0 0.0
  %2945 = vmatprep.subr.mxu0 0.0
  %2946 = vmatpush1.msra.mxu0 0.0
  %2947 = vmatprep.mubr.f32.mxu0 0.0
  %2948 = vmatmul.mubr.f32.gmra.mrb[0].mxu0 %v2881
  %v2949 = vpop.f32.mrb[0].mxu0
  %v2950 = vadd.f32 0.0, %v2949
  %v2951 = vpop.f32.mrb[0].mxu0
  %2952 = vdwg.mxu0
  %v2953 = vadd.f32 %v2875, %v2950
  %v2954 = vxor.u32 %v2953, 2147483648
  %v2955 = vmul.f32 %v2954, 1.442695
  %v2956 = vpow.pop %v2955
  %v2957 = vadd.f32 %v2956, 1.0
  %v2958 = vrcp.pop %v2957
  %v2959 = vmul.f32 1.0, %v2958
  %v2960 = vtanh.pop %v2953
  %v2961 = vmul.f32 %v2959, %v2618
  %2963 = vrot.lane.b32.xlu0 %v2960, 64
  %v2964 = vpop.permute.xlu0 %2963
  %v2966 = vmul.f32 %v2959, %v2964
  %2968 = vrot.lane.b32.xlu0 %v2966, 32
  %v2969 = vpop.permute.xlu0 %2968
  %v2971 = vadd.f32 %v2961, %v2969
  %v2972 = vtanh.pop %v2971
  %2974 = vrot.lane.b32.xlu0 %v2972, 64
  %v2975 = vpop.permute.xlu0 %2974
  %v2977 = vmul.f32 %v2959, %v2975
  %v2978 = vmax.f32 %v2977, 0.0
  %2980 = vrot.lane.b32.xlu0 %v2978, 32
  %v2981 = vpop.permute.xlu0 %2980
  %v2982 = vsel %vm233, %v2981, 0
  %2984 = vmatprep.subr.mxu0 0.0
  %2985 = vmatpush1.msra.mxu0 %v79
  %2986 = vmatprep.subr.mxu0 0.0
  %2987 = vmatpush1.msra.mxu0 %v80
  %2988 = vmatprep.subr.mxu0 0.0
  %2989 = vmatpush1.msra.mxu0 %v81
  %2990 = vmatprep.subr.mxu0 0.0
  %2991 = vmatpush1.msra.mxu0 %v82
  %2992 = vmatprep.subr.mxu0 0.0
  %2993 = vmatpush1.msra.mxu0 0.0
  %2994 = vmatprep.subr.mxu0 0.0
  %2995 = vmatpush1.msra.mxu0 0.0
  %2996 = vmatprep.subr.mxu0 0.0
  %2997 = vmatpush1.msra.mxu0 0.0
  %2998 = vmatprep.subr.mxu0 0.0
  %2999 = vmatpush1.msra.mxu0 0.0
  %3000 = vmatprep.subr.mxu0 0.0
  %3001 = vmatpush1.msra.mxu0 0.0
  %3002 = vmatprep.subr.mxu0 0.0
  %3003 = vmatpush1.msra.mxu0 0.0
  %3004 = vmatprep.subr.mxu0 0.0
  %3005 = vmatpush1.msra.mxu0 0.0
  %3006 = vmatprep.subr.mxu0 0.0
  %3007 = vmatpush1.msra.mxu0 0.0
  %3008 = vmatprep.subr.mxu0 0.0
  %3009 = vmatpush1.msra.mxu0 0.0
  %3010 = vmatprep.subr.mxu0 0.0
  %3011 = vmatpush1.msra.mxu0 0.0
  %3012 = vmatprep.subr.mxu0 0.0
  %3013 = vmatpush1.msra.mxu0 0.0
  %3014 = vmatprep.subr.mxu0 0.0
  %3015 = vmatpush1.msra.mxu0 0.0
  %3016 = vmatprep.subr.mxu0 0.0
  %3017 = vmatpush1.msra.mxu0 0.0
  %3018 = vmatprep.subr.mxu0 0.0
  %3019 = vmatpush1.msra.mxu0 0.0
  %3020 = vmatprep.subr.mxu0 0.0
  %3021 = vmatpush1.msra.mxu0 0.0
  %3022 = vmatprep.subr.mxu0 0.0
  %3023 = vmatpush1.msra.mxu0 0.0
  %3024 = vmatprep.subr.mxu0 0.0
  %3025 = vmatpush1.msra.mxu0 0.0
  %3026 = vmatprep.subr.mxu0 0.0
  %3027 = vmatpush1.msra.mxu0 0.0
  %3028 = vmatprep.subr.mxu0 0.0
  %3029 = vmatpush1.msra.mxu0 0.0
  %3030 = vmatprep.subr.mxu0 0.0
  %3031 = vmatpush1.msra.mxu0 0.0
  %3032 = vmatprep.subr.mxu0 0.0
  %3033 = vmatpush1.msra.mxu0 0.0
  %3034 = vmatprep.subr.mxu0 0.0
  %3035 = vmatpush1.msra.mxu0 0.0
  %3036 = vmatprep.subr.mxu0 0.0
  %3037 = vmatpush1.msra.mxu0 0.0
  %3038 = vmatprep.subr.mxu0 0.0
  %3039 = vmatpush1.msra.mxu0 0.0
  %3040 = vmatprep.subr.mxu0 0.0
  %3041 = vmatpush1.msra.mxu0 0.0
  %3042 = vmatprep.subr.mxu0 0.0
  %3043 = vmatpush1.msra.mxu0 0.0
  %3044 = vmatprep.subr.mxu0 0.0
  %3045 = vmatpush1.msra.mxu0 0.0
  %3046 = vmatprep.subr.mxu0 0.0
  %3047 = vmatpush1.msra.mxu0 0.0
  %3048 = vmatprep.mubr.f32.mxu0 0.0
  %3049 = vmatmul.mubr.f32.gmra.mrb[0].mxu0 %v2982
  %v3050 = vpop.f32.mrb[0].mxu0
  %v3051 = vadd.f32 0.0, %v3050
  %v3052 = vpop.f32.mrb[0].mxu0
  %3053 = vdwg.mxu0
  %v3054 = vadd.f32 %v2701, %v3051
  %v3055 = vld [vmem:[%s8] sm:$0x1]
  %v3057 = vlaneseq
  %v3058 = vshrl.u32 %v3057, 7
  %v3059 = vsub.s32 0, %v3058
  %v3060 = vrot.slane %v3055, %v3059
  %v3062 = vadd.f32 %v3054, %v3060
  %v3063 = vmax.f32 %v3062, 0.0
  %v3064 = vld [vmem:[%s9] sm:$0xff]
  %v3065 = vld [vmem:[%s9 + $0x8] sm:$0xff]
  %v3066 = vld [vmem:[%s9 + $0x10] sm:$0xff]
  %v3067 = vld [vmem:[%s9 + $0x18] sm:$0xff]
  %v3068 = vld [vmem:[%s9 + $0x20] sm:$0xff]
  %v3069 = vld [vmem:[%s9 + $0x28] sm:$0xff]
  %v3070 = vld [vmem:[%s9 + $0x30] sm:$0xff]
  %v3071 = vld [vmem:[%s9 + $0x38] sm:$0xff]
  %v3072 = vld [vmem:[%s9 + $0x40] sm:$0xff]
  %v3073 = vld [vmem:[%s9 + $0x48] sm:$0xff]
  %v3074 = vld [vmem:[%s9 + $0x50] sm:$0xff]
  %v3075 = vld [vmem:[%s9 + $0x58] sm:$0xff]
  %v3076 = vld [vmem:[%s9 + $0x60] sm:$0xff]
  %v3077 = vld [vmem:[%s9 + $0x68] sm:$0xff]
  %v3078 = vld [vmem:[%s9 + $0x70] sm:$0xff]
  %v3079 = vld [vmem:[%s9 + $0x78] sm:$0xff]
  %v3080 = vld [vmem:[%s10] sm:$0x1]
  %v3082 = vlaneseq
  %v3083 = vshrl.u32 %v3082, 7
  %v3084 = vsub.s32 0, %v3083
  %v3085 = vrot.slane %v3080, %v3084
  %3087 = vmatprep.subr.mxu0 0.0
  %3088 = vmatpush1.msra.mxu0 %v3064
  %3089 = vmatprep.subr.mxu0 0.0
  %3090 = vmatpush1.msra.mxu0 %v3065
  %3091 = vmatprep.subr.mxu0 0.0
  %3092 = vmatpush1.msra.mxu0 %v3066
  %3093 = vmatprep.subr.mxu0 0.0
  %3094 = vmatpush1.msra.mxu0 %v3067
  %3095 = vmatprep.subr.mxu0 0.0
  %3096 = vmatpush1.msra.mxu0 %v3068
  %3097 = vmatprep.subr.mxu0 0.0
  %3098 = vmatpush1.msra.mxu0 %v3069
  %3099 = vmatprep.subr.mxu0 0.0
  %3100 = vmatpush1.msra.mxu0 %v3070
  %3101 = vmatprep.subr.mxu0 0.0
  %3102 = vmatpush1.msra.mxu0 %v3071
  %3103 = vmatprep.subr.mxu0 0.0
  %3104 = vmatpush1.msra.mxu0 %v3072
  %3105 = vmatprep.subr.mxu0 0.0
  %3106 = vmatpush1.msra.mxu0 %v3073
  %3107 = vmatprep.subr.mxu0 0.0
  %3108 = vmatpush1.msra.mxu0 %v3074
  %3109 = vmatprep.subr.mxu0 0.0
  %3110 = vmatpush1.msra.mxu0 %v3075
  %3111 = vmatprep.subr.mxu0 0.0
  %3112 = vmatpush1.msra.mxu0 %v3076
  %3113 = vmatprep.subr.mxu0 0.0
  %3114 = vmatpush1.msra.mxu0 %v3077
  %3115 = vmatprep.subr.mxu0 0.0
  %3116 = vmatpush1.msra.mxu0 %v3078
  %3117 = vmatprep.subr.mxu0 0.0
  %3118 = vmatpush1.msra.mxu0 %v3079
  %3119 = vmatprep.subr.mxu0 0.0
  %3120 = vmatpush1.msra.mxu0 0.0
  %3121 = vmatprep.subr.mxu0 0.0
  %3122 = vmatpush1.msra.mxu0 0.0
  %3123 = vmatprep.subr.mxu0 0.0
  %3124 = vmatpush1.msra.mxu0 0.0
  %3125 = vmatprep.subr.mxu0 0.0
  %3126 = vmatpush1.msra.mxu0 0.0
  %3127 = vmatprep.subr.mxu0 0.0
  %3128 = vmatpush1.msra.mxu0 0.0
  %3129 = vmatprep.subr.mxu0 0.0
  %3130 = vmatpush1.msra.mxu0 0.0
  %3131 = vmatprep.subr.mxu0 0.0
  %3132 = vmatpush1.msra.mxu0 0.0
  %3133 = vmatprep.subr.mxu0 0.0
  %3134 = vmatpush1.msra.mxu0 0.0
  %3135 = vmatprep.subr.mxu0 0.0
  %3136 = vmatpush1.msra.mxu0 0.0
  %3137 = vmatprep.subr.mxu0 0.0
  %3138 = vmatpush1.msra.mxu0 0.0
  %3139 = vmatprep.subr.mxu0 0.0
  %3140 = vmatpush1.msra.mxu0 0.0
  %3141 = vmatprep.subr.mxu0 0.0
  %3142 = vmatpush1.msra.mxu0 0.0
  %3143 = vmatprep.subr.mxu0 0.0
  %3144 = vmatpush1.msra.mxu0 0.0
  %3145 = vmatprep.subr.mxu0 0.0
  %3146 = vmatpush1.msra.mxu0 0.0
  %3147 = vmatprep.subr.mxu0 0.0
  %3148 = vmatpush1.msra.mxu0 0.0
  %3149 = vmatprep.subr.mxu0 0.0
  %3150 = vmatpush1.msra.mxu0 0.0
  %3151 = vmatprep.mubr.f32.mxu0 0.0
  %3152 = vmatmul.mubr.f32.gmra.mrb[0].mxu0 %v3063
  %v3153 = vpop.f32.mrb[0].mxu0
  %v3154 = vadd.f32 %v3085, %v3153
  %v3155 = vpop.f32.mrb[0].mxu0
  %3156 = vdwg.mxu0
  %v3157 = vtanh.pop %v3154
  %3158 = vst [vmem:[%s11] sm:$0xff] %v3157
  // Predicated region
  $region46: #{lstm_model_forward.1} parent=0 // pred_check
    _
  $region47: #{lstm_model_forward.1} parent=0 // pred_check_branch
    %3160 = sbr.rel (0) target = $region49
  $region48: #{lstm_model_forward.1} parent=0 // pred_region
    _
  $region49: #{lstm_model_forward.1} parent=0 // pred_fallthru
    _
  // Predicated region
  $region50: #{lstm_model_forward.1} parent=0 // pred_check
    _
  $region51: #{lstm_model_forward.1} parent=0 // pred_check_branch
    %3162 = sbr.rel (0) target = $region53
  $region52: #{lstm_model_forward.1} parent=0 // pred_region
    _
  $region53: #{lstm_model_forward.1} parent=0 // pred_fallthru
    _

</llo_original>
